<compile_context>
chip_gen: v7x
topology: tpu7x:2x2x1
jax: 0.10.0
libtpu: 0.0.40
codegen_flags: <defaults>
</compile_context>

<pallas_src>
import functools

import numpy as np
import jax
import jax.numpy as jnp
from jax import lax
from jax.experimental import pallas as pl
from jax.experimental.pallas import tpu as pltpu

HIDDEN = 128
EPS = 1e-5


# ---------- shared math helpers ----------

def _log_sigmoid(z):
    return jnp.minimum(z, 0.0) - jnp.log1p(jnp.exp(-jnp.abs(z)))


def _logsumexp(z, axis):
    m = jnp.max(z, axis=axis, keepdims=True)
    return m + jnp.log(jnp.sum(jnp.exp(z - m), axis=axis, keepdims=True))


def _dot_bf16(h, w, b):
    """bf16 operands -> MXU, f32 accumulation, f32 bias add.  h: (R, Cin)."""
    return jnp.dot(h.astype(jnp.bfloat16), w, preferred_element_type=jnp.float32) + b


def _fused_in_bn_relu(z2d, gamma, beta, batch, npts, apply_dtype):
    """F.instance_norm (no affine) -> BatchNorm1d (training stats) -> ReLU, fused.

    After affine-free IN the per-channel batch mean is 0 and the batch variance
    is mean_b[var_b/(var_b+eps)], so a single per-(b,c) scale and per-(b,c)
    shift (affine folded into the stats) suffice.  Stats are f32 single-pass
    (E[x^2]-E[x]^2, clamped); the per-element apply runs in `apply_dtype`
    (bf16 on v6e/v7x, f32 on v5e).
    """
    c = z2d.shape[-1]
    z = z2d.reshape(batch, npts, c)                       # f32 matmul output
    mu = jnp.mean(z, axis=1, keepdims=True)               # (B,1,C)
    msq = jnp.mean(z * z, axis=1, keepdims=True)          # (B,1,C)
    var = jnp.maximum(msq - mu * mu, 0.0)
    r = lax.rsqrt(var + EPS)                              # per-(b,c) IN scale
    bvar = jnp.mean(var * (r * r), axis=0, keepdims=True)  # (1,1,C) batch var of IN output
    scale = r * lax.rsqrt(bvar + EPS) * gamma              # (B,1,C) combined IN*BN*gamma scale
    shift = beta - mu * scale                               # (B,1,C) folded affine
    y = jnp.maximum(z.astype(apply_dtype) * scale.astype(apply_dtype)
                    + shift.astype(apply_dtype), 0.0)
    return y.reshape(batch * npts, c)


# ---------- Pallas kernel ----------

def cnnet_kernel(x_ref, pin_w_ref, pin_b_ref,
                 w1_ref, b1_ref, g1_ref, be1_ref,
                 w2_ref, b2_ref, g2_ref, be2_ref,
                 pout_w_ref, pout_b_ref, pout2_w_ref, pout2_b_ref,
                 out1_ref, out2_ref, *, batch, npts, out_dim, apply_dtype):
    # Input projection + ReLU.  x: (B*N, Cin) f32, weights bf16.
    h = jnp.maximum(_dot_bf16(x_ref[...], pin_w_ref[...], pin_b_ref[...]), 0.0)
    h = h.astype(apply_dtype)                              # residual-stream dtype

    n_blocks = w1_ref.shape[0]
    for i in range(n_blocks):  # static unroll (fine at blocks=5)
        res = h
        z = _dot_bf16(h, w1_ref[i], b1_ref[i])
        h = _fused_in_bn_relu(z, g1_ref[i], be1_ref[i], batch, npts, apply_dtype)
        z = _dot_bf16(h, w2_ref[i], b2_ref[i])
        h = _fused_in_bn_relu(z, g2_ref[i], be2_ref[i], batch, npts, apply_dtype)
        h = h + res

    # Two separate head matmuls, written directly to the two outputs
    # (no in-kernel concat / lane-masked slices, no wrapper-side slicing).
    z1 = _dot_bf16(h, pout_w_ref[...], pout_b_ref[...])    # (R, out)
    ls1 = _log_sigmoid(z1).reshape(batch, npts, out_dim)
    out1_ref[...] = ls1 - _logsumexp(ls1, axis=-1)         # normalize over channels

    z2 = _dot_bf16(h, pout2_w_ref[...], pout2_b_ref[...])  # (R, out)
    ls2 = _log_sigmoid(z2).reshape(batch, npts, out_dim)
    out2_ref[...] = ls2 - _logsumexp(ls2, axis=-2)         # normalize over the N axis


# ---------- wrapper ----------

def _vmem_cap_bytes():
    """~85% of physical VMEM per TensorCore (generation-aware: 64 MiB on v7x,
    128 MiB on v5e/v6e)."""
    default_phys = 64 * 2**20  # conservative fallback = v7x per-TC physical
    try:
        info = pltpu.get_tpu_info()
        phys = int(getattr(info, "vmem_capacity_bytes", default_phys))
    except Exception:
        phys = default_phys
    return int(0.85 * phys)


def _vmem_budget_bytes(batch, npts, input_dim, out_dim, blocks):
    r = batch * npts
    acts = 4 * r * HIDDEN * 4                                     # live (R,128) slabs, f32-worst-case
    x_b = r * input_dim * 4
    w_b = (input_dim * HIDDEN + 2 * blocks * HIDDEN * HIDDEN
           + 2 * HIDDEN * out_dim) * 2                            # bf16 weights
    small = (2 + 4 * blocks) * HIDDEN * 4 + 4 * out_dim * 4       # biases + BN params
    out_b = 2 * r * out_dim * 4
    est = acts + x_b + w_b + small + out_b
    # 1.5x headroom for compiler temps / IO copies, 32 MiB floor, gen-aware cap.
    # TODO(synk): once 1.5*est exceeds the cap, switch to the B-tiled grid path.
    return int(min(_vmem_cap_bytes(), max(32 * 2**20, int(1.5 * est))))


def _bf16_apply_supported():
    """bf16 VALU exists on v6e/v7x; v5e (and older) would emulate bf16 elementwise."""
    try:
        kind = jax.devices()[0].device_kind.lower()
    except Exception:
        return False
    return ("v6" in kind) or ("v7" in kind) or ("trillium" in kind)


def cnnet_forward(inputs, params, input_dim, apply_dtype=None):
    """inputs: (B, N, C).  Torch transposes to (B, C, N) and uses the first
    `input_dim` channels; in our channel-last layout that is a last-axis slice."""
    if apply_dtype is None:
        apply_dtype = jnp.bfloat16 if _bf16_apply_supported() else jnp.float32

    x = inputs[:, :, :input_dim].astype(jnp.float32)
    B, N, _ = x.shape
    # Note: N that is not a multiple of 8 (16 for bf16) still computes correctly;
    # the (B*N,C)<->(B,N,C) reshapes may just cost a layout copy.
    out_dim = params["pout_w"].shape[-1]
    blocks = params["w1"].shape[0]

    bf = lambda a: a.astype(jnp.bfloat16)
    args = (x.reshape(B * N, input_dim),
            bf(params["pin_w"]), params["pin_b"],
            bf(params["w1"]), params["b1"], params["g1"], params["be1"],
            bf(params["w2"]), params["b2"], params["g2"], params["be2"],
            bf(params["pout_w"]), params["pout_b"],
            bf(params["pout2_w"]), params["pout2_b"])

    vspec = pl.BlockSpec(memory_space=pltpu.MemorySpace.VMEM)
    log_ng, log_ng2 = pl.pallas_call(
        functools.partial(cnnet_kernel, batch=B, npts=N, out_dim=out_dim,
                          apply_dtype=apply_dtype),
        out_shape=(jax.ShapeDtypeStruct((B, N, out_dim), jnp.float32),
                   jax.ShapeDtypeStruct((B, N, out_dim), jnp.float32)),
        in_specs=[vspec] * len(args),
        out_specs=(vspec, vspec),
        compiler_params=pltpu.CompilerParams(
            vmem_limit_bytes=_vmem_budget_bytes(B, N, input_dim, out_dim, blocks)),
    )(*args)
    return log_ng, log_ng2


# ---------- pure-JAX reference (literal two-pass IN + BN, separate heads) ----------

def _pconv_ref(h, w, b):
    B, N, C = h.shape
    out = jnp.dot(h.reshape(B * N, C).astype(jnp.bfloat16), w.astype(jnp.bfloat16),
                  preferred_element_type=jnp.float32)
    return out.reshape(B, N, w.shape[-1]) + b


def _instance_norm_ref(h):
    mu = jnp.mean(h, axis=1, keepdims=True)
    var = jnp.mean(jnp.square(h - mu), axis=1, keepdims=True)
    return (h - mu) * lax.rsqrt(var + EPS)


def _batch_norm_ref(h, gamma, beta):
    mu = jnp.mean(h, axis=(0, 1), keepdims=True)
    var = jnp.mean(jnp.square(h - mu), axis=(0, 1), keepdims=True)
    return (h - mu) * lax.rsqrt(var + EPS) * gamma + beta


def cnnet_reference(inputs, params, input_dim):
    x = inputs[:, :, :input_dim].astype(jnp.float32)
    h = jnp.maximum(_pconv_ref(x, params["pin_w"], params["pin_b"]), 0.0)
    for i in range(params["w1"].shape[0]):
        res = h
        h = _pconv_ref(h, params["w1"][i], params["b1"][i])
        h = jnp.maximum(_batch_norm_ref(_instance_norm_ref(h), params["g1"][i], params["be1"][i]), 0.0)
        h = _pconv_ref(h, params["w2"][i], params["b2"][i])
        h = jnp.maximum(_batch_norm_ref(_instance_norm_ref(h), params["g2"][i], params["be2"][i]), 0.0)
        h = h + res
    ls1 = _log_sigmoid(_pconv_ref(h, params["pout_w"], params["pout_b"]))
    log_ng = ls1 - _logsumexp(ls1, -1)
    ls2 = _log_sigmoid(_pconv_ref(h, params["pout2_w"], params["pout2_b"]))
    log_ng2 = ls2 - _logsumexp(ls2, -2)
    return log_ng, log_ng2


# ---------- deterministic parameter init (shapes from CNNet.__init__) ----------

def init_params(key, input_dim, output_dim, blocks):
    def conv_init(k, fan_in, fan_out):
        kw, kb = jax.random.split(k)
        lim = 1.0 / np.sqrt(fan_in)
        w = jax.random.uniform(kw, (fan_in, fan_out), jnp.float32, -lim, lim)
        b = jax.random.uniform(kb, (1, fan_out), jnp.float32, -lim, lim)
        return w, b

    keys = jax.random.split(key, 3 + 2 * blocks)
    pin_w, pin_b = conv_init(keys[0], input_dim, HIDDEN)
    w1, b1, w2, b2 = [], [], [], []
    for i in range(blocks):
        wa, ba = conv_init(keys[1 + 2 * i], HIDDEN, HIDDEN)
        wb, bb = conv_init(keys[2 + 2 * i], HIDDEN, HIDDEN)
        w1.append(wa); b1.append(ba); w2.append(wb); b2.append(bb)
    pout_w, pout_b = conv_init(keys[1 + 2 * blocks], HIDDEN, output_dim)
    pout2_w, pout2_b = conv_init(keys[2 + 2 * blocks], HIDDEN, output_dim)

    ones = jnp.ones((blocks, 1, HIDDEN), jnp.float32)    # torch BN default weight=1
    zeros = jnp.zeros((blocks, 1, HIDDEN), jnp.float32)  # torch BN default bias=0
    return dict(
        pin_w=pin_w, pin_b=pin_b,
        w1=jnp.stack(w1), b1=jnp.stack(b1), g1=ones, be1=zeros,
        w2=jnp.stack(w2), b2=jnp.stack(b2), g2=ones, be2=zeros,
        pout_w=pout_w, pout_b=pout_b, pout2_w=pout2_w, pout2_b=pout2_b,
    )


if __name__ == "__main__":
    B, N, C_total = 2, 16, 6          # inputs carry 6 channels; module uses first input_dim
    input_dim, output_dim, blocks = 4, 8, 5

    key = jax.random.PRNGKey(0)
    k_in, k_par = jax.random.split(key)
    inputs = jax.random.normal(k_in, (B, N, C_total), jnp.float32)
    params = init_params(k_par, input_dim, output_dim, blocks)

    apply_dtype = jnp.bfloat16 if _bf16_apply_supported() else jnp.float32
    log_ng, log_ng2 = cnnet_forward(inputs, params, input_dim, apply_dtype=apply_dtype)
    jax.block_until_ready((log_ng, log_ng2))

    ref1, ref2 = cnnet_reference(inputs, params, input_dim)
    # Tolerance covers the in-kernel IN+BN fusion / single-pass variance (always)
    # plus the bf16 apply/residual stream on v6e/v7x vs the f32-apply literal
    # reference (bf16 matmul inputs in both).
    tol = 2e-2 if apply_dtype is jnp.bfloat16 else 5e-3
    np.testing.assert_allclose(np.asarray(log_ng), np.asarray(ref1), rtol=tol, atol=tol)
    np.testing.assert_allclose(np.asarray(log_ng2), np.asarray(ref2), rtol=tol, atol=tol)

    print("KERNEL_OK")
</pallas_src>

<mosaic_0001>
module attributes {stable_mosaic.version = 11 : i64} {
  func.func @cnnet_kernel(%arg0: memref<32x4xf32, #tpu.memory_space<vmem>>, %arg1: memref<4x128xbf16, #tpu.memory_space<vmem>>, %arg2: memref<1x128xf32, #tpu.memory_space<vmem>>, %arg3: memref<5x128x128xbf16, #tpu.memory_space<vmem>>, %arg4: memref<5x1x128xf32, #tpu.memory_space<vmem>>, %arg5: memref<5x1x128xf32, #tpu.memory_space<vmem>>, %arg6: memref<5x1x128xf32, #tpu.memory_space<vmem>>, %arg7: memref<5x128x128xbf16, #tpu.memory_space<vmem>>, %arg8: memref<5x1x128xf32, #tpu.memory_space<vmem>>, %arg9: memref<5x1x128xf32, #tpu.memory_space<vmem>>, %arg10: memref<5x1x128xf32, #tpu.memory_space<vmem>>, %arg11: memref<128x8xbf16, #tpu.memory_space<vmem>>, %arg12: memref<1x8xf32, #tpu.memory_space<vmem>>, %arg13: memref<128x8xbf16, #tpu.memory_space<vmem>>, %arg14: memref<1x8xf32, #tpu.memory_space<vmem>>, %arg15: memref<2x16x8xf32, #tpu.memory_space<vmem>>, %arg16: memref<2x16x8xf32, #tpu.memory_space<vmem>>) attributes {dimension_semantics = [], scalar_prefetch = 0 : i64, scratch_operands = 0 : i64, tpu.core_type = #tpu.core_type<tc>} {
    %c0 = arith.constant 0 : index
    %c0_0 = arith.constant 0 : index
    %0 = vector.load %arg0[%c0, %c0_0] : memref<32x4xf32, #tpu.memory_space<vmem>>, vector<32x4xf32>
    %c0_1 = arith.constant 0 : index
    %c0_2 = arith.constant 0 : index
    %1 = vector.load %arg1[%c0_1, %c0_2] : memref<4x128xbf16, #tpu.memory_space<vmem>>, vector<4x128xbf16>
    %c0_3 = arith.constant 0 : index
    %c0_4 = arith.constant 0 : index
    %2 = vector.load %arg2[%c0_3, %c0_4] : memref<1x128xf32, #tpu.memory_space<vmem>>, vector<1x128xf32>
    %3 = arith.truncf %0 : vector<32x4xf32> to vector<32x4xbf16>
    %cst = arith.constant dense<0.000000e+00> : vector<32x128xf32>
    %4 = tpu.matmul %3, %1, %cst {dimension_numbers = #tpu.dot_dimension_numbers<[1], [0], [0], [1], [0, 0, 1, 1], [], []>} : vector<32x4xbf16>, vector<4x128xbf16>, vector<32x128xf32> -> vector<32x128xf32>
    %5 = vector.broadcast %2 : vector<1x128xf32> to vector<32x128xf32>
    %6 = arith.addf %4, %5 : vector<32x128xf32>
    %cst_5 = arith.constant 0.000000e+00 : f32
    %7 = vector.broadcast %cst_5 : f32 to vector<32x128xf32>
    %8 = arith.maximumf %6, %7 : vector<32x128xf32>
    %c0_6 = arith.constant 0 : index
    %c0_7 = arith.constant 0 : index
    %c0_8 = arith.constant 0 : index
    %9 = vector.load %arg3[%c0_6, %c0_7, %c0_8] : memref<5x128x128xbf16, #tpu.memory_space<vmem>>, vector<1x128x128xbf16>
    %10 = vector.shape_cast %9 : vector<1x128x128xbf16> to vector<128x128xbf16>
    %c0_9 = arith.constant 0 : index
    %c0_10 = arith.constant 0 : index
    %c0_11 = arith.constant 0 : index
    %11 = vector.load %arg4[%c0_9, %c0_10, %c0_11] : memref<5x1x128xf32, #tpu.memory_space<vmem>>, vector<1x1x128xf32>
    %12 = vector.shape_cast %11 : vector<1x1x128xf32> to vector<1x128xf32>
    %13 = arith.truncf %8 : vector<32x128xf32> to vector<32x128xbf16>
    %cst_12 = arith.constant dense<0.000000e+00> : vector<32x128xf32>
    %14 = tpu.matmul %13, %10, %cst_12 {dimension_numbers = #tpu.dot_dimension_numbers<[1], [0], [0], [1], [0, 0, 1, 1], [], []>} : vector<32x128xbf16>, vector<128x128xbf16>, vector<32x128xf32> -> vector<32x128xf32>
    %15 = vector.broadcast %12 : vector<1x128xf32> to vector<32x128xf32>
    %16 = arith.addf %14, %15 : vector<32x128xf32>
    %c0_13 = arith.constant 0 : index
    %c0_14 = arith.constant 0 : index
    %c0_15 = arith.constant 0 : index
    %17 = vector.load %arg5[%c0_13, %c0_14, %c0_15] : memref<5x1x128xf32, #tpu.memory_space<vmem>>, vector<1x1x128xf32>
    %18 = vector.shape_cast %17 : vector<1x1x128xf32> to vector<1x128xf32>
    %c0_16 = arith.constant 0 : index
    %c0_17 = arith.constant 0 : index
    %c0_18 = arith.constant 0 : index
    %19 = vector.load %arg6[%c0_16, %c0_17, %c0_18] : memref<5x1x128xf32, #tpu.memory_space<vmem>>, vector<1x1x128xf32>
    %20 = vector.shape_cast %19 : vector<1x1x128xf32> to vector<1x128xf32>
    %21 = vector.shape_cast %16 : vector<32x128xf32> to vector<2x16x128xf32>
    %cst_19 = arith.constant dense<0.000000e+00> : vector<2x128xf32>
    %22 = vector.multi_reduction <add>, %21, %cst_19 [1] : vector<2x16x128xf32> to vector<2x128xf32>
    %23 = vector.shape_cast %22 : vector<2x128xf32> to vector<2x1x128xf32>
    %cst_20 = arith.constant 1.600000e+01 : f32
    %24 = vector.broadcast %cst_20 : f32 to vector<2x1x128xf32>
    %25 = arith.divf %23, %24 : vector<2x1x128xf32>
    %26 = arith.mulf %21, %21 : vector<2x16x128xf32>
    %cst_21 = arith.constant dense<0.000000e+00> : vector<2x128xf32>
    %27 = vector.multi_reduction <add>, %26, %cst_21 [1] : vector<2x16x128xf32> to vector<2x128xf32>
    %28 = vector.shape_cast %27 : vector<2x128xf32> to vector<2x1x128xf32>
    %cst_22 = arith.constant 1.600000e+01 : f32
    %29 = vector.broadcast %cst_22 : f32 to vector<2x1x128xf32>
    %30 = arith.divf %28, %29 : vector<2x1x128xf32>
    %31 = arith.mulf %25, %25 : vector<2x1x128xf32>
    %32 = arith.subf %30, %31 : vector<2x1x128xf32>
    %cst_23 = arith.constant 0.000000e+00 : f32
    %33 = vector.broadcast %cst_23 : f32 to vector<2x1x128xf32>
    %34 = arith.maximumf %32, %33 : vector<2x1x128xf32>
    %cst_24 = arith.constant 9.99999974E-6 : f32
    %35 = vector.broadcast %cst_24 : f32 to vector<2x1x128xf32>
    %36 = arith.addf %34, %35 : vector<2x1x128xf32>
    %37 = math.rsqrt %36 : vector<2x1x128xf32>
    %38 = arith.mulf %37, %37 : vector<2x1x128xf32>
    %39 = arith.mulf %34, %38 : vector<2x1x128xf32>
    %cst_25 = arith.constant dense<0.000000e+00> : vector<1x128xf32>
    %40 = vector.multi_reduction <add>, %39, %cst_25 [0] : vector<2x1x128xf32> to vector<1x128xf32>
    %41 = vector.shape_cast %40 : vector<1x128xf32> to vector<1x1x128xf32>
    %cst_26 = arith.constant 2.000000e+00 : f32
    %42 = vector.broadcast %cst_26 : f32 to vector<1x1x128xf32>
    %43 = arith.divf %41, %42 : vector<1x1x128xf32>
    %cst_27 = arith.constant 9.99999974E-6 : f32
    %44 = vector.broadcast %cst_27 : f32 to vector<1x1x128xf32>
    %45 = arith.addf %43, %44 : vector<1x1x128xf32>
    %46 = math.rsqrt %45 : vector<1x1x128xf32>
    %47 = vector.broadcast %46 : vector<1x1x128xf32> to vector<2x1x128xf32>
    %48 = arith.mulf %37, %47 : vector<2x1x128xf32>
    %49 = vector.shape_cast %18 : vector<1x128xf32> to vector<1x1x128xf32>
    %50 = vector.broadcast %49 : vector<1x1x128xf32> to vector<2x1x128xf32>
    %51 = arith.mulf %48, %50 : vector<2x1x128xf32>
    %52 = arith.mulf %25, %51 : vector<2x1x128xf32>
    %53 = vector.shape_cast %20 : vector<1x128xf32> to vector<1x1x128xf32>
    %54 = vector.broadcast %53 : vector<1x1x128xf32> to vector<2x1x128xf32>
    %55 = arith.subf %54, %52 : vector<2x1x128xf32>
    %56 = vector.broadcast %51 : vector<2x1x128xf32> to vector<2x16x128xf32>
    %57 = arith.mulf %21, %56 : vector<2x16x128xf32>
    %58 = vector.broadcast %55 : vector<2x1x128xf32> to vector<2x16x128xf32>
    %59 = arith.addf %57, %58 : vector<2x16x128xf32>
    %cst_28 = arith.constant 0.000000e+00 : f32
    %60 = vector.broadcast %cst_28 : f32 to vector<2x16x128xf32>
    %61 = arith.maximumf %59, %60 : vector<2x16x128xf32>
    %62 = vector.shape_cast %61 : vector<2x16x128xf32> to vector<32x128xf32>
    %c0_29 = arith.constant 0 : index
    %c0_30 = arith.constant 0 : index
    %c0_31 = arith.constant 0 : index
    %63 = vector.load %arg7[%c0_29, %c0_30, %c0_31] : memref<5x128x128xbf16, #tpu.memory_space<vmem>>, vector<1x128x128xbf16>
    %64 = vector.shape_cast %63 : vector<1x128x128xbf16> to vector<128x128xbf16>
    %c0_32 = arith.constant 0 : index
    %c0_33 = arith.constant 0 : index
    %c0_34 = arith.constant 0 : index
    %65 = vector.load %arg8[%c0_32, %c0_33, %c0_34] : memref<5x1x128xf32, #tpu.memory_space<vmem>>, vector<1x1x128xf32>
    %66 = vector.shape_cast %65 : vector<1x1x128xf32> to vector<1x128xf32>
    %67 = arith.truncf %62 : vector<32x128xf32> to vector<32x128xbf16>
    %cst_35 = arith.constant dense<0.000000e+00> : vector<32x128xf32>
    %68 = tpu.matmul %67, %64, %cst_35 {dimension_numbers = #tpu.dot_dimension_numbers<[1], [0], [0], [1], [0, 0, 1, 1], [], []>} : vector<32x128xbf16>, vector<128x128xbf16>, vector<32x128xf32> -> vector<32x128xf32>
    %69 = vector.broadcast %66 : vector<1x128xf32> to vector<32x128xf32>
    %70 = arith.addf %68, %69 : vector<32x128xf32>
    %c0_36 = arith.constant 0 : index
    %c0_37 = arith.constant 0 : index
    %c0_38 = arith.constant 0 : index
    %71 = vector.load %arg9[%c0_36, %c0_37, %c0_38] : memref<5x1x128xf32, #tpu.memory_space<vmem>>, vector<1x1x128xf32>
    %72 = vector.shape_cast %71 : vector<1x1x128xf32> to vector<1x128xf32>
    %c0_39 = arith.constant 0 : index
    %c0_40 = arith.constant 0 : index
    %c0_41 = arith.constant 0 : index
    %73 = vector.load %arg10[%c0_39, %c0_40, %c0_41] : memref<5x1x128xf32, #tpu.memory_space<vmem>>, vector<1x1x128xf32>
    %74 = vector.shape_cast %73 : vector<1x1x128xf32> to vector<1x128xf32>
    %75 = vector.shape_cast %70 : vector<32x128xf32> to vector<2x16x128xf32>
    %cst_42 = arith.constant dense<0.000000e+00> : vector<2x128xf32>
    %76 = vector.multi_reduction <add>, %75, %cst_42 [1] : vector<2x16x128xf32> to vector<2x128xf32>
    %77 = vector.shape_cast %76 : vector<2x128xf32> to vector<2x1x128xf32>
    %cst_43 = arith.constant 1.600000e+01 : f32
    %78 = vector.broadcast %cst_43 : f32 to vector<2x1x128xf32>
    %79 = arith.divf %77, %78 : vector<2x1x128xf32>
    %80 = arith.mulf %75, %75 : vector<2x16x128xf32>
    %cst_44 = arith.constant dense<0.000000e+00> : vector<2x128xf32>
    %81 = vector.multi_reduction <add>, %80, %cst_44 [1] : vector<2x16x128xf32> to vector<2x128xf32>
    %82 = vector.shape_cast %81 : vector<2x128xf32> to vector<2x1x128xf32>
    %cst_45 = arith.constant 1.600000e+01 : f32
    %83 = vector.broadcast %cst_45 : f32 to vector<2x1x128xf32>
    %84 = arith.divf %82, %83 : vector<2x1x128xf32>
    %85 = arith.mulf %79, %79 : vector<2x1x128xf32>
    %86 = arith.subf %84, %85 : vector<2x1x128xf32>
    %cst_46 = arith.constant 0.000000e+00 : f32
    %87 = vector.broadcast %cst_46 : f32 to vector<2x1x128xf32>
    %88 = arith.maximumf %86, %87 : vector<2x1x128xf32>
    %cst_47 = arith.constant 9.99999974E-6 : f32
    %89 = vector.broadcast %cst_47 : f32 to vector<2x1x128xf32>
    %90 = arith.addf %88, %89 : vector<2x1x128xf32>
    %91 = math.rsqrt %90 : vector<2x1x128xf32>
    %92 = arith.mulf %91, %91 : vector<2x1x128xf32>
    %93 = arith.mulf %88, %92 : vector<2x1x128xf32>
    %cst_48 = arith.constant dense<0.000000e+00> : vector<1x128xf32>
    %94 = vector.multi_reduction <add>, %93, %cst_48 [0] : vector<2x1x128xf32> to vector<1x128xf32>
    %95 = vector.shape_cast %94 : vector<1x128xf32> to vector<1x1x128xf32>
    %cst_49 = arith.constant 2.000000e+00 : f32
    %96 = vector.broadcast %cst_49 : f32 to vector<1x1x128xf32>
    %97 = arith.divf %95, %96 : vector<1x1x128xf32>
    %cst_50 = arith.constant 9.99999974E-6 : f32
    %98 = vector.broadcast %cst_50 : f32 to vector<1x1x128xf32>
    %99 = arith.addf %97, %98 : vector<1x1x128xf32>
    %100 = math.rsqrt %99 : vector<1x1x128xf32>
    %101 = vector.broadcast %100 : vector<1x1x128xf32> to vector<2x1x128xf32>
    %102 = arith.mulf %91, %101 : vector<2x1x128xf32>
    %103 = vector.shape_cast %72 : vector<1x128xf32> to vector<1x1x128xf32>
    %104 = vector.broadcast %103 : vector<1x1x128xf32> to vector<2x1x128xf32>
    %105 = arith.mulf %102, %104 : vector<2x1x128xf32>
    %106 = arith.mulf %79, %105 : vector<2x1x128xf32>
    %107 = vector.shape_cast %74 : vector<1x128xf32> to vector<1x1x128xf32>
    %108 = vector.broadcast %107 : vector<1x1x128xf32> to vector<2x1x128xf32>
    %109 = arith.subf %108, %106 : vector<2x1x128xf32>
    %110 = vector.broadcast %105 : vector<2x1x128xf32> to vector<2x16x128xf32>
    %111 = arith.mulf %75, %110 : vector<2x16x128xf32>
    %112 = vector.broadcast %109 : vector<2x1x128xf32> to vector<2x16x128xf32>
    %113 = arith.addf %111, %112 : vector<2x16x128xf32>
    %cst_51 = arith.constant 0.000000e+00 : f32
    %114 = vector.broadcast %cst_51 : f32 to vector<2x16x128xf32>
    %115 = arith.maximumf %113, %114 : vector<2x16x128xf32>
    %116 = vector.shape_cast %115 : vector<2x16x128xf32> to vector<32x128xf32>
    %117 = arith.addf %116, %8 : vector<32x128xf32>
    %c1 = arith.constant 1 : index
    %c0_52 = arith.constant 0 : index
    %c0_53 = arith.constant 0 : index
    %118 = vector.load %arg3[%c1, %c0_52, %c0_53] : memref<5x128x128xbf16, #tpu.memory_space<vmem>>, vector<1x128x128xbf16>
    %119 = vector.shape_cast %118 : vector<1x128x128xbf16> to vector<128x128xbf16>
    %c1_54 = arith.constant 1 : index
    %c0_55 = arith.constant 0 : index
    %c0_56 = arith.constant 0 : index
    %120 = vector.load %arg4[%c1_54, %c0_55, %c0_56] : memref<5x1x128xf32, #tpu.memory_space<vmem>>, vector<1x1x128xf32>
    %121 = vector.shape_cast %120 : vector<1x1x128xf32> to vector<1x128xf32>
    %122 = arith.truncf %117 : vector<32x128xf32> to vector<32x128xbf16>
    %cst_57 = arith.constant dense<0.000000e+00> : vector<32x128xf32>
    %123 = tpu.matmul %122, %119, %cst_57 {dimension_numbers = #tpu.dot_dimension_numbers<[1], [0], [0], [1], [0, 0, 1, 1], [], []>} : vector<32x128xbf16>, vector<128x128xbf16>, vector<32x128xf32> -> vector<32x128xf32>
    %124 = vector.broadcast %121 : vector<1x128xf32> to vector<32x128xf32>
    %125 = arith.addf %123, %124 : vector<32x128xf32>
    %c1_58 = arith.constant 1 : index
    %c0_59 = arith.constant 0 : index
    %c0_60 = arith.constant 0 : index
    %126 = vector.load %arg5[%c1_58, %c0_59, %c0_60] : memref<5x1x128xf32, #tpu.memory_space<vmem>>, vector<1x1x128xf32>
    %127 = vector.shape_cast %126 : vector<1x1x128xf32> to vector<1x128xf32>
    %c1_61 = arith.constant 1 : index
    %c0_62 = arith.constant 0 : index
    %c0_63 = arith.constant 0 : index
    %128 = vector.load %arg6[%c1_61, %c0_62, %c0_63] : memref<5x1x128xf32, #tpu.memory_space<vmem>>, vector<1x1x128xf32>
    %129 = vector.shape_cast %128 : vector<1x1x128xf32> to vector<1x128xf32>
    %130 = vector.shape_cast %125 : vector<32x128xf32> to vector<2x16x128xf32>
    %cst_64 = arith.constant dense<0.000000e+00> : vector<2x128xf32>
    %131 = vector.multi_reduction <add>, %130, %cst_64 [1] : vector<2x16x128xf32> to vector<2x128xf32>
    %132 = vector.shape_cast %131 : vector<2x128xf32> to vector<2x1x128xf32>
    %cst_65 = arith.constant 1.600000e+01 : f32
    %133 = vector.broadcast %cst_65 : f32 to vector<2x1x128xf32>
    %134 = arith.divf %132, %133 : vector<2x1x128xf32>
    %135 = arith.mulf %130, %130 : vector<2x16x128xf32>
    %cst_66 = arith.constant dense<0.000000e+00> : vector<2x128xf32>
    %136 = vector.multi_reduction <add>, %135, %cst_66 [1] : vector<2x16x128xf32> to vector<2x128xf32>
    %137 = vector.shape_cast %136 : vector<2x128xf32> to vector<2x1x128xf32>
    %cst_67 = arith.constant 1.600000e+01 : f32
    %138 = vector.broadcast %cst_67 : f32 to vector<2x1x128xf32>
    %139 = arith.divf %137, %138 : vector<2x1x128xf32>
    %140 = arith.mulf %134, %134 : vector<2x1x128xf32>
    %141 = arith.subf %139, %140 : vector<2x1x128xf32>
    %cst_68 = arith.constant 0.000000e+00 : f32
    %142 = vector.broadcast %cst_68 : f32 to vector<2x1x128xf32>
    %143 = arith.maximumf %141, %142 : vector<2x1x128xf32>
    %cst_69 = arith.constant 9.99999974E-6 : f32
    %144 = vector.broadcast %cst_69 : f32 to vector<2x1x128xf32>
    %145 = arith.addf %143, %144 : vector<2x1x128xf32>
    %146 = math.rsqrt %145 : vector<2x1x128xf32>
    %147 = arith.mulf %146, %146 : vector<2x1x128xf32>
    %148 = arith.mulf %143, %147 : vector<2x1x128xf32>
    %cst_70 = arith.constant dense<0.000000e+00> : vector<1x128xf32>
    %149 = vector.multi_reduction <add>, %148, %cst_70 [0] : vector<2x1x128xf32> to vector<1x128xf32>
    %150 = vector.shape_cast %149 : vector<1x128xf32> to vector<1x1x128xf32>
    %cst_71 = arith.constant 2.000000e+00 : f32
    %151 = vector.broadcast %cst_71 : f32 to vector<1x1x128xf32>
    %152 = arith.divf %150, %151 : vector<1x1x128xf32>
    %cst_72 = arith.constant 9.99999974E-6 : f32
    %153 = vector.broadcast %cst_72 : f32 to vector<1x1x128xf32>
    %154 = arith.addf %152, %153 : vector<1x1x128xf32>
    %155 = math.rsqrt %154 : vector<1x1x128xf32>
    %156 = vector.broadcast %155 : vector<1x1x128xf32> to vector<2x1x128xf32>
    %157 = arith.mulf %146, %156 : vector<2x1x128xf32>
    %158 = vector.shape_cast %127 : vector<1x128xf32> to vector<1x1x128xf32>
    %159 = vector.broadcast %158 : vector<1x1x128xf32> to vector<2x1x128xf32>
    %160 = arith.mulf %157, %159 : vector<2x1x128xf32>
    %161 = arith.mulf %134, %160 : vector<2x1x128xf32>
    %162 = vector.shape_cast %129 : vector<1x128xf32> to vector<1x1x128xf32>
    %163 = vector.broadcast %162 : vector<1x1x128xf32> to vector<2x1x128xf32>
    %164 = arith.subf %163, %161 : vector<2x1x128xf32>
    %165 = vector.broadcast %160 : vector<2x1x128xf32> to vector<2x16x128xf32>
    %166 = arith.mulf %130, %165 : vector<2x16x128xf32>
    %167 = vector.broadcast %164 : vector<2x1x128xf32> to vector<2x16x128xf32>
    %168 = arith.addf %166, %167 : vector<2x16x128xf32>
    %cst_73 = arith.constant 0.000000e+00 : f32
    %169 = vector.broadcast %cst_73 : f32 to vector<2x16x128xf32>
    %170 = arith.maximumf %168, %169 : vector<2x16x128xf32>
    %171 = vector.shape_cast %170 : vector<2x16x128xf32> to vector<32x128xf32>
    %c1_74 = arith.constant 1 : index
    %c0_75 = arith.constant 0 : index
    %c0_76 = arith.constant 0 : index
    %172 = vector.load %arg7[%c1_74, %c0_75, %c0_76] : memref<5x128x128xbf16, #tpu.memory_space<vmem>>, vector<1x128x128xbf16>
    %173 = vector.shape_cast %172 : vector<1x128x128xbf16> to vector<128x128xbf16>
    %c1_77 = arith.constant 1 : index
    %c0_78 = arith.constant 0 : index
    %c0_79 = arith.constant 0 : index
    %174 = vector.load %arg8[%c1_77, %c0_78, %c0_79] : memref<5x1x128xf32, #tpu.memory_space<vmem>>, vector<1x1x128xf32>
    %175 = vector.shape_cast %174 : vector<1x1x128xf32> to vector<1x128xf32>
    %176 = arith.truncf %171 : vector<32x128xf32> to vector<32x128xbf16>
    %cst_80 = arith.constant dense<0.000000e+00> : vector<32x128xf32>
    %177 = tpu.matmul %176, %173, %cst_80 {dimension_numbers = #tpu.dot_dimension_numbers<[1], [0], [0], [1], [0, 0, 1, 1], [], []>} : vector<32x128xbf16>, vector<128x128xbf16>, vector<32x128xf32> -> vector<32x128xf32>
    %178 = vector.broadcast %175 : vector<1x128xf32> to vector<32x128xf32>
    %179 = arith.addf %177, %178 : vector<32x128xf32>
    %c1_81 = arith.constant 1 : index
    %c0_82 = arith.constant 0 : index
    %c0_83 = arith.constant 0 : index
    %180 = vector.load %arg9[%c1_81, %c0_82, %c0_83] : memref<5x1x128xf32, #tpu.memory_space<vmem>>, vector<1x1x128xf32>
    %181 = vector.shape_cast %180 : vector<1x1x128xf32> to vector<1x128xf32>
    %c1_84 = arith.constant 1 : index
    %c0_85 = arith.constant 0 : index
    %c0_86 = arith.constant 0 : index
    %182 = vector.load %arg10[%c1_84, %c0_85, %c0_86] : memref<5x1x128xf32, #tpu.memory_space<vmem>>, vector<1x1x128xf32>
    %183 = vector.shape_cast %182 : vector<1x1x128xf32> to vector<1x128xf32>
    %184 = vector.shape_cast %179 : vector<32x128xf32> to vector<2x16x128xf32>
    %cst_87 = arith.constant dense<0.000000e+00> : vector<2x128xf32>
    %185 = vector.multi_reduction <add>, %184, %cst_87 [1] : vector<2x16x128xf32> to vector<2x128xf32>
    %186 = vector.shape_cast %185 : vector<2x128xf32> to vector<2x1x128xf32>
    %cst_88 = arith.constant 1.600000e+01 : f32
    %187 = vector.broadcast %cst_88 : f32 to vector<2x1x128xf32>
    %188 = arith.divf %186, %187 : vector<2x1x128xf32>
    %189 = arith.mulf %184, %184 : vector<2x16x128xf32>
    %cst_89 = arith.constant dense<0.000000e+00> : vector<2x128xf32>
    %190 = vector.multi_reduction <add>, %189, %cst_89 [1] : vector<2x16x128xf32> to vector<2x128xf32>
    %191 = vector.shape_cast %190 : vector<2x128xf32> to vector<2x1x128xf32>
    %cst_90 = arith.constant 1.600000e+01 : f32
    %192 = vector.broadcast %cst_90 : f32 to vector<2x1x128xf32>
    %193 = arith.divf %191, %192 : vector<2x1x128xf32>
    %194 = arith.mulf %188, %188 : vector<2x1x128xf32>
    %195 = arith.subf %193, %194 : vector<2x1x128xf32>
    %cst_91 = arith.constant 0.000000e+00 : f32
    %196 = vector.broadcast %cst_91 : f32 to vector<2x1x128xf32>
    %197 = arith.maximumf %195, %196 : vector<2x1x128xf32>
    %cst_92 = arith.constant 9.99999974E-6 : f32
    %198 = vector.broadcast %cst_92 : f32 to vector<2x1x128xf32>
    %199 = arith.addf %197, %198 : vector<2x1x128xf32>
    %200 = math.rsqrt %199 : vector<2x1x128xf32>
    %201 = arith.mulf %200, %200 : vector<2x1x128xf32>
    %202 = arith.mulf %197, %201 : vector<2x1x128xf32>
    %cst_93 = arith.constant dense<0.000000e+00> : vector<1x128xf32>
    %203 = vector.multi_reduction <add>, %202, %cst_93 [0] : vector<2x1x128xf32> to vector<1x128xf32>
    %204 = vector.shape_cast %203 : vector<1x128xf32> to vector<1x1x128xf32>
    %cst_94 = arith.constant 2.000000e+00 : f32
    %205 = vector.broadcast %cst_94 : f32 to vector<1x1x128xf32>
    %206 = arith.divf %204, %205 : vector<1x1x128xf32>
    %cst_95 = arith.constant 9.99999974E-6 : f32
    %207 = vector.broadcast %cst_95 : f32 to vector<1x1x128xf32>
    %208 = arith.addf %206, %207 : vector<1x1x128xf32>
    %209 = math.rsqrt %208 : vector<1x1x128xf32>
    %210 = vector.broadcast %209 : vector<1x1x128xf32> to vector<2x1x128xf32>
    %211 = arith.mulf %200, %210 : vector<2x1x128xf32>
    %212 = vector.shape_cast %181 : vector<1x128xf32> to vector<1x1x128xf32>
    %213 = vector.broadcast %212 : vector<1x1x128xf32> to vector<2x1x128xf32>
    %214 = arith.mulf %211, %213 : vector<2x1x128xf32>
    %215 = arith.mulf %188, %214 : vector<2x1x128xf32>
    %216 = vector.shape_cast %183 : vector<1x128xf32> to vector<1x1x128xf32>
    %217 = vector.broadcast %216 : vector<1x1x128xf32> to vector<2x1x128xf32>
    %218 = arith.subf %217, %215 : vector<2x1x128xf32>
    %219 = vector.broadcast %214 : vector<2x1x128xf32> to vector<2x16x128xf32>
    %220 = arith.mulf %184, %219 : vector<2x16x128xf32>
    %221 = vector.broadcast %218 : vector<2x1x128xf32> to vector<2x16x128xf32>
    %222 = arith.addf %220, %221 : vector<2x16x128xf32>
    %cst_96 = arith.constant 0.000000e+00 : f32
    %223 = vector.broadcast %cst_96 : f32 to vector<2x16x128xf32>
    %224 = arith.maximumf %222, %223 : vector<2x16x128xf32>
    %225 = vector.shape_cast %224 : vector<2x16x128xf32> to vector<32x128xf32>
    %226 = arith.addf %225, %117 : vector<32x128xf32>
    %c2 = arith.constant 2 : index
    %c0_97 = arith.constant 0 : index
    %c0_98 = arith.constant 0 : index
    %227 = vector.load %arg3[%c2, %c0_97, %c0_98] : memref<5x128x128xbf16, #tpu.memory_space<vmem>>, vector<1x128x128xbf16>
    %228 = vector.shape_cast %227 : vector<1x128x128xbf16> to vector<128x128xbf16>
    %c2_99 = arith.constant 2 : index
    %c0_100 = arith.constant 0 : index
    %c0_101 = arith.constant 0 : index
    %229 = vector.load %arg4[%c2_99, %c0_100, %c0_101] : memref<5x1x128xf32, #tpu.memory_space<vmem>>, vector<1x1x128xf32>
    %230 = vector.shape_cast %229 : vector<1x1x128xf32> to vector<1x128xf32>
    %231 = arith.truncf %226 : vector<32x128xf32> to vector<32x128xbf16>
    %cst_102 = arith.constant dense<0.000000e+00> : vector<32x128xf32>
    %232 = tpu.matmul %231, %228, %cst_102 {dimension_numbers = #tpu.dot_dimension_numbers<[1], [0], [0], [1], [0, 0, 1, 1], [], []>} : vector<32x128xbf16>, vector<128x128xbf16>, vector<32x128xf32> -> vector<32x128xf32>
    %233 = vector.broadcast %230 : vector<1x128xf32> to vector<32x128xf32>
    %234 = arith.addf %232, %233 : vector<32x128xf32>
    %c2_103 = arith.constant 2 : index
    %c0_104 = arith.constant 0 : index
    %c0_105 = arith.constant 0 : index
    %235 = vector.load %arg5[%c2_103, %c0_104, %c0_105] : memref<5x1x128xf32, #tpu.memory_space<vmem>>, vector<1x1x128xf32>
    %236 = vector.shape_cast %235 : vector<1x1x128xf32> to vector<1x128xf32>
    %c2_106 = arith.constant 2 : index
    %c0_107 = arith.constant 0 : index
    %c0_108 = arith.constant 0 : index
    %237 = vector.load %arg6[%c2_106, %c0_107, %c0_108] : memref<5x1x128xf32, #tpu.memory_space<vmem>>, vector<1x1x128xf32>
    %238 = vector.shape_cast %237 : vector<1x1x128xf32> to vector<1x128xf32>
    %239 = vector.shape_cast %234 : vector<32x128xf32> to vector<2x16x128xf32>
    %cst_109 = arith.constant dense<0.000000e+00> : vector<2x128xf32>
    %240 = vector.multi_reduction <add>, %239, %cst_109 [1] : vector<2x16x128xf32> to vector<2x128xf32>
    %241 = vector.shape_cast %240 : vector<2x128xf32> to vector<2x1x128xf32>
    %cst_110 = arith.constant 1.600000e+01 : f32
    %242 = vector.broadcast %cst_110 : f32 to vector<2x1x128xf32>
    %243 = arith.divf %241, %242 : vector<2x1x128xf32>
    %244 = arith.mulf %239, %239 : vector<2x16x128xf32>
    %cst_111 = arith.constant dense<0.000000e+00> : vector<2x128xf32>
    %245 = vector.multi_reduction <add>, %244, %cst_111 [1] : vector<2x16x128xf32> to vector<2x128xf32>
    %246 = vector.shape_cast %245 : vector<2x128xf32> to vector<2x1x128xf32>
    %cst_112 = arith.constant 1.600000e+01 : f32
    %247 = vector.broadcast %cst_112 : f32 to vector<2x1x128xf32>
    %248 = arith.divf %246, %247 : vector<2x1x128xf32>
    %249 = arith.mulf %243, %243 : vector<2x1x128xf32>
    %250 = arith.subf %248, %249 : vector<2x1x128xf32>
    %cst_113 = arith.constant 0.000000e+00 : f32
    %251 = vector.broadcast %cst_113 : f32 to vector<2x1x128xf32>
    %252 = arith.maximumf %250, %251 : vector<2x1x128xf32>
    %cst_114 = arith.constant 9.99999974E-6 : f32
    %253 = vector.broadcast %cst_114 : f32 to vector<2x1x128xf32>
    %254 = arith.addf %252, %253 : vector<2x1x128xf32>
    %255 = math.rsqrt %254 : vector<2x1x128xf32>
    %256 = arith.mulf %255, %255 : vector<2x1x128xf32>
    %257 = arith.mulf %252, %256 : vector<2x1x128xf32>
    %cst_115 = arith.constant dense<0.000000e+00> : vector<1x128xf32>
    %258 = vector.multi_reduction <add>, %257, %cst_115 [0] : vector<2x1x128xf32> to vector<1x128xf32>
    %259 = vector.shape_cast %258 : vector<1x128xf32> to vector<1x1x128xf32>
    %cst_116 = arith.constant 2.000000e+00 : f32
    %260 = vector.broadcast %cst_116 : f32 to vector<1x1x128xf32>
    %261 = arith.divf %259, %260 : vector<1x1x128xf32>
    %cst_117 = arith.constant 9.99999974E-6 : f32
    %262 = vector.broadcast %cst_117 : f32 to vector<1x1x128xf32>
    %263 = arith.addf %261, %262 : vector<1x1x128xf32>
    %264 = math.rsqrt %263 : vector<1x1x128xf32>
    %265 = vector.broadcast %264 : vector<1x1x128xf32> to vector<2x1x128xf32>
    %266 = arith.mulf %255, %265 : vector<2x1x128xf32>
    %267 = vector.shape_cast %236 : vector<1x128xf32> to vector<1x1x128xf32>
    %268 = vector.broadcast %267 : vector<1x1x128xf32> to vector<2x1x128xf32>
    %269 = arith.mulf %266, %268 : vector<2x1x128xf32>
    %270 = arith.mulf %243, %269 : vector<2x1x128xf32>
    %271 = vector.shape_cast %238 : vector<1x128xf32> to vector<1x1x128xf32>
    %272 = vector.broadcast %271 : vector<1x1x128xf32> to vector<2x1x128xf32>
    %273 = arith.subf %272, %270 : vector<2x1x128xf32>
    %274 = vector.broadcast %269 : vector<2x1x128xf32> to vector<2x16x128xf32>
    %275 = arith.mulf %239, %274 : vector<2x16x128xf32>
    %276 = vector.broadcast %273 : vector<2x1x128xf32> to vector<2x16x128xf32>
    %277 = arith.addf %275, %276 : vector<2x16x128xf32>
    %cst_118 = arith.constant 0.000000e+00 : f32
    %278 = vector.broadcast %cst_118 : f32 to vector<2x16x128xf32>
    %279 = arith.maximumf %277, %278 : vector<2x16x128xf32>
    %280 = vector.shape_cast %279 : vector<2x16x128xf32> to vector<32x128xf32>
    %c2_119 = arith.constant 2 : index
    %c0_120 = arith.constant 0 : index
    %c0_121 = arith.constant 0 : index
    %281 = vector.load %arg7[%c2_119, %c0_120, %c0_121] : memref<5x128x128xbf16, #tpu.memory_space<vmem>>, vector<1x128x128xbf16>
    %282 = vector.shape_cast %281 : vector<1x128x128xbf16> to vector<128x128xbf16>
    %c2_122 = arith.constant 2 : index
    %c0_123 = arith.constant 0 : index
    %c0_124 = arith.constant 0 : index
    %283 = vector.load %arg8[%c2_122, %c0_123, %c0_124] : memref<5x1x128xf32, #tpu.memory_space<vmem>>, vector<1x1x128xf32>
    %284 = vector.shape_cast %283 : vector<1x1x128xf32> to vector<1x128xf32>
    %285 = arith.truncf %280 : vector<32x128xf32> to vector<32x128xbf16>
    %cst_125 = arith.constant dense<0.000000e+00> : vector<32x128xf32>
    %286 = tpu.matmul %285, %282, %cst_125 {dimension_numbers = #tpu.dot_dimension_numbers<[1], [0], [0], [1], [0, 0, 1, 1], [], []>} : vector<32x128xbf16>, vector<128x128xbf16>, vector<32x128xf32> -> vector<32x128xf32>
    %287 = vector.broadcast %284 : vector<1x128xf32> to vector<32x128xf32>
    %288 = arith.addf %286, %287 : vector<32x128xf32>
    %c2_126 = arith.constant 2 : index
    %c0_127 = arith.constant 0 : index
    %c0_128 = arith.constant 0 : index
    %289 = vector.load %arg9[%c2_126, %c0_127, %c0_128] : memref<5x1x128xf32, #tpu.memory_space<vmem>>, vector<1x1x128xf32>
    %290 = vector.shape_cast %289 : vector<1x1x128xf32> to vector<1x128xf32>
    %c2_129 = arith.constant 2 : index
    %c0_130 = arith.constant 0 : index
    %c0_131 = arith.constant 0 : index
    %291 = vector.load %arg10[%c2_129, %c0_130, %c0_131] : memref<5x1x128xf32, #tpu.memory_space<vmem>>, vector<1x1x128xf32>
    %292 = vector.shape_cast %291 : vector<1x1x128xf32> to vector<1x128xf32>
    %293 = vector.shape_cast %288 : vector<32x128xf32> to vector<2x16x128xf32>
    %cst_132 = arith.constant dense<0.000000e+00> : vector<2x128xf32>
    %294 = vector.multi_reduction <add>, %293, %cst_132 [1] : vector<2x16x128xf32> to vector<2x128xf32>
    %295 = vector.shape_cast %294 : vector<2x128xf32> to vector<2x1x128xf32>
    %cst_133 = arith.constant 1.600000e+01 : f32
    %296 = vector.broadcast %cst_133 : f32 to vector<2x1x128xf32>
    %297 = arith.divf %295, %296 : vector<2x1x128xf32>
    %298 = arith.mulf %293, %293 : vector<2x16x128xf32>
    %cst_134 = arith.constant dense<0.000000e+00> : vector<2x128xf32>
    %299 = vector.multi_reduction <add>, %298, %cst_134 [1] : vector<2x16x128xf32> to vector<2x128xf32>
    %300 = vector.shape_cast %299 : vector<2x128xf32> to vector<2x1x128xf32>
    %cst_135 = arith.constant 1.600000e+01 : f32
    %301 = vector.broadcast %cst_135 : f32 to vector<2x1x128xf32>
    %302 = arith.divf %300, %301 : vector<2x1x128xf32>
    %303 = arith.mulf %297, %297 : vector<2x1x128xf32>
    %304 = arith.subf %302, %303 : vector<2x1x128xf32>
    %cst_136 = arith.constant 0.000000e+00 : f32
    %305 = vector.broadcast %cst_136 : f32 to vector<2x1x128xf32>
    %306 = arith.maximumf %304, %305 : vector<2x1x128xf32>
    %cst_137 = arith.constant 9.99999974E-6 : f32
    %307 = vector.broadcast %cst_137 : f32 to vector<2x1x128xf32>
    %308 = arith.addf %306, %307 : vector<2x1x128xf32>
    %309 = math.rsqrt %308 : vector<2x1x128xf32>
    %310 = arith.mulf %309, %309 : vector<2x1x128xf32>
    %311 = arith.mulf %306, %310 : vector<2x1x128xf32>
    %cst_138 = arith.constant dense<0.000000e+00> : vector<1x128xf32>
    %312 = vector.multi_reduction <add>, %311, %cst_138 [0] : vector<2x1x128xf32> to vector<1x128xf32>
    %313 = vector.shape_cast %312 : vector<1x128xf32> to vector<1x1x128xf32>
    %cst_139 = arith.constant 2.000000e+00 : f32
    %314 = vector.broadcast %cst_139 : f32 to vector<1x1x128xf32>
    %315 = arith.divf %313, %314 : vector<1x1x128xf32>
    %cst_140 = arith.constant 9.99999974E-6 : f32
    %316 = vector.broadcast %cst_140 : f32 to vector<1x1x128xf32>
    %317 = arith.addf %315, %316 : vector<1x1x128xf32>
    %318 = math.rsqrt %317 : vector<1x1x128xf32>
    %319 = vector.broadcast %318 : vector<1x1x128xf32> to vector<2x1x128xf32>
    %320 = arith.mulf %309, %319 : vector<2x1x128xf32>
    %321 = vector.shape_cast %290 : vector<1x128xf32> to vector<1x1x128xf32>
    %322 = vector.broadcast %321 : vector<1x1x128xf32> to vector<2x1x128xf32>
    %323 = arith.mulf %320, %322 : vector<2x1x128xf32>
    %324 = arith.mulf %297, %323 : vector<2x1x128xf32>
    %325 = vector.shape_cast %292 : vector<1x128xf32> to vector<1x1x128xf32>
    %326 = vector.broadcast %325 : vector<1x1x128xf32> to vector<2x1x128xf32>
    %327 = arith.subf %326, %324 : vector<2x1x128xf32>
    %328 = vector.broadcast %323 : vector<2x1x128xf32> to vector<2x16x128xf32>
    %329 = arith.mulf %293, %328 : vector<2x16x128xf32>
    %330 = vector.broadcast %327 : vector<2x1x128xf32> to vector<2x16x128xf32>
    %331 = arith.addf %329, %330 : vector<2x16x128xf32>
    %cst_141 = arith.constant 0.000000e+00 : f32
    %332 = vector.broadcast %cst_141 : f32 to vector<2x16x128xf32>
    %333 = arith.maximumf %331, %332 : vector<2x16x128xf32>
    %334 = vector.shape_cast %333 : vector<2x16x128xf32> to vector<32x128xf32>
    %335 = arith.addf %334, %226 : vector<32x128xf32>
    %c3 = arith.constant 3 : index
    %c0_142 = arith.constant 0 : index
    %c0_143 = arith.constant 0 : index
    %336 = vector.load %arg3[%c3, %c0_142, %c0_143] : memref<5x128x128xbf16, #tpu.memory_space<vmem>>, vector<1x128x128xbf16>
    %337 = vector.shape_cast %336 : vector<1x128x128xbf16> to vector<128x128xbf16>
    %c3_144 = arith.constant 3 : index
    %c0_145 = arith.constant 0 : index
    %c0_146 = arith.constant 0 : index
    %338 = vector.load %arg4[%c3_144, %c0_145, %c0_146] : memref<5x1x128xf32, #tpu.memory_space<vmem>>, vector<1x1x128xf32>
    %339 = vector.shape_cast %338 : vector<1x1x128xf32> to vector<1x128xf32>
    %340 = arith.truncf %335 : vector<32x128xf32> to vector<32x128xbf16>
    %cst_147 = arith.constant dense<0.000000e+00> : vector<32x128xf32>
    %341 = tpu.matmul %340, %337, %cst_147 {dimension_numbers = #tpu.dot_dimension_numbers<[1], [0], [0], [1], [0, 0, 1, 1], [], []>} : vector<32x128xbf16>, vector<128x128xbf16>, vector<32x128xf32> -> vector<32x128xf32>
    %342 = vector.broadcast %339 : vector<1x128xf32> to vector<32x128xf32>
    %343 = arith.addf %341, %342 : vector<32x128xf32>
    %c3_148 = arith.constant 3 : index
    %c0_149 = arith.constant 0 : index
    %c0_150 = arith.constant 0 : index
    %344 = vector.load %arg5[%c3_148, %c0_149, %c0_150] : memref<5x1x128xf32, #tpu.memory_space<vmem>>, vector<1x1x128xf32>
    %345 = vector.shape_cast %344 : vector<1x1x128xf32> to vector<1x128xf32>
    %c3_151 = arith.constant 3 : index
    %c0_152 = arith.constant 0 : index
    %c0_153 = arith.constant 0 : index
    %346 = vector.load %arg6[%c3_151, %c0_152, %c0_153] : memref<5x1x128xf32, #tpu.memory_space<vmem>>, vector<1x1x128xf32>
    %347 = vector.shape_cast %346 : vector<1x1x128xf32> to vector<1x128xf32>
    %348 = vector.shape_cast %343 : vector<32x128xf32> to vector<2x16x128xf32>
    %cst_154 = arith.constant dense<0.000000e+00> : vector<2x128xf32>
    %349 = vector.multi_reduction <add>, %348, %cst_154 [1] : vector<2x16x128xf32> to vector<2x128xf32>
    %350 = vector.shape_cast %349 : vector<2x128xf32> to vector<2x1x128xf32>
    %cst_155 = arith.constant 1.600000e+01 : f32
    %351 = vector.broadcast %cst_155 : f32 to vector<2x1x128xf32>
    %352 = arith.divf %350, %351 : vector<2x1x128xf32>
    %353 = arith.mulf %348, %348 : vector<2x16x128xf32>
    %cst_156 = arith.constant dense<0.000000e+00> : vector<2x128xf32>
    %354 = vector.multi_reduction <add>, %353, %cst_156 [1] : vector<2x16x128xf32> to vector<2x128xf32>
    %355 = vector.shape_cast %354 : vector<2x128xf32> to vector<2x1x128xf32>
    %cst_157 = arith.constant 1.600000e+01 : f32
    %356 = vector.broadcast %cst_157 : f32 to vector<2x1x128xf32>
    %357 = arith.divf %355, %356 : vector<2x1x128xf32>
    %358 = arith.mulf %352, %352 : vector<2x1x128xf32>
    %359 = arith.subf %357, %358 : vector<2x1x128xf32>
    %cst_158 = arith.constant 0.000000e+00 : f32
    %360 = vector.broadcast %cst_158 : f32 to vector<2x1x128xf32>
    %361 = arith.maximumf %359, %360 : vector<2x1x128xf32>
    %cst_159 = arith.constant 9.99999974E-6 : f32
    %362 = vector.broadcast %cst_159 : f32 to vector<2x1x128xf32>
    %363 = arith.addf %361, %362 : vector<2x1x128xf32>
    %364 = math.rsqrt %363 : vector<2x1x128xf32>
    %365 = arith.mulf %364, %364 : vector<2x1x128xf32>
    %366 = arith.mulf %361, %365 : vector<2x1x128xf32>
    %cst_160 = arith.constant dense<0.000000e+00> : vector<1x128xf32>
    %367 = vector.multi_reduction <add>, %366, %cst_160 [0] : vector<2x1x128xf32> to vector<1x128xf32>
    %368 = vector.shape_cast %367 : vector<1x128xf32> to vector<1x1x128xf32>
    %cst_161 = arith.constant 2.000000e+00 : f32
    %369 = vector.broadcast %cst_161 : f32 to vector<1x1x128xf32>
    %370 = arith.divf %368, %369 : vector<1x1x128xf32>
    %cst_162 = arith.constant 9.99999974E-6 : f32
    %371 = vector.broadcast %cst_162 : f32 to vector<1x1x128xf32>
    %372 = arith.addf %370, %371 : vector<1x1x128xf32>
    %373 = math.rsqrt %372 : vector<1x1x128xf32>
    %374 = vector.broadcast %373 : vector<1x1x128xf32> to vector<2x1x128xf32>
    %375 = arith.mulf %364, %374 : vector<2x1x128xf32>
    %376 = vector.shape_cast %345 : vector<1x128xf32> to vector<1x1x128xf32>
    %377 = vector.broadcast %376 : vector<1x1x128xf32> to vector<2x1x128xf32>
    %378 = arith.mulf %375, %377 : vector<2x1x128xf32>
    %379 = arith.mulf %352, %378 : vector<2x1x128xf32>
    %380 = vector.shape_cast %347 : vector<1x128xf32> to vector<1x1x128xf32>
    %381 = vector.broadcast %380 : vector<1x1x128xf32> to vector<2x1x128xf32>
    %382 = arith.subf %381, %379 : vector<2x1x128xf32>
    %383 = vector.broadcast %378 : vector<2x1x128xf32> to vector<2x16x128xf32>
    %384 = arith.mulf %348, %383 : vector<2x16x128xf32>
    %385 = vector.broadcast %382 : vector<2x1x128xf32> to vector<2x16x128xf32>
    %386 = arith.addf %384, %385 : vector<2x16x128xf32>
    %cst_163 = arith.constant 0.000000e+00 : f32
    %387 = vector.broadcast %cst_163 : f32 to vector<2x16x128xf32>
    %388 = arith.maximumf %386, %387 : vector<2x16x128xf32>
    %389 = vector.shape_cast %388 : vector<2x16x128xf32> to vector<32x128xf32>
    %c3_164 = arith.constant 3 : index
    %c0_165 = arith.constant 0 : index
    %c0_166 = arith.constant 0 : index
    %390 = vector.load %arg7[%c3_164, %c0_165, %c0_166] : memref<5x128x128xbf16, #tpu.memory_space<vmem>>, vector<1x128x128xbf16>
    %391 = vector.shape_cast %390 : vector<1x128x128xbf16> to vector<128x128xbf16>
    %c3_167 = arith.constant 3 : index
    %c0_168 = arith.constant 0 : index
    %c0_169 = arith.constant 0 : index
    %392 = vector.load %arg8[%c3_167, %c0_168, %c0_169] : memref<5x1x128xf32, #tpu.memory_space<vmem>>, vector<1x1x128xf32>
    %393 = vector.shape_cast %392 : vector<1x1x128xf32> to vector<1x128xf32>
    %394 = arith.truncf %389 : vector<32x128xf32> to vector<32x128xbf16>
    %cst_170 = arith.constant dense<0.000000e+00> : vector<32x128xf32>
    %395 = tpu.matmul %394, %391, %cst_170 {dimension_numbers = #tpu.dot_dimension_numbers<[1], [0], [0], [1], [0, 0, 1, 1], [], []>} : vector<32x128xbf16>, vector<128x128xbf16>, vector<32x128xf32> -> vector<32x128xf32>
    %396 = vector.broadcast %393 : vector<1x128xf32> to vector<32x128xf32>
    %397 = arith.addf %395, %396 : vector<32x128xf32>
    %c3_171 = arith.constant 3 : index
    %c0_172 = arith.constant 0 : index
    %c0_173 = arith.constant 0 : index
    %398 = vector.load %arg9[%c3_171, %c0_172, %c0_173] : memref<5x1x128xf32, #tpu.memory_space<vmem>>, vector<1x1x128xf32>
    %399 = vector.shape_cast %398 : vector<1x1x128xf32> to vector<1x128xf32>
    %c3_174 = arith.constant 3 : index
    %c0_175 = arith.constant 0 : index
    %c0_176 = arith.constant 0 : index
    %400 = vector.load %arg10[%c3_174, %c0_175, %c0_176] : memref<5x1x128xf32, #tpu.memory_space<vmem>>, vector<1x1x128xf32>
    %401 = vector.shape_cast %400 : vector<1x1x128xf32> to vector<1x128xf32>
    %402 = vector.shape_cast %397 : vector<32x128xf32> to vector<2x16x128xf32>
    %cst_177 = arith.constant dense<0.000000e+00> : vector<2x128xf32>
    %403 = vector.multi_reduction <add>, %402, %cst_177 [1] : vector<2x16x128xf32> to vector<2x128xf32>
    %404 = vector.shape_cast %403 : vector<2x128xf32> to vector<2x1x128xf32>
    %cst_178 = arith.constant 1.600000e+01 : f32
    %405 = vector.broadcast %cst_178 : f32 to vector<2x1x128xf32>
    %406 = arith.divf %404, %405 : vector<2x1x128xf32>
    %407 = arith.mulf %402, %402 : vector<2x16x128xf32>
    %cst_179 = arith.constant dense<0.000000e+00> : vector<2x128xf32>
    %408 = vector.multi_reduction <add>, %407, %cst_179 [1] : vector<2x16x128xf32> to vector<2x128xf32>
    %409 = vector.shape_cast %408 : vector<2x128xf32> to vector<2x1x128xf32>
    %cst_180 = arith.constant 1.600000e+01 : f32
    %410 = vector.broadcast %cst_180 : f32 to vector<2x1x128xf32>
    %411 = arith.divf %409, %410 : vector<2x1x128xf32>
    %412 = arith.mulf %406, %406 : vector<2x1x128xf32>
    %413 = arith.subf %411, %412 : vector<2x1x128xf32>
    %cst_181 = arith.constant 0.000000e+00 : f32
    %414 = vector.broadcast %cst_181 : f32 to vector<2x1x128xf32>
    %415 = arith.maximumf %413, %414 : vector<2x1x128xf32>
    %cst_182 = arith.constant 9.99999974E-6 : f32
    %416 = vector.broadcast %cst_182 : f32 to vector<2x1x128xf32>
    %417 = arith.addf %415, %416 : vector<2x1x128xf32>
    %418 = math.rsqrt %417 : vector<2x1x128xf32>
    %419 = arith.mulf %418, %418 : vector<2x1x128xf32>
    %420 = arith.mulf %415, %419 : vector<2x1x128xf32>
    %cst_183 = arith.constant dense<0.000000e+00> : vector<1x128xf32>
    %421 = vector.multi_reduction <add>, %420, %cst_183 [0] : vector<2x1x128xf32> to vector<1x128xf32>
    %422 = vector.shape_cast %421 : vector<1x128xf32> to vector<1x1x128xf32>
    %cst_184 = arith.constant 2.000000e+00 : f32
    %423 = vector.broadcast %cst_184 : f32 to vector<1x1x128xf32>
    %424 = arith.divf %422, %423 : vector<1x1x128xf32>
    %cst_185 = arith.constant 9.99999974E-6 : f32
    %425 = vector.broadcast %cst_185 : f32 to vector<1x1x128xf32>
    %426 = arith.addf %424, %425 : vector<1x1x128xf32>
    %427 = math.rsqrt %426 : vector<1x1x128xf32>
    %428 = vector.broadcast %427 : vector<1x1x128xf32> to vector<2x1x128xf32>
    %429 = arith.mulf %418, %428 : vector<2x1x128xf32>
    %430 = vector.shape_cast %399 : vector<1x128xf32> to vector<1x1x128xf32>
    %431 = vector.broadcast %430 : vector<1x1x128xf32> to vector<2x1x128xf32>
    %432 = arith.mulf %429, %431 : vector<2x1x128xf32>
    %433 = arith.mulf %406, %432 : vector<2x1x128xf32>
    %434 = vector.shape_cast %401 : vector<1x128xf32> to vector<1x1x128xf32>
    %435 = vector.broadcast %434 : vector<1x1x128xf32> to vector<2x1x128xf32>
    %436 = arith.subf %435, %433 : vector<2x1x128xf32>
    %437 = vector.broadcast %432 : vector<2x1x128xf32> to vector<2x16x128xf32>
    %438 = arith.mulf %402, %437 : vector<2x16x128xf32>
    %439 = vector.broadcast %436 : vector<2x1x128xf32> to vector<2x16x128xf32>
    %440 = arith.addf %438, %439 : vector<2x16x128xf32>
    %cst_186 = arith.constant 0.000000e+00 : f32
    %441 = vector.broadcast %cst_186 : f32 to vector<2x16x128xf32>
    %442 = arith.maximumf %440, %441 : vector<2x16x128xf32>
    %443 = vector.shape_cast %442 : vector<2x16x128xf32> to vector<32x128xf32>
    %444 = arith.addf %443, %335 : vector<32x128xf32>
    %c4 = arith.constant 4 : index
    %c0_187 = arith.constant 0 : index
    %c0_188 = arith.constant 0 : index
    %445 = vector.load %arg3[%c4, %c0_187, %c0_188] : memref<5x128x128xbf16, #tpu.memory_space<vmem>>, vector<1x128x128xbf16>
    %446 = vector.shape_cast %445 : vector<1x128x128xbf16> to vector<128x128xbf16>
    %c4_189 = arith.constant 4 : index
    %c0_190 = arith.constant 0 : index
    %c0_191 = arith.constant 0 : index
    %447 = vector.load %arg4[%c4_189, %c0_190, %c0_191] : memref<5x1x128xf32, #tpu.memory_space<vmem>>, vector<1x1x128xf32>
    %448 = vector.shape_cast %447 : vector<1x1x128xf32> to vector<1x128xf32>
    %449 = arith.truncf %444 : vector<32x128xf32> to vector<32x128xbf16>
    %cst_192 = arith.constant dense<0.000000e+00> : vector<32x128xf32>
    %450 = tpu.matmul %449, %446, %cst_192 {dimension_numbers = #tpu.dot_dimension_numbers<[1], [0], [0], [1], [0, 0, 1, 1], [], []>} : vector<32x128xbf16>, vector<128x128xbf16>, vector<32x128xf32> -> vector<32x128xf32>
    %451 = vector.broadcast %448 : vector<1x128xf32> to vector<32x128xf32>
    %452 = arith.addf %450, %451 : vector<32x128xf32>
    %c4_193 = arith.constant 4 : index
    %c0_194 = arith.constant 0 : index
    %c0_195 = arith.constant 0 : index
    %453 = vector.load %arg5[%c4_193, %c0_194, %c0_195] : memref<5x1x128xf32, #tpu.memory_space<vmem>>, vector<1x1x128xf32>
    %454 = vector.shape_cast %453 : vector<1x1x128xf32> to vector<1x128xf32>
    %c4_196 = arith.constant 4 : index
    %c0_197 = arith.constant 0 : index
    %c0_198 = arith.constant 0 : index
    %455 = vector.load %arg6[%c4_196, %c0_197, %c0_198] : memref<5x1x128xf32, #tpu.memory_space<vmem>>, vector<1x1x128xf32>
    %456 = vector.shape_cast %455 : vector<1x1x128xf32> to vector<1x128xf32>
    %457 = vector.shape_cast %452 : vector<32x128xf32> to vector<2x16x128xf32>
    %cst_199 = arith.constant dense<0.000000e+00> : vector<2x128xf32>
    %458 = vector.multi_reduction <add>, %457, %cst_199 [1] : vector<2x16x128xf32> to vector<2x128xf32>
    %459 = vector.shape_cast %458 : vector<2x128xf32> to vector<2x1x128xf32>
    %cst_200 = arith.constant 1.600000e+01 : f32
    %460 = vector.broadcast %cst_200 : f32 to vector<2x1x128xf32>
    %461 = arith.divf %459, %460 : vector<2x1x128xf32>
    %462 = arith.mulf %457, %457 : vector<2x16x128xf32>
    %cst_201 = arith.constant dense<0.000000e+00> : vector<2x128xf32>
    %463 = vector.multi_reduction <add>, %462, %cst_201 [1] : vector<2x16x128xf32> to vector<2x128xf32>
    %464 = vector.shape_cast %463 : vector<2x128xf32> to vector<2x1x128xf32>
    %cst_202 = arith.constant 1.600000e+01 : f32
    %465 = vector.broadcast %cst_202 : f32 to vector<2x1x128xf32>
    %466 = arith.divf %464, %465 : vector<2x1x128xf32>
    %467 = arith.mulf %461, %461 : vector<2x1x128xf32>
    %468 = arith.subf %466, %467 : vector<2x1x128xf32>
    %cst_203 = arith.constant 0.000000e+00 : f32
    %469 = vector.broadcast %cst_203 : f32 to vector<2x1x128xf32>
    %470 = arith.maximumf %468, %469 : vector<2x1x128xf32>
    %cst_204 = arith.constant 9.99999974E-6 : f32
    %471 = vector.broadcast %cst_204 : f32 to vector<2x1x128xf32>
    %472 = arith.addf %470, %471 : vector<2x1x128xf32>
    %473 = math.rsqrt %472 : vector<2x1x128xf32>
    %474 = arith.mulf %473, %473 : vector<2x1x128xf32>
    %475 = arith.mulf %470, %474 : vector<2x1x128xf32>
    %cst_205 = arith.constant dense<0.000000e+00> : vector<1x128xf32>
    %476 = vector.multi_reduction <add>, %475, %cst_205 [0] : vector<2x1x128xf32> to vector<1x128xf32>
    %477 = vector.shape_cast %476 : vector<1x128xf32> to vector<1x1x128xf32>
    %cst_206 = arith.constant 2.000000e+00 : f32
    %478 = vector.broadcast %cst_206 : f32 to vector<1x1x128xf32>
    %479 = arith.divf %477, %478 : vector<1x1x128xf32>
    %cst_207 = arith.constant 9.99999974E-6 : f32
    %480 = vector.broadcast %cst_207 : f32 to vector<1x1x128xf32>
    %481 = arith.addf %479, %480 : vector<1x1x128xf32>
    %482 = math.rsqrt %481 : vector<1x1x128xf32>
    %483 = vector.broadcast %482 : vector<1x1x128xf32> to vector<2x1x128xf32>
    %484 = arith.mulf %473, %483 : vector<2x1x128xf32>
    %485 = vector.shape_cast %454 : vector<1x128xf32> to vector<1x1x128xf32>
    %486 = vector.broadcast %485 : vector<1x1x128xf32> to vector<2x1x128xf32>
    %487 = arith.mulf %484, %486 : vector<2x1x128xf32>
    %488 = arith.mulf %461, %487 : vector<2x1x128xf32>
    %489 = vector.shape_cast %456 : vector<1x128xf32> to vector<1x1x128xf32>
    %490 = vector.broadcast %489 : vector<1x1x128xf32> to vector<2x1x128xf32>
    %491 = arith.subf %490, %488 : vector<2x1x128xf32>
    %492 = vector.broadcast %487 : vector<2x1x128xf32> to vector<2x16x128xf32>
    %493 = arith.mulf %457, %492 : vector<2x16x128xf32>
    %494 = vector.broadcast %491 : vector<2x1x128xf32> to vector<2x16x128xf32>
    %495 = arith.addf %493, %494 : vector<2x16x128xf32>
    %cst_208 = arith.constant 0.000000e+00 : f32
    %496 = vector.broadcast %cst_208 : f32 to vector<2x16x128xf32>
    %497 = arith.maximumf %495, %496 : vector<2x16x128xf32>
    %498 = vector.shape_cast %497 : vector<2x16x128xf32> to vector<32x128xf32>
    %c4_209 = arith.constant 4 : index
    %c0_210 = arith.constant 0 : index
    %c0_211 = arith.constant 0 : index
    %499 = vector.load %arg7[%c4_209, %c0_210, %c0_211] : memref<5x128x128xbf16, #tpu.memory_space<vmem>>, vector<1x128x128xbf16>
    %500 = vector.shape_cast %499 : vector<1x128x128xbf16> to vector<128x128xbf16>
    %c4_212 = arith.constant 4 : index
    %c0_213 = arith.constant 0 : index
    %c0_214 = arith.constant 0 : index
    %501 = vector.load %arg8[%c4_212, %c0_213, %c0_214] : memref<5x1x128xf32, #tpu.memory_space<vmem>>, vector<1x1x128xf32>
    %502 = vector.shape_cast %501 : vector<1x1x128xf32> to vector<1x128xf32>
    %503 = arith.truncf %498 : vector<32x128xf32> to vector<32x128xbf16>
    %cst_215 = arith.constant dense<0.000000e+00> : vector<32x128xf32>
    %504 = tpu.matmul %503, %500, %cst_215 {dimension_numbers = #tpu.dot_dimension_numbers<[1], [0], [0], [1], [0, 0, 1, 1], [], []>} : vector<32x128xbf16>, vector<128x128xbf16>, vector<32x128xf32> -> vector<32x128xf32>
    %505 = vector.broadcast %502 : vector<1x128xf32> to vector<32x128xf32>
    %506 = arith.addf %504, %505 : vector<32x128xf32>
    %c4_216 = arith.constant 4 : index
    %c0_217 = arith.constant 0 : index
    %c0_218 = arith.constant 0 : index
    %507 = vector.load %arg9[%c4_216, %c0_217, %c0_218] : memref<5x1x128xf32, #tpu.memory_space<vmem>>, vector<1x1x128xf32>
    %508 = vector.shape_cast %507 : vector<1x1x128xf32> to vector<1x128xf32>
    %c4_219 = arith.constant 4 : index
    %c0_220 = arith.constant 0 : index
    %c0_221 = arith.constant 0 : index
    %509 = vector.load %arg10[%c4_219, %c0_220, %c0_221] : memref<5x1x128xf32, #tpu.memory_space<vmem>>, vector<1x1x128xf32>
    %510 = vector.shape_cast %509 : vector<1x1x128xf32> to vector<1x128xf32>
    %511 = vector.shape_cast %506 : vector<32x128xf32> to vector<2x16x128xf32>
    %cst_222 = arith.constant dense<0.000000e+00> : vector<2x128xf32>
    %512 = vector.multi_reduction <add>, %511, %cst_222 [1] : vector<2x16x128xf32> to vector<2x128xf32>
    %513 = vector.shape_cast %512 : vector<2x128xf32> to vector<2x1x128xf32>
    %cst_223 = arith.constant 1.600000e+01 : f32
    %514 = vector.broadcast %cst_223 : f32 to vector<2x1x128xf32>
    %515 = arith.divf %513, %514 : vector<2x1x128xf32>
    %516 = arith.mulf %511, %511 : vector<2x16x128xf32>
    %cst_224 = arith.constant dense<0.000000e+00> : vector<2x128xf32>
    %517 = vector.multi_reduction <add>, %516, %cst_224 [1] : vector<2x16x128xf32> to vector<2x128xf32>
    %518 = vector.shape_cast %517 : vector<2x128xf32> to vector<2x1x128xf32>
    %cst_225 = arith.constant 1.600000e+01 : f32
    %519 = vector.broadcast %cst_225 : f32 to vector<2x1x128xf32>
    %520 = arith.divf %518, %519 : vector<2x1x128xf32>
    %521 = arith.mulf %515, %515 : vector<2x1x128xf32>
    %522 = arith.subf %520, %521 : vector<2x1x128xf32>
    %cst_226 = arith.constant 0.000000e+00 : f32
    %523 = vector.broadcast %cst_226 : f32 to vector<2x1x128xf32>
    %524 = arith.maximumf %522, %523 : vector<2x1x128xf32>
    %cst_227 = arith.constant 9.99999974E-6 : f32
    %525 = vector.broadcast %cst_227 : f32 to vector<2x1x128xf32>
    %526 = arith.addf %524, %525 : vector<2x1x128xf32>
    %527 = math.rsqrt %526 : vector<2x1x128xf32>
    %528 = arith.mulf %527, %527 : vector<2x1x128xf32>
    %529 = arith.mulf %524, %528 : vector<2x1x128xf32>
    %cst_228 = arith.constant dense<0.000000e+00> : vector<1x128xf32>
    %530 = vector.multi_reduction <add>, %529, %cst_228 [0] : vector<2x1x128xf32> to vector<1x128xf32>
    %531 = vector.shape_cast %530 : vector<1x128xf32> to vector<1x1x128xf32>
    %cst_229 = arith.constant 2.000000e+00 : f32
    %532 = vector.broadcast %cst_229 : f32 to vector<1x1x128xf32>
    %533 = arith.divf %531, %532 : vector<1x1x128xf32>
    %cst_230 = arith.constant 9.99999974E-6 : f32
    %534 = vector.broadcast %cst_230 : f32 to vector<1x1x128xf32>
    %535 = arith.addf %533, %534 : vector<1x1x128xf32>
    %536 = math.rsqrt %535 : vector<1x1x128xf32>
    %537 = vector.broadcast %536 : vector<1x1x128xf32> to vector<2x1x128xf32>
    %538 = arith.mulf %527, %537 : vector<2x1x128xf32>
    %539 = vector.shape_cast %508 : vector<1x128xf32> to vector<1x1x128xf32>
    %540 = vector.broadcast %539 : vector<1x1x128xf32> to vector<2x1x128xf32>
    %541 = arith.mulf %538, %540 : vector<2x1x128xf32>
    %542 = arith.mulf %515, %541 : vector<2x1x128xf32>
    %543 = vector.shape_cast %510 : vector<1x128xf32> to vector<1x1x128xf32>
    %544 = vector.broadcast %543 : vector<1x1x128xf32> to vector<2x1x128xf32>
    %545 = arith.subf %544, %542 : vector<2x1x128xf32>
    %546 = vector.broadcast %541 : vector<2x1x128xf32> to vector<2x16x128xf32>
    %547 = arith.mulf %511, %546 : vector<2x16x128xf32>
    %548 = vector.broadcast %545 : vector<2x1x128xf32> to vector<2x16x128xf32>
    %549 = arith.addf %547, %548 : vector<2x16x128xf32>
    %cst_231 = arith.constant 0.000000e+00 : f32
    %550 = vector.broadcast %cst_231 : f32 to vector<2x16x128xf32>
    %551 = arith.maximumf %549, %550 : vector<2x16x128xf32>
    %552 = vector.shape_cast %551 : vector<2x16x128xf32> to vector<32x128xf32>
    %553 = arith.addf %552, %444 : vector<32x128xf32>
    %c0_232 = arith.constant 0 : index
    %c0_233 = arith.constant 0 : index
    %554 = vector.load %arg11[%c0_232, %c0_233] : memref<128x8xbf16, #tpu.memory_space<vmem>>, vector<128x8xbf16>
    %c0_234 = arith.constant 0 : index
    %c0_235 = arith.constant 0 : index
    %555 = vector.load %arg12[%c0_234, %c0_235] : memref<1x8xf32, #tpu.memory_space<vmem>>, vector<1x8xf32>
    %556 = arith.truncf %553 : vector<32x128xf32> to vector<32x128xbf16>
    %cst_236 = arith.constant dense<0.000000e+00> : vector<32x8xf32>
    %557 = tpu.matmul %556, %554, %cst_236 {dimension_numbers = #tpu.dot_dimension_numbers<[1], [0], [0], [1], [0, 0, 1, 1], [], []>} : vector<32x128xbf16>, vector<128x8xbf16>, vector<32x8xf32> -> vector<32x8xf32>
    %558 = vector.broadcast %555 : vector<1x8xf32> to vector<32x8xf32>
    %559 = arith.addf %557, %558 : vector<32x8xf32>
    %cst_237 = arith.constant 0.000000e+00 : f32
    %560 = vector.broadcast %cst_237 : f32 to vector<32x8xf32>
    %561 = arith.minimumf %559, %560 : vector<32x8xf32>
    %562 = math.absf %559 : vector<32x8xf32>
    %cst_238 = arith.constant 0.000000e+00 : f32
    %563 = vector.broadcast %cst_238 : f32 to vector<32x8xf32>
    %564 = arith.subf %563, %562 : vector<32x8xf32>
    %565 = math.exp %564 : vector<32x8xf32>
    %566 = math.log1p %565 : vector<32x8xf32>
    %567 = arith.subf %561, %566 : vector<32x8xf32>
    %568 = vector.shape_cast %567 : vector<32x8xf32> to vector<2x16x8xf32>
    %cst_239 = arith.constant dense<0xFF800000> : vector<2x16xf32>
    %569 = vector.multi_reduction <maximumf>, %568, %cst_239 [2] : vector<2x16x8xf32> to vector<2x16xf32>
    %570 = vector.shape_cast %569 : vector<2x16xf32> to vector<2x16x1xf32>
    %571 = vector.broadcast %570 : vector<2x16x1xf32> to vector<2x16x8xf32>
    %572 = arith.subf %568, %571 : vector<2x16x8xf32>
    %573 = math.exp %572 : vector<2x16x8xf32>
    %cst_240 = arith.constant dense<0.000000e+00> : vector<2x16xf32>
    %574 = vector.multi_reduction <add>, %573, %cst_240 [2] : vector<2x16x8xf32> to vector<2x16xf32>
    %575 = vector.shape_cast %574 : vector<2x16xf32> to vector<2x16x1xf32>
    %576 = math.log %575 : vector<2x16x1xf32>
    %577 = arith.addf %570, %576 : vector<2x16x1xf32>
    %578 = vector.broadcast %577 : vector<2x16x1xf32> to vector<2x16x8xf32>
    %579 = arith.subf %568, %578 : vector<2x16x8xf32>
    %c0_241 = arith.constant 0 : index
    %c0_242 = arith.constant 0 : index
    %c0_243 = arith.constant 0 : index
    %580 = vector.load %arg15[%c0_241, %c0_242, %c0_243] : memref<2x16x8xf32, #tpu.memory_space<vmem>>, vector<2x16x8xf32>
    tpu.vector_store %arg15[%c0_241, %c0_242, %c0_243], %579 {strides = array<i32>} : memref<2x16x8xf32, #tpu.memory_space<vmem>>, vector<2x16x8xf32>,
    %c0_244 = arith.constant 0 : index
    %c0_245 = arith.constant 0 : index
    %581 = vector.load %arg13[%c0_244, %c0_245] : memref<128x8xbf16, #tpu.memory_space<vmem>>, vector<128x8xbf16>
    %c0_246 = arith.constant 0 : index
    %c0_247 = arith.constant 0 : index
    %582 = vector.load %arg14[%c0_246, %c0_247] : memref<1x8xf32, #tpu.memory_space<vmem>>, vector<1x8xf32>
    %583 = arith.truncf %553 : vector<32x128xf32> to vector<32x128xbf16>
    %cst_248 = arith.constant dense<0.000000e+00> : vector<32x8xf32>
    %584 = tpu.matmul %583, %581, %cst_248 {dimension_numbers = #tpu.dot_dimension_numbers<[1], [0], [0], [1], [0, 0, 1, 1], [], []>} : vector<32x128xbf16>, vector<128x8xbf16>, vector<32x8xf32> -> vector<32x8xf32>
    %585 = vector.broadcast %582 : vector<1x8xf32> to vector<32x8xf32>
    %586 = arith.addf %584, %585 : vector<32x8xf32>
    %cst_249 = arith.constant 0.000000e+00 : f32
    %587 = vector.broadcast %cst_249 : f32 to vector<32x8xf32>
    %588 = arith.minimumf %586, %587 : vector<32x8xf32>
    %589 = math.absf %586 : vector<32x8xf32>
    %cst_250 = arith.constant 0.000000e+00 : f32
    %590 = vector.broadcast %cst_250 : f32 to vector<32x8xf32>
    %591 = arith.subf %590, %589 : vector<32x8xf32>
    %592 = math.exp %591 : vector<32x8xf32>
    %593 = math.log1p %592 : vector<32x8xf32>
    %594 = arith.subf %588, %593 : vector<32x8xf32>
    %595 = vector.shape_cast %594 : vector<32x8xf32> to vector<2x16x8xf32>
    %cst_251 = arith.constant dense<0xFF800000> : vector<2x8xf32>
    %596 = vector.multi_reduction <maximumf>, %595, %cst_251 [1] : vector<2x16x8xf32> to vector<2x8xf32>
    %597 = vector.shape_cast %596 : vector<2x8xf32> to vector<2x1x8xf32>
    %598 = vector.broadcast %597 : vector<2x1x8xf32> to vector<2x16x8xf32>
    %599 = arith.subf %595, %598 : vector<2x16x8xf32>
    %600 = math.exp %599 : vector<2x16x8xf32>
    %cst_252 = arith.constant dense<0.000000e+00> : vector<2x8xf32>
    %601 = vector.multi_reduction <add>, %600, %cst_252 [1] : vector<2x16x8xf32> to vector<2x8xf32>
    %602 = vector.shape_cast %601 : vector<2x8xf32> to vector<2x1x8xf32>
    %603 = math.log %602 : vector<2x1x8xf32>
    %604 = arith.addf %597, %603 : vector<2x1x8xf32>
    %605 = vector.broadcast %604 : vector<2x1x8xf32> to vector<2x16x8xf32>
    %606 = arith.subf %595, %605 : vector<2x16x8xf32>
    %c0_253 = arith.constant 0 : index
    %c0_254 = arith.constant 0 : index
    %c0_255 = arith.constant 0 : index
    %607 = vector.load %arg16[%c0_253, %c0_254, %c0_255] : memref<2x16x8xf32, #tpu.memory_space<vmem>>, vector<2x16x8xf32>
    tpu.vector_store %arg16[%c0_253, %c0_254, %c0_255], %606 {strides = array<i32>} : memref<2x16x8xf32, #tpu.memory_space<vmem>>, vector<2x16x8xf32>,
    return
  }
}

</mosaic_0001>

<llo_original>
// kernel: tpu_custom_call.1
$region0: #{tpu_custom_call.1}
  #allocation0 [shape = 'u32[]', space=smem, size = 0x4, offset = 0x4, fixed_abs, tag = 'smem constant byte address 0x4 - core index']
  #allocation1 [shape = 'u32[144,128]{1,0:T(1,128)}', space=vmem, size = 0x12000, scoped, tag = 'internal scratch']
  %s0 = inlined_call_operand.vmem [shape: f32[32,4], index: 0, kind: input, shape index: {}]
  %s1 = inlined_call_operand.vmem [shape: bf16[4,128], index: 1, kind: input, shape index: {}]
  %s2 = inlined_call_operand.vmem [shape: f32[1,128], index: 2, kind: input, shape index: {}]
  %s3 = inlined_call_operand.hbm [shape: bf16[5,128,128], index: 3, kind: input, shape index: {}]
  %s4 = inlined_call_operand.vmem [shape: f32[5,1,128], index: 4, kind: input, shape index: {}]
  %s5 = inlined_call_operand.vmem [shape: f32[5,1,128], index: 5, kind: input, shape index: {}]
  %s6 = inlined_call_operand.vmem [shape: f32[5,1,128], index: 6, kind: input, shape index: {}]
  %s7 = inlined_call_operand.hbm [shape: bf16[5,128,128], index: 7, kind: input, shape index: {}]
  %s8 = inlined_call_operand.vmem [shape: f32[5,1,128], index: 8, kind: input, shape index: {}]
  %s9 = inlined_call_operand.vmem [shape: f32[5,1,128], index: 9, kind: input, shape index: {}]
  %s10 = inlined_call_operand.vmem [shape: f32[5,1,128], index: 10, kind: input, shape index: {}]
  %s11 = inlined_call_operand.vmem [shape: bf16[128,8], index: 11, kind: input, shape index: {}]
  %s12 = inlined_call_operand.vmem [shape: f32[1,8], index: 12, kind: input, shape index: {}]
  %s13 = inlined_call_operand.vmem [shape: bf16[128,8], index: 13, kind: input, shape index: {}]
  %s14 = inlined_call_operand.vmem [shape: f32[1,8], index: 14, kind: input, shape index: {}]
  %s15 = inlined_call_operand.vmem [shape: f32[2,16,8], index: 15, kind: output, shape index: {0}]
  %s16 = inlined_call_operand.vmem [shape: f32[2,16,8], index: 16, kind: output, shape index: {1}]
  %17 = xla_tuple %s15, %s16
  %s18 = sld [smem:[#allocation0]]
  $region86: #{tpu_custom_call.1} parent=0
    _
  %s20 = ssub.s32 1, %s18
  %s21 = scalar_select 0, %s20, %s18
  $region1: #{tpu_custom_call.1} parent=0
    #allocation2 [shape = 'u8[163840]{0}', space=vmem, size = 0x28000, scoped, tag = 'input window, operand 3, single buffered']
    #allocation3 [shape = 's32[1]{0}', space=sflag, size = 0x4, scoped, tag = 'scoped memory for tpu_custom_call.1']
    #allocation4 [shape = 'u8[163840]{0}', space=vmem, size = 0x28000, scoped, tag = 'input window, operand 7, single buffered']
    #allocation5 [shape = 's32[1]{0}', space=sflag, size = 0x4, scoped, tag = 'scoped memory for tpu_custom_call.1']
    %22 = vsyncpa [#allocation3], 0
    %23 = vsyncpa [#allocation5], 0
    // Predicated region
    $region2: #{tpu_custom_call.1} parent=1 // pred_check
      _
    $region3: #{tpu_custom_call.1} parent=1 // pred_check_branch
      %25 = sbr.rel (0) target = $region5
    $region4: #{tpu_custom_call.1} parent=1 // pred_region
      _
    $region5: #{tpu_custom_call.1} parent=1 // pred_fallthru
      _
    // Predicated region
    $region6: #{tpu_custom_call.1} parent=1 // pred_check
      _
    $region7: #{tpu_custom_call.1} parent=1 // pred_check_branch
      %27 = sbr.rel (0) target = $region9
    $region8: #{tpu_custom_call.1} parent=1 // pred_region
      _
    $region9: #{tpu_custom_call.1} parent=1 // pred_fallthru
      _
    // Predicated region
    $region10: #{tpu_custom_call.1} parent=1 // pred_check
      _
    $region11: #{tpu_custom_call.1} parent=1 // pred_check_branch
      %29 = sbr.rel (0) target = $region13
    $region12: #{tpu_custom_call.1} parent=1 // pred_region
      _
    $region13: #{tpu_custom_call.1} parent=1 // pred_fallthru
      _
    // Predicated region
    $region14: #{tpu_custom_call.1} parent=1 // pred_check
      _
    $region15: #{tpu_custom_call.1} parent=1 // pred_check_branch
      %31 = sbr.rel (0) target = $region17
    $region16: #{tpu_custom_call.1} parent=1 // pred_region
      %s33 = ssub.s32 5120, 5120
      %34 = vsyncadd [#allocation3], %s33
      %s35 = sshll.u32 [#allocation2], 4
      %s36 = int_to_ptr.vmem [resolvable:$true] %s35
      %41 = dma.hbm_to_vmem [thread:$0]  %s3, 5120, %s36, [#allocation3], 64, 64, 4
    $region17: #{tpu_custom_call.1} parent=1 // pred_fallthru
      _
    // Predicated region
    $region18: #{tpu_custom_call.1} parent=1 // pred_check
      _
    $region19: #{tpu_custom_call.1} parent=1 // pred_check_branch
      %43 = sbr.rel (0) target = $region21
    $region20: #{tpu_custom_call.1} parent=1 // pred_region
      _
    $region21: #{tpu_custom_call.1} parent=1 // pred_fallthru
      _
    // Predicated region
    $region22: #{tpu_custom_call.1} parent=1 // pred_check
      _
    $region23: #{tpu_custom_call.1} parent=1 // pred_check_branch
      %45 = sbr.rel (0) target = $region25
    $region24: #{tpu_custom_call.1} parent=1 // pred_region
      _
    $region25: #{tpu_custom_call.1} parent=1 // pred_fallthru
      _
    // Predicated region
    $region26: #{tpu_custom_call.1} parent=1 // pred_check
      _
    $region27: #{tpu_custom_call.1} parent=1 // pred_check_branch
      %47 = sbr.rel (0) target = $region29
    $region28: #{tpu_custom_call.1} parent=1 // pred_region
      _
    $region29: #{tpu_custom_call.1} parent=1 // pred_fallthru
      _
    // Predicated region
    $region30: #{tpu_custom_call.1} parent=1 // pred_check
      _
    $region31: #{tpu_custom_call.1} parent=1 // pred_check_branch
      %49 = sbr.rel (0) target = $region33
    $region32: #{tpu_custom_call.1} parent=1 // pred_region
      %s51 = ssub.s32 5120, 5120
      %52 = vsyncadd [#allocation5], %s51
      %s53 = sshll.u32 [#allocation4], 4
      %s54 = int_to_ptr.vmem [resolvable:$true] %s53
      %59 = dma.hbm_to_vmem [thread:$0]  %s7, 5120, %s54, [#allocation5], 64, 64, 4
    $region33: #{tpu_custom_call.1} parent=1 // pred_fallthru
      _
    // Predicated region
    $region34: #{tpu_custom_call.1} parent=1 // pred_check
      _
    $region35: #{tpu_custom_call.1} parent=1 // pred_check_branch
      %61 = sbr.rel (0) target = $region37
    $region36: #{tpu_custom_call.1} parent=1 // pred_region
      _
    $region37: #{tpu_custom_call.1} parent=1 // pred_fallthru
      _
    // Predicated region
    $region38: #{tpu_custom_call.1} parent=1 // pred_check
      _
    $region39: #{tpu_custom_call.1} parent=1 // pred_check_branch
      %63 = sbr.rel (0) target = $region41
    $region40: #{tpu_custom_call.1} parent=1 // pred_region
      _
    $region41: #{tpu_custom_call.1} parent=1 // pred_fallthru
      _
    // Predicated region
    $region42: #{tpu_custom_call.1} parent=1 // pred_check
      _
    $region43: #{tpu_custom_call.1} parent=1 // pred_check_branch
      %65 = sbr.rel (0) target = $region45
    $region44: #{tpu_custom_call.1} parent=1 // pred_region
      _
    $region45: #{tpu_custom_call.1} parent=1 // pred_fallthru
      _
    // Predicated region
    $region46: #{tpu_custom_call.1} parent=1 // pred_check
      _
    $region47: #{tpu_custom_call.1} parent=1 // pred_check_branch
      %67 = sbr.rel (0) target = $region49
    $region48: #{tpu_custom_call.1} parent=1 // pred_region
      _
    $region49: #{tpu_custom_call.1} parent=1 // pred_fallthru
      _
    // Predicated region
    $region50: #{tpu_custom_call.1} parent=1 // pred_check
      _
    $region51: #{tpu_custom_call.1} parent=1 // pred_check_branch
      %69 = sbr.rel (0) target = $region53
    $region52: #{tpu_custom_call.1} parent=1 // pred_region
      _
    $region53: #{tpu_custom_call.1} parent=1 // pred_fallthru
      _
    // Predicated region
    $region54: #{tpu_custom_call.1} parent=1 // pred_check
      _
    $region55: #{tpu_custom_call.1} parent=1 // pred_check_branch
      %71 = sbr.rel (0) target = $region57
    $region56: #{tpu_custom_call.1} parent=1 // pred_region
      _
    $region57: #{tpu_custom_call.1} parent=1 // pred_fallthru
      _
    // Predicated region
    $region58: #{tpu_custom_call.1} parent=1 // pred_check
      _
    $region59: #{tpu_custom_call.1} parent=1 // pred_check_branch
      %73 = sbr.rel (0) target = $region61
    $region60: #{tpu_custom_call.1} parent=1 // pred_region
      _
    $region61: #{tpu_custom_call.1} parent=1 // pred_fallthru
      _
    // Predicated region
    $region62: #{tpu_custom_call.1} parent=1 // pred_check
      _
    $region63: #{tpu_custom_call.1} parent=1 // pred_check_branch
      %75 = sbr.rel (0) target = $region65
    $region64: #{tpu_custom_call.1} parent=1 // pred_region
      %76 = dma.done [#allocation3], 5120
    $region65: #{tpu_custom_call.1} parent=1 // pred_fallthru
      _
    // Predicated region
    $region66: #{tpu_custom_call.1} parent=1 // pred_check
      _
    $region67: #{tpu_custom_call.1} parent=1 // pred_check_branch
      %78 = sbr.rel (0) target = $region69
    $region68: #{tpu_custom_call.1} parent=1 // pred_region
      %79 = dma.done [#allocation5], 5120
    $region69: #{tpu_custom_call.1} parent=1 // pred_fallthru
      _
    %v81 = vld [vmem:[%s0] sm:$0xff]
    %v82 = vld [vmem:[%s0 + $0x8] sm:$0xff]
    %v83 = vld [vmem:[%s0 + $0x10] sm:$0xff]
    %v84 = vld [vmem:[%s0 + $0x18] sm:$0xff]
    %v85 = vld [vmem:[%s1] sm:$0x3]
    %v86 = vld [vmem:[%s2] sm:$0x1]
    %v87 = vpack.c.bf16 %v82, %v81
    %v88 = vpack.c.bf16 %v84, %v83
    %v90 = vlaneseq
    %v91 = vshrl.u32 %v90, 7
    %v92 = vsub.s32 0, %v91
    %v93 = vrot.slane %v86, %v92
    %vm95 = vcmask 31744
    %v97 = vsel %vm95, %v87, 0
    %v100 = vsel %vm95, %v88, 0
    %vm102 = vcmask 1041408
    %v104 = vsel %vm102, %v85, 0
    %106 = vmatprep.subr.bf16.mxu0 0
    %107 = vmatpush1.bf16.msra.mxu0 %v104
    %108 = vmatprep.subr.bf16.mxu0 0
    %109 = vmatpush1.bf16.msra.mxu0 0
    %110 = vmatprep.subr.bf16.mxu0 0
    %111 = vmatpush1.bf16.msra.mxu0 0
    %112 = vmatprep.subr.bf16.mxu0 0
    %113 = vmatpush1.bf16.msra.mxu0 0
    %114 = vmatprep.subr.bf16.mxu0 0
    %115 = vmatpush1.bf16.msra.mxu0 0
    %116 = vmatprep.subr.bf16.mxu0 0
    %117 = vmatpush1.bf16.msra.mxu0 0
    %118 = vmatprep.subr.bf16.mxu0 0
    %119 = vmatpush1.bf16.msra.mxu0 0
    %120 = vmatprep.subr.bf16.mxu0 0
    %121 = vmatpush1.bf16.msra.mxu0 0
    %122 = vmatprep.subr.bf16.mxu0 0
    %123 = vmatpush1.bf16.msra.mxu0 0
    %124 = vmatprep.subr.bf16.mxu0 0
    %125 = vmatpush1.bf16.msra.mxu0 0
    %126 = vmatprep.subr.bf16.mxu0 0
    %127 = vmatpush1.bf16.msra.mxu0 0
    %128 = vmatprep.subr.bf16.mxu0 0
    %129 = vmatpush1.bf16.msra.mxu0 0
    %130 = vmatprep.subr.bf16.mxu0 0
    %131 = vmatpush1.bf16.msra.mxu0 0
    %132 = vmatprep.subr.bf16.mxu0 0
    %133 = vmatpush1.bf16.msra.mxu0 0
    %134 = vmatprep.subr.bf16.mxu0 0
    %135 = vmatpush1.bf16.msra.mxu0 0
    %136 = vmatprep.subr.bf16.mxu0 0
    %137 = vmatpush1.bf16.msra.mxu0 0
    %138 = vmatprep.mubr.bf16.mxu0 0
    %139 = vmatmul.mubr.bf16.gmra.mrb[0].mxu0 %v97
    %v140 = vpop.f32.mrb[0].mxu0
    %v141 = vadd.f32 %v93, %v140
    %v142 = vpop.f32.mrb[0].mxu0
    %v143 = vpop.f32.mrb[0].mxu0
    %v144 = vadd.f32 %v93, %v143
    %v145 = vpop.f32.mrb[0].mxu0
    %146 = vmatprep.mubr.bf16.mxu0 0
    %147 = vmatmul.mubr.bf16.gmra.mrb[0].mxu0 %v100
    %v148 = vpop.f32.mrb[0].mxu0
    %v149 = vadd.f32 %v93, %v148
    %v150 = vpop.f32.mrb[0].mxu0
    %v151 = vpop.f32.mrb[0].mxu0
    %v152 = vadd.f32 %v93, %v151
    %v153 = vpop.f32.mrb[0].mxu0
    %154 = vdwg.mxu0
    %v155 = vmax.f32 %v141, 0.0
    %v156 = vmax.f32 %v144, 0.0
    %v157 = vmax.f32 %v149, 0.0
    %v158 = vmax.f32 %v152, 0.0
    %v159 = vld [vmem:[#allocation2] sm:$0xf]
    %v160 = vld [vmem:[#allocation2 + $0x4] sm:$0xf]
    %v161 = vld [vmem:[#allocation2 + $0x8] sm:$0xf]
    %v162 = vld [vmem:[#allocation2 + $0xc] sm:$0xf]
    %v163 = vld [vmem:[#allocation2 + $0x10] sm:$0xf]
    %v164 = vld [vmem:[#allocation2 + $0x14] sm:$0xf]
    %v165 = vld [vmem:[#allocation2 + $0x18] sm:$0xf]
    %v166 = vld [vmem:[#allocation2 + $0x1c] sm:$0xf]
    %v167 = vld [vmem:[#allocation2 + $0x20] sm:$0xf]
    %v168 = vld [vmem:[#allocation2 + $0x24] sm:$0xf]
    %v169 = vld [vmem:[#allocation2 + $0x28] sm:$0xf]
    %v170 = vld [vmem:[#allocation2 + $0x2c] sm:$0xf]
    %v171 = vld [vmem:[#allocation2 + $0x30] sm:$0xf]
    %v172 = vld [vmem:[#allocation2 + $0x34] sm:$0xf]
    %v173 = vld [vmem:[#allocation2 + $0x38] sm:$0xf]
    %v174 = vld [vmem:[#allocation2 + $0x3c] sm:$0xf]
    %v175 = vld [vmem:[%s4] sm:$0x1]
    %v176 = vpack.c.bf16 %v156, %v155
    %v177 = vpack.c.bf16 %v158, %v157
    %v179 = vlaneseq
    %v180 = vshrl.u32 %v179, 7
    %v181 = vsub.s32 0, %v180
    %v182 = vrot.slane %v175, %v181
    %v200 = vunpack.c.l.b16 %v159
    %v201 = vunpack.c.l.b16 %v160
    %v202 = vunpack.c.l.b16 %v161
    %v203 = vunpack.c.l.b16 %v162
    %v204 = vunpack.c.l.b16 %v163
    %v205 = vunpack.c.l.b16 %v164
    %v206 = vunpack.c.l.b16 %v165
    %v207 = vunpack.c.l.b16 %v166
    %v208 = vunpack.c.l.b16 %v167
    %v209 = vunpack.c.l.b16 %v168
    %v210 = vunpack.c.l.b16 %v169
    %v211 = vunpack.c.l.b16 %v170
    %v212 = vunpack.c.l.b16 %v171
    %v213 = vunpack.c.l.b16 %v172
    %v214 = vunpack.c.l.b16 %v173
    %v215 = vunpack.c.l.b16 %v174
    %v216 = vpack.c.b16 %v201, %v200
    %v217 = vpack.c.b16 %v203, %v202
    %v218 = vpack.c.b16 %v205, %v204
    %v219 = vpack.c.b16 %v207, %v206
    %v220 = vpack.c.b16 %v209, %v208
    %v221 = vpack.c.b16 %v211, %v210
    %v222 = vpack.c.b16 %v213, %v212
    %v223 = vpack.c.b16 %v215, %v214
    %232 = vmatprep.subr.bf16.mxu0 0
    %233 = vmatpush1.bf16.msra.mxu0 %v216
    %234 = vmatprep.subr.bf16.mxu0 0
    %235 = vmatpush1.bf16.msra.mxu0 %v217
    %236 = vmatprep.subr.bf16.mxu0 0
    %237 = vmatpush1.bf16.msra.mxu0 %v218
    %238 = vmatprep.subr.bf16.mxu0 0
    %239 = vmatpush1.bf16.msra.mxu0 %v219
    %240 = vmatprep.subr.bf16.mxu0 0
    %241 = vmatpush1.bf16.msra.mxu0 %v220
    %242 = vmatprep.subr.bf16.mxu0 0
    %243 = vmatpush1.bf16.msra.mxu0 %v221
    %244 = vmatprep.subr.bf16.mxu0 0
    %245 = vmatpush1.bf16.msra.mxu0 %v222
    %246 = vmatprep.subr.bf16.mxu0 0
    %247 = vmatpush1.bf16.msra.mxu0 %v223
    %248 = vmatprep.subr.bf16.mxu0 0
    %249 = vmatpush1.bf16.msra.mxu0 0
    %250 = vmatprep.subr.bf16.mxu0 0
    %251 = vmatpush1.bf16.msra.mxu0 0
    %252 = vmatprep.subr.bf16.mxu0 0
    %253 = vmatpush1.bf16.msra.mxu0 0
    %254 = vmatprep.subr.bf16.mxu0 0
    %255 = vmatpush1.bf16.msra.mxu0 0
    %256 = vmatprep.subr.bf16.mxu0 0
    %257 = vmatpush1.bf16.msra.mxu0 0
    %258 = vmatprep.subr.bf16.mxu0 0
    %259 = vmatpush1.bf16.msra.mxu0 0
    %260 = vmatprep.subr.bf16.mxu0 0
    %261 = vmatpush1.bf16.msra.mxu0 0
    %262 = vmatprep.subr.bf16.mxu0 0
    %263 = vmatpush1.bf16.msra.mxu0 0
    %264 = vmatprep.mubr.bf16.mxu0 0
    %265 = vmatmul.mubr.bf16.gmra.mrb[0].mxu0 %v176
    %v266 = vpop.f32.mrb[0].mxu0
    %v267 = vadd.f32 %v182, %v266
    %v268 = vpop.f32.mrb[0].mxu0
    %v269 = vpop.f32.mrb[0].mxu0
    %v270 = vadd.f32 %v182, %v269
    %v271 = vpop.f32.mrb[0].mxu0
    %272 = vmatprep.mubr.bf16.mxu0 0
    %273 = vmatmul.mubr.bf16.gmra.mrb[0].mxu0 %v177
    %v274 = vpop.f32.mrb[0].mxu0
    %v275 = vadd.f32 %v182, %v274
    %v276 = vpop.f32.mrb[0].mxu0
    %v277 = vpop.f32.mrb[0].mxu0
    %v278 = vadd.f32 %v182, %v277
    %v279 = vpop.f32.mrb[0].mxu0
    %280 = vdwg.mxu0
    %v281 = vld [vmem:[%s5] sm:$0x1]
    %v282 = vld [vmem:[%s6] sm:$0x1]
    %v283 = vadd.f32 %v267, %v270
    %v284 = vrot.slane %v283, 4
    %v285 = vadd.f32 %v283, %v284
    %v286 = vrot.slane %v285, 2
    %v287 = vadd.f32 %v285, %v286
    %v288 = vrot.slane %v287, 1
    %v289 = vadd.f32 %v287, %v288
    %v290 = vadd.f32 %v275, %v278
    %v291 = vrot.slane %v290, 4
    %v292 = vadd.f32 %v290, %v291
    %v293 = vrot.slane %v292, 2
    %v294 = vadd.f32 %v292, %v293
    %v295 = vrot.slane %v294, 1
    %v296 = vadd.f32 %v294, %v295
    %v297 = vrcp.pop 16.0
    %v298 = vmul.f32 %v289, %v297
    %v299 = vmul.f32 %v296, %v297
    %v300 = vmul.f32 %v267, %v267
    %v301 = vmul.f32 %v270, %v270
    %v302 = vmul.f32 %v275, %v275
    %v303 = vmul.f32 %v278, %v278
    %v304 = vadd.f32 %v300, %v301
    %v305 = vrot.slane %v304, 4
    %v306 = vadd.f32 %v304, %v305
    %v307 = vrot.slane %v306, 2
    %v308 = vadd.f32 %v306, %v307
    %v309 = vrot.slane %v308, 1
    %v310 = vadd.f32 %v308, %v309
    %v311 = vadd.f32 %v302, %v303
    %v312 = vrot.slane %v311, 4
    %v313 = vadd.f32 %v311, %v312
    %v314 = vrot.slane %v313, 2
    %v315 = vadd.f32 %v313, %v314
    %v316 = vrot.slane %v315, 1
    %v317 = vadd.f32 %v315, %v316
    %v318 = vmul.f32 %v310, %v297
    %v319 = vmul.f32 %v317, %v297
    %v320 = vmul.f32 %v298, %v298
    %v321 = vmul.f32 %v299, %v299
    %v322 = vsub.f32 %v318, %v320
    %v323 = vsub.f32 %v319, %v321
    %v324 = vmax.f32 %v322, 0.0
    %v325 = vmax.f32 %v323, 0.0
    %v326 = vadd.f32 %v324, 1e-05
    %v327 = vadd.f32 %v325, 1e-05
    %v328 = vrsqrt.pop %v326
    %v329 = vrsqrt.pop %v327
    %v330 = vmul.f32 %v328, %v328
    %v331 = vmul.f32 %v329, %v329
    %v332 = vmul.f32 %v324, %v330
    %v333 = vmul.f32 %v325, %v331
    %v334 = vadd.f32 %v332, %v333
    %v335 = vrcp.pop 2.0
    %v336 = vmul.f32 %v334, %v335
    %v337 = vadd.f32 %v336, 1e-05
    %v338 = vrsqrt.pop %v337
    %v339 = vmul.f32 %v328, %v338
    %v340 = vmul.f32 %v329, %v338
    %v341 = vmul.f32 %v339, %v281
    %v342 = vmul.f32 %v340, %v281
    %v343 = vmul.f32 %v298, %v341
    %v344 = vmul.f32 %v299, %v342
    %v345 = vsub.f32 %v282, %v343
    %v346 = vsub.f32 %v282, %v344
    %v347 = vlaneseq
    %v348 = vshrl.u32 %v347, 7
    %v349 = vsub.s32 0, %v348
    %v350 = vrot.slane %v341, %v349
    %v351 = vlaneseq
    %v352 = vshrl.u32 %v351, 7
    %v353 = vsub.s32 0, %v352
    %v354 = vrot.slane %v342, %v353
    %v355 = vmul.f32 %v267, %v350
    %v356 = vmul.f32 %v270, %v350
    %v357 = vmul.f32 %v275, %v354
    %v358 = vmul.f32 %v278, %v354
    %v361 = vlaneseq
    %v362 = vshrl.u32 %v361, 7
    %v363 = vsub.s32 0, %v362
    %v364 = vrot.slane %v345, %v363
    %v365 = vlaneseq
    %v366 = vshrl.u32 %v365, 7
    %v367 = vsub.s32 0, %v366
    %v368 = vrot.slane %v346, %v367
    %v371 = vadd.f32 %v355, %v364
    %v372 = vadd.f32 %v356, %v364
    %v373 = vadd.f32 %v357, %v368
    %v374 = vadd.f32 %v358, %v368
    %v375 = vmax.f32 %v371, 0.0
    %v376 = vmax.f32 %v372, 0.0
    %v377 = vmax.f32 %v373, 0.0
    %v378 = vmax.f32 %v374, 0.0
    %v379 = vld [vmem:[#allocation4] sm:$0xf]
    %v380 = vld [vmem:[#allocation4 + $0x4] sm:$0xf]
    %v381 = vld [vmem:[#allocation4 + $0x8] sm:$0xf]
    %v382 = vld [vmem:[#allocation4 + $0xc] sm:$0xf]
    %v383 = vld [vmem:[#allocation4 + $0x10] sm:$0xf]
    %v384 = vld [vmem:[#allocation4 + $0x14] sm:$0xf]
    %v385 = vld [vmem:[#allocation4 + $0x18] sm:$0xf]
    %v386 = vld [vmem:[#allocation4 + $0x1c] sm:$0xf]
    %v387 = vld [vmem:[#allocation4 + $0x20] sm:$0xf]
    %v388 = vld [vmem:[#allocation4 + $0x24] sm:$0xf]
    %v389 = vld [vmem:[#allocation4 + $0x28] sm:$0xf]
    %v390 = vld [vmem:[#allocation4 + $0x2c] sm:$0xf]
    %v391 = vld [vmem:[#allocation4 + $0x30] sm:$0xf]
    %v392 = vld [vmem:[#allocation4 + $0x34] sm:$0xf]
    %v393 = vld [vmem:[#allocation4 + $0x38] sm:$0xf]
    %v394 = vld [vmem:[#allocation4 + $0x3c] sm:$0xf]
    %v395 = vld [vmem:[%s8] sm:$0x1]
    %v396 = vpack.c.bf16 %v376, %v375
    %v397 = vpack.c.bf16 %v378, %v377
    %v399 = vlaneseq
    %v400 = vshrl.u32 %v399, 7
    %v401 = vsub.s32 0, %v400
    %v402 = vrot.slane %v395, %v401
    %v420 = vunpack.c.l.b16 %v379
    %v421 = vunpack.c.l.b16 %v380
    %v422 = vunpack.c.l.b16 %v381
    %v423 = vunpack.c.l.b16 %v382
    %v424 = vunpack.c.l.b16 %v383
    %v425 = vunpack.c.l.b16 %v384
    %v426 = vunpack.c.l.b16 %v385
    %v427 = vunpack.c.l.b16 %v386
    %v428 = vunpack.c.l.b16 %v387
    %v429 = vunpack.c.l.b16 %v388
    %v430 = vunpack.c.l.b16 %v389
    %v431 = vunpack.c.l.b16 %v390
    %v432 = vunpack.c.l.b16 %v391
    %v433 = vunpack.c.l.b16 %v392
    %v434 = vunpack.c.l.b16 %v393
    %v435 = vunpack.c.l.b16 %v394
    %v436 = vpack.c.b16 %v421, %v420
    %v437 = vpack.c.b16 %v423, %v422
    %v438 = vpack.c.b16 %v425, %v424
    %v439 = vpack.c.b16 %v427, %v426
    %v440 = vpack.c.b16 %v429, %v428
    %v441 = vpack.c.b16 %v431, %v430
    %v442 = vpack.c.b16 %v433, %v432
    %v443 = vpack.c.b16 %v435, %v434
    %452 = vmatprep.subr.bf16.mxu0 0
    %453 = vmatpush1.bf16.msra.mxu0 %v436
    %454 = vmatprep.subr.bf16.mxu0 0
    %455 = vmatpush1.bf16.msra.mxu0 %v437
    %456 = vmatprep.subr.bf16.mxu0 0
    %457 = vmatpush1.bf16.msra.mxu0 %v438
    %458 = vmatprep.subr.bf16.mxu0 0
    %459 = vmatpush1.bf16.msra.mxu0 %v439
    %460 = vmatprep.subr.bf16.mxu0 0
    %461 = vmatpush1.bf16.msra.mxu0 %v440
    %462 = vmatprep.subr.bf16.mxu0 0
    %463 = vmatpush1.bf16.msra.mxu0 %v441
    %464 = vmatprep.subr.bf16.mxu0 0
    %465 = vmatpush1.bf16.msra.mxu0 %v442
    %466 = vmatprep.subr.bf16.mxu0 0
    %467 = vmatpush1.bf16.msra.mxu0 %v443
    %468 = vmatprep.subr.bf16.mxu0 0
    %469 = vmatpush1.bf16.msra.mxu0 0
    %470 = vmatprep.subr.bf16.mxu0 0
    %471 = vmatpush1.bf16.msra.mxu0 0
    %472 = vmatprep.subr.bf16.mxu0 0
    %473 = vmatpush1.bf16.msra.mxu0 0
    %474 = vmatprep.subr.bf16.mxu0 0
    %475 = vmatpush1.bf16.msra.mxu0 0
    %476 = vmatprep.subr.bf16.mxu0 0
    %477 = vmatpush1.bf16.msra.mxu0 0
    %478 = vmatprep.subr.bf16.mxu0 0
    %479 = vmatpush1.bf16.msra.mxu0 0
    %480 = vmatprep.subr.bf16.mxu0 0
    %481 = vmatpush1.bf16.msra.mxu0 0
    %482 = vmatprep.subr.bf16.mxu0 0
    %483 = vmatpush1.bf16.msra.mxu0 0
    %484 = vmatprep.mubr.bf16.mxu0 0
    %485 = vmatmul.mubr.bf16.gmra.mrb[0].mxu0 %v396
    %v486 = vpop.f32.mrb[0].mxu0
    %v487 = vadd.f32 %v402, %v486
    %v488 = vpop.f32.mrb[0].mxu0
    %v489 = vpop.f32.mrb[0].mxu0
    %v490 = vadd.f32 %v402, %v489
    %v491 = vpop.f32.mrb[0].mxu0
    %492 = vmatprep.mubr.bf16.mxu0 0
    %493 = vmatmul.mubr.bf16.gmra.mrb[0].mxu0 %v397
    %v494 = vpop.f32.mrb[0].mxu0
    %v495 = vadd.f32 %v402, %v494
    %v496 = vpop.f32.mrb[0].mxu0
    %v497 = vpop.f32.mrb[0].mxu0
    %v498 = vadd.f32 %v402, %v497
    %v499 = vpop.f32.mrb[0].mxu0
    %500 = vdwg.mxu0
    %v501 = vld [vmem:[%s9] sm:$0x1]
    %v502 = vld [vmem:[%s10] sm:$0x1]
    %v503 = vadd.f32 %v487, %v490
    %v504 = vrot.slane %v503, 4
    %v505 = vadd.f32 %v503, %v504
    %v506 = vrot.slane %v505, 2
    %v507 = vadd.f32 %v505, %v506
    %v508 = vrot.slane %v507, 1
    %v509 = vadd.f32 %v507, %v508
    %v510 = vadd.f32 %v495, %v498
    %v511 = vrot.slane %v510, 4
    %v512 = vadd.f32 %v510, %v511
    %v513 = vrot.slane %v512, 2
    %v514 = vadd.f32 %v512, %v513
    %v515 = vrot.slane %v514, 1
    %v516 = vadd.f32 %v514, %v515
    %v517 = vmul.f32 %v509, %v297
    %v518 = vmul.f32 %v516, %v297
    %v519 = vmul.f32 %v487, %v487
    %v520 = vmul.f32 %v490, %v490
    %v521 = vmul.f32 %v495, %v495
    %v522 = vmul.f32 %v498, %v498
    %v523 = vadd.f32 %v519, %v520
    %v524 = vrot.slane %v523, 4
    %v525 = vadd.f32 %v523, %v524
    %v526 = vrot.slane %v525, 2
    %v527 = vadd.f32 %v525, %v526
    %v528 = vrot.slane %v527, 1
    %v529 = vadd.f32 %v527, %v528
    %v530 = vadd.f32 %v521, %v522
    %v531 = vrot.slane %v530, 4
    %v532 = vadd.f32 %v530, %v531
    %v533 = vrot.slane %v532, 2
    %v534 = vadd.f32 %v532, %v533
    %v535 = vrot.slane %v534, 1
    %v536 = vadd.f32 %v534, %v535
    %v537 = vmul.f32 %v529, %v297
    %v538 = vmul.f32 %v536, %v297
    %v539 = vmul.f32 %v517, %v517
    %v540 = vmul.f32 %v518, %v518
    %v541 = vsub.f32 %v537, %v539
    %v542 = vsub.f32 %v538, %v540
    %v543 = vmax.f32 %v541, 0.0
    %v544 = vmax.f32 %v542, 0.0
    %v545 = vadd.f32 %v543, 1e-05
    %v546 = vadd.f32 %v544, 1e-05
    %v547 = vrsqrt.pop %v545
    %v548 = vrsqrt.pop %v546
    %v549 = vmul.f32 %v547, %v547
    %v550 = vmul.f32 %v548, %v548
    %v551 = vmul.f32 %v543, %v549
    %v552 = vmul.f32 %v544, %v550
    %v553 = vadd.f32 %v551, %v552
    %v554 = vmul.f32 %v553, %v335
    %v555 = vadd.f32 %v554, 1e-05
    %v556 = vrsqrt.pop %v555
    %v557 = vmul.f32 %v547, %v556
    %v558 = vmul.f32 %v548, %v556
    %v559 = vmul.f32 %v557, %v501
    %v560 = vmul.f32 %v558, %v501
    %v561 = vmul.f32 %v517, %v559
    %v562 = vmul.f32 %v518, %v560
    %v563 = vsub.f32 %v502, %v561
    %v564 = vsub.f32 %v502, %v562
    %v565 = vlaneseq
    %v566 = vshrl.u32 %v565, 7
    %v567 = vsub.s32 0, %v566
    %v568 = vrot.slane %v559, %v567
    %v569 = vlaneseq
    %v570 = vshrl.u32 %v569, 7
    %v571 = vsub.s32 0, %v570
    %v572 = vrot.slane %v560, %v571
    %v573 = vmul.f32 %v487, %v568
    %v574 = vmul.f32 %v490, %v568
    %v575 = vmul.f32 %v495, %v572
    %v576 = vmul.f32 %v498, %v572
    %v579 = vlaneseq
    %v580 = vshrl.u32 %v579, 7
    %v581 = vsub.s32 0, %v580
    %v582 = vrot.slane %v563, %v581
    %v583 = vlaneseq
    %v584 = vshrl.u32 %v583, 7
    %v585 = vsub.s32 0, %v584
    %v586 = vrot.slane %v564, %v585
    %v589 = vadd.f32 %v573, %v582
    %v590 = vadd.f32 %v574, %v582
    %v591 = vadd.f32 %v575, %v586
    %v592 = vadd.f32 %v576, %v586
    %v593 = vmax.f32 %v589, 0.0
    %v594 = vmax.f32 %v590, 0.0
    %v595 = vmax.f32 %v591, 0.0
    %v596 = vmax.f32 %v592, 0.0
    %v597 = vadd.f32 %v593, %v155
    %v598 = vadd.f32 %v594, %v156
    %v599 = vadd.f32 %v595, %v157
    %v600 = vadd.f32 %v596, %v158
    %s601 = scalar_lea.vmem [#allocation2], 64
    %v602 = vld [vmem:[%s601] sm:$0xf]
    %v603 = vld [vmem:[%s601 + $0x4] sm:$0xf]
    %v604 = vld [vmem:[%s601 + $0x8] sm:$0xf]
    %v605 = vld [vmem:[%s601 + $0xc] sm:$0xf]
    %v606 = vld [vmem:[%s601 + $0x10] sm:$0xf]
    %v607 = vld [vmem:[%s601 + $0x14] sm:$0xf]
    %v608 = vld [vmem:[%s601 + $0x18] sm:$0xf]
    %v609 = vld [vmem:[%s601 + $0x1c] sm:$0xf]
    %v610 = vld [vmem:[%s601 + $0x20] sm:$0xf]
    %v611 = vld [vmem:[%s601 + $0x24] sm:$0xf]
    %v612 = vld [vmem:[%s601 + $0x28] sm:$0xf]
    %v613 = vld [vmem:[%s601 + $0x2c] sm:$0xf]
    %v614 = vld [vmem:[%s601 + $0x30] sm:$0xf]
    %v615 = vld [vmem:[%s601 + $0x34] sm:$0xf]
    %v616 = vld [vmem:[%s601 + $0x38] sm:$0xf]
    %v617 = vld [vmem:[%s601 + $0x3c] sm:$0xf]
    %s618 = scalar_lea.vmem %s4, 1
    %v619 = vld [vmem:[%s618] sm:$0x1]
    %v620 = vpack.c.bf16 %v598, %v597
    %v621 = vpack.c.bf16 %v600, %v599
    %v623 = vlaneseq
    %v624 = vshrl.u32 %v623, 7
    %v625 = vsub.s32 0, %v624
    %v626 = vrot.slane %v619, %v625
    %v644 = vunpack.c.l.b16 %v602
    %v645 = vunpack.c.l.b16 %v603
    %v646 = vunpack.c.l.b16 %v604
    %v647 = vunpack.c.l.b16 %v605
    %v648 = vunpack.c.l.b16 %v606
    %v649 = vunpack.c.l.b16 %v607
    %v650 = vunpack.c.l.b16 %v608
    %v651 = vunpack.c.l.b16 %v609
    %v652 = vunpack.c.l.b16 %v610
    %v653 = vunpack.c.l.b16 %v611
    %v654 = vunpack.c.l.b16 %v612
    %v655 = vunpack.c.l.b16 %v613
    %v656 = vunpack.c.l.b16 %v614
    %v657 = vunpack.c.l.b16 %v615
    %v658 = vunpack.c.l.b16 %v616
    %v659 = vunpack.c.l.b16 %v617
    %v660 = vpack.c.b16 %v645, %v644
    %v661 = vpack.c.b16 %v647, %v646
    %v662 = vpack.c.b16 %v649, %v648
    %v663 = vpack.c.b16 %v651, %v650
    %v664 = vpack.c.b16 %v653, %v652
    %v665 = vpack.c.b16 %v655, %v654
    %v666 = vpack.c.b16 %v657, %v656
    %v667 = vpack.c.b16 %v659, %v658
    %676 = vmatprep.subr.bf16.mxu0 0
    %677 = vmatpush1.bf16.msra.mxu0 %v660
    %678 = vmatprep.subr.bf16.mxu0 0
    %679 = vmatpush1.bf16.msra.mxu0 %v661
    %680 = vmatprep.subr.bf16.mxu0 0
    %681 = vmatpush1.bf16.msra.mxu0 %v662
    %682 = vmatprep.subr.bf16.mxu0 0
    %683 = vmatpush1.bf16.msra.mxu0 %v663
    %684 = vmatprep.subr.bf16.mxu0 0
    %685 = vmatpush1.bf16.msra.mxu0 %v664
    %686 = vmatprep.subr.bf16.mxu0 0
    %687 = vmatpush1.bf16.msra.mxu0 %v665
    %688 = vmatprep.subr.bf16.mxu0 0
    %689 = vmatpush1.bf16.msra.mxu0 %v666
    %690 = vmatprep.subr.bf16.mxu0 0
    %691 = vmatpush1.bf16.msra.mxu0 %v667
    %692 = vmatprep.subr.bf16.mxu0 0
    %693 = vmatpush1.bf16.msra.mxu0 0
    %694 = vmatprep.subr.bf16.mxu0 0
    %695 = vmatpush1.bf16.msra.mxu0 0
    %696 = vmatprep.subr.bf16.mxu0 0
    %697 = vmatpush1.bf16.msra.mxu0 0
    %698 = vmatprep.subr.bf16.mxu0 0
    %699 = vmatpush1.bf16.msra.mxu0 0
    %700 = vmatprep.subr.bf16.mxu0 0
    %701 = vmatpush1.bf16.msra.mxu0 0
    %702 = vmatprep.subr.bf16.mxu0 0
    %703 = vmatpush1.bf16.msra.mxu0 0
    %704 = vmatprep.subr.bf16.mxu0 0
    %705 = vmatpush1.bf16.msra.mxu0 0
    %706 = vmatprep.subr.bf16.mxu0 0
    %707 = vmatpush1.bf16.msra.mxu0 0
    %708 = vmatprep.mubr.bf16.mxu0 0
    %709 = vmatmul.mubr.bf16.gmra.mrb[0].mxu0 %v620
    %v710 = vpop.f32.mrb[0].mxu0
    %v711 = vadd.f32 %v626, %v710
    %v712 = vpop.f32.mrb[0].mxu0
    %v713 = vpop.f32.mrb[0].mxu0
    %v714 = vadd.f32 %v626, %v713
    %v715 = vpop.f32.mrb[0].mxu0
    %716 = vmatprep.mubr.bf16.mxu0 0
    %717 = vmatmul.mubr.bf16.gmra.mrb[0].mxu0 %v621
    %v718 = vpop.f32.mrb[0].mxu0
    %v719 = vadd.f32 %v626, %v718
    %v720 = vpop.f32.mrb[0].mxu0
    %v721 = vpop.f32.mrb[0].mxu0
    %v722 = vadd.f32 %v626, %v721
    %v723 = vpop.f32.mrb[0].mxu0
    %724 = vdwg.mxu0
    %s725 = scalar_lea.vmem %s5, 1
    %v726 = vld [vmem:[%s725] sm:$0x1]
    %s727 = scalar_lea.vmem %s6, 1
    %v728 = vld [vmem:[%s727] sm:$0x1]
    %v729 = vadd.f32 %v711, %v714
    %v730 = vrot.slane %v729, 4
    %v731 = vadd.f32 %v729, %v730
    %v732 = vrot.slane %v731, 2
    %v733 = vadd.f32 %v731, %v732
    %v734 = vrot.slane %v733, 1
    %v735 = vadd.f32 %v733, %v734
    %v736 = vadd.f32 %v719, %v722
    %v737 = vrot.slane %v736, 4
    %v738 = vadd.f32 %v736, %v737
    %v739 = vrot.slane %v738, 2
    %v740 = vadd.f32 %v738, %v739
    %v741 = vrot.slane %v740, 1
    %v742 = vadd.f32 %v740, %v741
    %v743 = vmul.f32 %v735, %v297
    %v744 = vmul.f32 %v742, %v297
    %v745 = vmul.f32 %v711, %v711
    %v746 = vmul.f32 %v714, %v714
    %v747 = vmul.f32 %v719, %v719
    %v748 = vmul.f32 %v722, %v722
    %v749 = vadd.f32 %v745, %v746
    %v750 = vrot.slane %v749, 4
    %v751 = vadd.f32 %v749, %v750
    %v752 = vrot.slane %v751, 2
    %v753 = vadd.f32 %v751, %v752
    %v754 = vrot.slane %v753, 1
    %v755 = vadd.f32 %v753, %v754
    %v756 = vadd.f32 %v747, %v748
    %v757 = vrot.slane %v756, 4
    %v758 = vadd.f32 %v756, %v757
    %v759 = vrot.slane %v758, 2
    %v760 = vadd.f32 %v758, %v759
    %v761 = vrot.slane %v760, 1
    %v762 = vadd.f32 %v760, %v761
    %v763 = vmul.f32 %v755, %v297
    %v764 = vmul.f32 %v762, %v297
    %v765 = vmul.f32 %v743, %v743
    %v766 = vmul.f32 %v744, %v744
    %v767 = vsub.f32 %v763, %v765
    %v768 = vsub.f32 %v764, %v766
    %v769 = vmax.f32 %v767, 0.0
    %v770 = vmax.f32 %v768, 0.0
    %v771 = vadd.f32 %v769, 1e-05
    %v772 = vadd.f32 %v770, 1e-05
    %v773 = vrsqrt.pop %v771
    %v774 = vrsqrt.pop %v772
    %v775 = vmul.f32 %v773, %v773
    %v776 = vmul.f32 %v774, %v774
    %v777 = vmul.f32 %v769, %v775
    %v778 = vmul.f32 %v770, %v776
    %v779 = vadd.f32 %v777, %v778
    %v780 = vmul.f32 %v779, %v335
    %v781 = vadd.f32 %v780, 1e-05
    %v782 = vrsqrt.pop %v781
    %v783 = vmul.f32 %v773, %v782
    %v784 = vmul.f32 %v774, %v782
    %v785 = vmul.f32 %v783, %v726
    %v786 = vmul.f32 %v784, %v726
    %v787 = vmul.f32 %v743, %v785
    %v788 = vmul.f32 %v744, %v786
    %v789 = vsub.f32 %v728, %v787
    %v790 = vsub.f32 %v728, %v788
    %v791 = vlaneseq
    %v792 = vshrl.u32 %v791, 7
    %v793 = vsub.s32 0, %v792
    %v794 = vrot.slane %v785, %v793
    %v795 = vlaneseq
    %v796 = vshrl.u32 %v795, 7
    %v797 = vsub.s32 0, %v796
    %v798 = vrot.slane %v786, %v797
    %v799 = vmul.f32 %v711, %v794
    %v800 = vmul.f32 %v714, %v794
    %v801 = vmul.f32 %v719, %v798
    %v802 = vmul.f32 %v722, %v798
    %v805 = vlaneseq
    %v806 = vshrl.u32 %v805, 7
    %v807 = vsub.s32 0, %v806
    %v808 = vrot.slane %v789, %v807
    %v809 = vlaneseq
    %v810 = vshrl.u32 %v809, 7
    %v811 = vsub.s32 0, %v810
    %v812 = vrot.slane %v790, %v811
    %v815 = vadd.f32 %v799, %v808
    %v816 = vadd.f32 %v800, %v808
    %v817 = vadd.f32 %v801, %v812
    %v818 = vadd.f32 %v802, %v812
    %v819 = vmax.f32 %v815, 0.0
    %v820 = vmax.f32 %v816, 0.0
    %v821 = vmax.f32 %v817, 0.0
    %v822 = vmax.f32 %v818, 0.0
    %s823 = scalar_lea.vmem [#allocation4], 64
    %v824 = vld [vmem:[%s823] sm:$0xf]
    %v825 = vld [vmem:[%s823 + $0x4] sm:$0xf]
    %v826 = vld [vmem:[%s823 + $0x8] sm:$0xf]
    %v827 = vld [vmem:[%s823 + $0xc] sm:$0xf]
    %v828 = vld [vmem:[%s823 + $0x10] sm:$0xf]
    %v829 = vld [vmem:[%s823 + $0x14] sm:$0xf]
    %v830 = vld [vmem:[%s823 + $0x18] sm:$0xf]
    %v831 = vld [vmem:[%s823 + $0x1c] sm:$0xf]
    %v832 = vld [vmem:[%s823 + $0x20] sm:$0xf]
    %v833 = vld [vmem:[%s823 + $0x24] sm:$0xf]
    %v834 = vld [vmem:[%s823 + $0x28] sm:$0xf]
    %v835 = vld [vmem:[%s823 + $0x2c] sm:$0xf]
    %v836 = vld [vmem:[%s823 + $0x30] sm:$0xf]
    %v837 = vld [vmem:[%s823 + $0x34] sm:$0xf]
    %v838 = vld [vmem:[%s823 + $0x38] sm:$0xf]
    %v839 = vld [vmem:[%s823 + $0x3c] sm:$0xf]
    %s840 = scalar_lea.vmem %s8, 1
    %v841 = vld [vmem:[%s840] sm:$0x1]
    %v842 = vpack.c.bf16 %v820, %v819
    %v843 = vpack.c.bf16 %v822, %v821
    %v845 = vlaneseq
    %v846 = vshrl.u32 %v845, 7
    %v847 = vsub.s32 0, %v846
    %v848 = vrot.slane %v841, %v847
    %v866 = vunpack.c.l.b16 %v824
    %v867 = vunpack.c.l.b16 %v825
    %v868 = vunpack.c.l.b16 %v826
    %v869 = vunpack.c.l.b16 %v827
    %v870 = vunpack.c.l.b16 %v828
    %v871 = vunpack.c.l.b16 %v829
    %v872 = vunpack.c.l.b16 %v830
    %v873 = vunpack.c.l.b16 %v831
    %v874 = vunpack.c.l.b16 %v832
    %v875 = vunpack.c.l.b16 %v833
    %v876 = vunpack.c.l.b16 %v834
    %v877 = vunpack.c.l.b16 %v835
    %v878 = vunpack.c.l.b16 %v836
    %v879 = vunpack.c.l.b16 %v837
    %v880 = vunpack.c.l.b16 %v838
    %v881 = vunpack.c.l.b16 %v839
    %v882 = vpack.c.b16 %v867, %v866
    %v883 = vpack.c.b16 %v869, %v868
    %v884 = vpack.c.b16 %v871, %v870
    %v885 = vpack.c.b16 %v873, %v872
    %v886 = vpack.c.b16 %v875, %v874
    %v887 = vpack.c.b16 %v877, %v876
    %v888 = vpack.c.b16 %v879, %v878
    %v889 = vpack.c.b16 %v881, %v880
    %898 = vmatprep.subr.bf16.mxu0 0
    %899 = vmatpush1.bf16.msra.mxu0 %v882
    %900 = vmatprep.subr.bf16.mxu0 0
    %901 = vmatpush1.bf16.msra.mxu0 %v883
    %902 = vmatprep.subr.bf16.mxu0 0
    %903 = vmatpush1.bf16.msra.mxu0 %v884
    %904 = vmatprep.subr.bf16.mxu0 0
    %905 = vmatpush1.bf16.msra.mxu0 %v885
    %906 = vmatprep.subr.bf16.mxu0 0
    %907 = vmatpush1.bf16.msra.mxu0 %v886
    %908 = vmatprep.subr.bf16.mxu0 0
    %909 = vmatpush1.bf16.msra.mxu0 %v887
    %910 = vmatprep.subr.bf16.mxu0 0
    %911 = vmatpush1.bf16.msra.mxu0 %v888
    %912 = vmatprep.subr.bf16.mxu0 0
    %913 = vmatpush1.bf16.msra.mxu0 %v889
    %914 = vmatprep.subr.bf16.mxu0 0
    %915 = vmatpush1.bf16.msra.mxu0 0
    %916 = vmatprep.subr.bf16.mxu0 0
    %917 = vmatpush1.bf16.msra.mxu0 0
    %918 = vmatprep.subr.bf16.mxu0 0
    %919 = vmatpush1.bf16.msra.mxu0 0
    %920 = vmatprep.subr.bf16.mxu0 0
    %921 = vmatpush1.bf16.msra.mxu0 0
    %922 = vmatprep.subr.bf16.mxu0 0
    %923 = vmatpush1.bf16.msra.mxu0 0
    %924 = vmatprep.subr.bf16.mxu0 0
    %925 = vmatpush1.bf16.msra.mxu0 0
    %926 = vmatprep.subr.bf16.mxu0 0
    %927 = vmatpush1.bf16.msra.mxu0 0
    %928 = vmatprep.subr.bf16.mxu0 0
    %929 = vmatpush1.bf16.msra.mxu0 0
    %930 = vmatprep.mubr.bf16.mxu0 0
    %931 = vmatmul.mubr.bf16.gmra.mrb[0].mxu0 %v842
    %v932 = vpop.f32.mrb[0].mxu0
    %v933 = vadd.f32 %v848, %v932
    %v934 = vpop.f32.mrb[0].mxu0
    %v935 = vpop.f32.mrb[0].mxu0
    %v936 = vadd.f32 %v848, %v935
    %v937 = vpop.f32.mrb[0].mxu0
    %938 = vmatprep.mubr.bf16.mxu0 0
    %939 = vmatmul.mubr.bf16.gmra.mrb[0].mxu0 %v843
    %v940 = vpop.f32.mrb[0].mxu0
    %v941 = vadd.f32 %v848, %v940
    %v942 = vpop.f32.mrb[0].mxu0
    %v943 = vpop.f32.mrb[0].mxu0
    %v944 = vadd.f32 %v848, %v943
    %v945 = vpop.f32.mrb[0].mxu0
    %946 = vdwg.mxu0
    %s947 = scalar_lea.vmem %s9, 1
    %v948 = vld [vmem:[%s947] sm:$0x1]
    %s949 = scalar_lea.vmem %s10, 1
    %v950 = vld [vmem:[%s949] sm:$0x1]
    %v951 = vadd.f32 %v933, %v936
    %v952 = vrot.slane %v951, 4
    %v953 = vadd.f32 %v951, %v952
    %v954 = vrot.slane %v953, 2
    %v955 = vadd.f32 %v953, %v954
    %v956 = vrot.slane %v955, 1
    %v957 = vadd.f32 %v955, %v956
    %v958 = vadd.f32 %v941, %v944
    %v959 = vrot.slane %v958, 4
    %v960 = vadd.f32 %v958, %v959
    %v961 = vrot.slane %v960, 2
    %v962 = vadd.f32 %v960, %v961
    %v963 = vrot.slane %v962, 1
    %v964 = vadd.f32 %v962, %v963
    %v965 = vmul.f32 %v957, %v297
    %v966 = vmul.f32 %v964, %v297
    %v967 = vmul.f32 %v933, %v933
    %v968 = vmul.f32 %v936, %v936
    %v969 = vmul.f32 %v941, %v941
    %v970 = vmul.f32 %v944, %v944
    %v971 = vadd.f32 %v967, %v968
    %v972 = vrot.slane %v971, 4
    %v973 = vadd.f32 %v971, %v972
    %v974 = vrot.slane %v973, 2
    %v975 = vadd.f32 %v973, %v974
    %v976 = vrot.slane %v975, 1
    %v977 = vadd.f32 %v975, %v976
    %v978 = vadd.f32 %v969, %v970
    %v979 = vrot.slane %v978, 4
    %v980 = vadd.f32 %v978, %v979
    %v981 = vrot.slane %v980, 2
    %v982 = vadd.f32 %v980, %v981
    %v983 = vrot.slane %v982, 1
    %v984 = vadd.f32 %v982, %v983
    %v985 = vmul.f32 %v977, %v297
    %v986 = vmul.f32 %v984, %v297
    %v987 = vmul.f32 %v965, %v965
    %v988 = vmul.f32 %v966, %v966
    %v989 = vsub.f32 %v985, %v987
    %v990 = vsub.f32 %v986, %v988
    %v991 = vmax.f32 %v989, 0.0
    %v992 = vmax.f32 %v990, 0.0
    %v993 = vadd.f32 %v991, 1e-05
    %v994 = vadd.f32 %v992, 1e-05
    %v995 = vrsqrt.pop %v993
    %v996 = vrsqrt.pop %v994
    %v997 = vmul.f32 %v995, %v995
    %v998 = vmul.f32 %v996, %v996
    %v999 = vmul.f32 %v991, %v997
    %v1000 = vmul.f32 %v992, %v998
    %v1001 = vadd.f32 %v999, %v1000
    %v1002 = vmul.f32 %v1001, %v335
    %v1003 = vadd.f32 %v1002, 1e-05
    %v1004 = vrsqrt.pop %v1003
    %v1005 = vmul.f32 %v995, %v1004
    %v1006 = vmul.f32 %v996, %v1004
    %v1007 = vmul.f32 %v1005, %v948
    %v1008 = vmul.f32 %v1006, %v948
    %v1009 = vmul.f32 %v965, %v1007
    %v1010 = vmul.f32 %v966, %v1008
    %v1011 = vsub.f32 %v950, %v1009
    %v1012 = vsub.f32 %v950, %v1010
    %v1013 = vlaneseq
    %v1014 = vshrl.u32 %v1013, 7
    %v1015 = vsub.s32 0, %v1014
    %v1016 = vrot.slane %v1007, %v1015
    %v1017 = vlaneseq
    %v1018 = vshrl.u32 %v1017, 7
    %v1019 = vsub.s32 0, %v1018
    %v1020 = vrot.slane %v1008, %v1019
    %v1021 = vmul.f32 %v933, %v1016
    %v1022 = vmul.f32 %v936, %v1016
    %v1023 = vmul.f32 %v941, %v1020
    %v1024 = vmul.f32 %v944, %v1020
    %v1027 = vlaneseq
    %v1028 = vshrl.u32 %v1027, 7
    %v1029 = vsub.s32 0, %v1028
    %v1030 = vrot.slane %v1011, %v1029
    %v1031 = vlaneseq
    %v1032 = vshrl.u32 %v1031, 7
    %v1033 = vsub.s32 0, %v1032
    %v1034 = vrot.slane %v1012, %v1033
    %v1037 = vadd.f32 %v1021, %v1030
    %v1038 = vadd.f32 %v1022, %v1030
    %v1039 = vadd.f32 %v1023, %v1034
    %v1040 = vadd.f32 %v1024, %v1034
    %v1041 = vmax.f32 %v1037, 0.0
    %v1042 = vmax.f32 %v1038, 0.0
    %v1043 = vmax.f32 %v1039, 0.0
    %v1044 = vmax.f32 %v1040, 0.0
    %v1045 = vadd.f32 %v1041, %v597
    %v1046 = vadd.f32 %v1042, %v598
    %v1047 = vadd.f32 %v1043, %v599
    %v1048 = vadd.f32 %v1044, %v600
    %s1049 = scalar_lea.vmem [#allocation2], 128
    %v1050 = vld [vmem:[%s1049] sm:$0xf]
    %v1051 = vld [vmem:[%s1049 + $0x4] sm:$0xf]
    %v1052 = vld [vmem:[%s1049 + $0x8] sm:$0xf]
    %v1053 = vld [vmem:[%s1049 + $0xc] sm:$0xf]
    %v1054 = vld [vmem:[%s1049 + $0x10] sm:$0xf]
    %v1055 = vld [vmem:[%s1049 + $0x14] sm:$0xf]
    %v1056 = vld [vmem:[%s1049 + $0x18] sm:$0xf]
    %v1057 = vld [vmem:[%s1049 + $0x1c] sm:$0xf]
    %v1058 = vld [vmem:[%s1049 + $0x20] sm:$0xf]
    %v1059 = vld [vmem:[%s1049 + $0x24] sm:$0xf]
    %v1060 = vld [vmem:[%s1049 + $0x28] sm:$0xf]
    %v1061 = vld [vmem:[%s1049 + $0x2c] sm:$0xf]
    %v1062 = vld [vmem:[%s1049 + $0x30] sm:$0xf]
    %v1063 = vld [vmem:[%s1049 + $0x34] sm:$0xf]
    %v1064 = vld [vmem:[%s1049 + $0x38] sm:$0xf]
    %v1065 = vld [vmem:[%s1049 + $0x3c] sm:$0xf]
    %s1066 = scalar_lea.vmem %s4, 2
    %v1067 = vld [vmem:[%s1066] sm:$0x1]
    %v1068 = vpack.c.bf16 %v1046, %v1045
    %v1069 = vpack.c.bf16 %v1048, %v1047
    %v1071 = vlaneseq
    %v1072 = vshrl.u32 %v1071, 7
    %v1073 = vsub.s32 0, %v1072
    %v1074 = vrot.slane %v1067, %v1073
    %v1092 = vunpack.c.l.b16 %v1050
    %v1093 = vunpack.c.l.b16 %v1051
    %v1094 = vunpack.c.l.b16 %v1052
    %v1095 = vunpack.c.l.b16 %v1053
    %v1096 = vunpack.c.l.b16 %v1054
    %v1097 = vunpack.c.l.b16 %v1055
    %v1098 = vunpack.c.l.b16 %v1056
    %v1099 = vunpack.c.l.b16 %v1057
    %v1100 = vunpack.c.l.b16 %v1058
    %v1101 = vunpack.c.l.b16 %v1059
    %v1102 = vunpack.c.l.b16 %v1060
    %v1103 = vunpack.c.l.b16 %v1061
    %v1104 = vunpack.c.l.b16 %v1062
    %v1105 = vunpack.c.l.b16 %v1063
    %v1106 = vunpack.c.l.b16 %v1064
    %v1107 = vunpack.c.l.b16 %v1065
    %v1108 = vpack.c.b16 %v1093, %v1092
    %v1109 = vpack.c.b16 %v1095, %v1094
    %v1110 = vpack.c.b16 %v1097, %v1096
    %v1111 = vpack.c.b16 %v1099, %v1098
    %v1112 = vpack.c.b16 %v1101, %v1100
    %v1113 = vpack.c.b16 %v1103, %v1102
    %v1114 = vpack.c.b16 %v1105, %v1104
    %v1115 = vpack.c.b16 %v1107, %v1106
    %1124 = vmatprep.subr.bf16.mxu0 0
    %1125 = vmatpush1.bf16.msra.mxu0 %v1108
    %1126 = vmatprep.subr.bf16.mxu0 0
    %1127 = vmatpush1.bf16.msra.mxu0 %v1109
    %1128 = vmatprep.subr.bf16.mxu0 0
    %1129 = vmatpush1.bf16.msra.mxu0 %v1110
    %1130 = vmatprep.subr.bf16.mxu0 0
    %1131 = vmatpush1.bf16.msra.mxu0 %v1111
    %1132 = vmatprep.subr.bf16.mxu0 0
    %1133 = vmatpush1.bf16.msra.mxu0 %v1112
    %1134 = vmatprep.subr.bf16.mxu0 0
    %1135 = vmatpush1.bf16.msra.mxu0 %v1113
    %1136 = vmatprep.subr.bf16.mxu0 0
    %1137 = vmatpush1.bf16.msra.mxu0 %v1114
    %1138 = vmatprep.subr.bf16.mxu0 0
    %1139 = vmatpush1.bf16.msra.mxu0 %v1115
    %1140 = vmatprep.subr.bf16.mxu0 0
    %1141 = vmatpush1.bf16.msra.mxu0 0
    %1142 = vmatprep.subr.bf16.mxu0 0
    %1143 = vmatpush1.bf16.msra.mxu0 0
    %1144 = vmatprep.subr.bf16.mxu0 0
    %1145 = vmatpush1.bf16.msra.mxu0 0
    %1146 = vmatprep.subr.bf16.mxu0 0
    %1147 = vmatpush1.bf16.msra.mxu0 0
    %1148 = vmatprep.subr.bf16.mxu0 0
    %1149 = vmatpush1.bf16.msra.mxu0 0
    %1150 = vmatprep.subr.bf16.mxu0 0
    %1151 = vmatpush1.bf16.msra.mxu0 0
    %1152 = vmatprep.subr.bf16.mxu0 0
    %1153 = vmatpush1.bf16.msra.mxu0 0
    %1154 = vmatprep.subr.bf16.mxu0 0
    %1155 = vmatpush1.bf16.msra.mxu0 0
    %1156 = vmatprep.mubr.bf16.mxu0 0
    %1157 = vmatmul.mubr.bf16.gmra.mrb[0].mxu0 %v1068
    %v1158 = vpop.f32.mrb[0].mxu0
    %v1159 = vadd.f32 %v1074, %v1158
    %v1160 = vpop.f32.mrb[0].mxu0
    %v1161 = vpop.f32.mrb[0].mxu0
    %v1162 = vadd.f32 %v1074, %v1161
    %v1163 = vpop.f32.mrb[0].mxu0
    %1164 = vmatprep.mubr.bf16.mxu0 0
    %1165 = vmatmul.mubr.bf16.gmra.mrb[0].mxu0 %v1069
    %v1166 = vpop.f32.mrb[0].mxu0
    %v1167 = vadd.f32 %v1074, %v1166
    %v1168 = vpop.f32.mrb[0].mxu0
    %v1169 = vpop.f32.mrb[0].mxu0
    %v1170 = vadd.f32 %v1074, %v1169
    %v1171 = vpop.f32.mrb[0].mxu0
    %1172 = vdwg.mxu0
    %s1173 = scalar_lea.vmem %s5, 2
    %v1174 = vld [vmem:[%s1173] sm:$0x1]
    %s1175 = scalar_lea.vmem %s6, 2
    %v1176 = vld [vmem:[%s1175] sm:$0x1]
    %v1177 = vadd.f32 %v1159, %v1162
    %v1178 = vrot.slane %v1177, 4
    %v1179 = vadd.f32 %v1177, %v1178
    %v1180 = vrot.slane %v1179, 2
    %v1181 = vadd.f32 %v1179, %v1180
    %v1182 = vrot.slane %v1181, 1
    %v1183 = vadd.f32 %v1181, %v1182
    %v1184 = vadd.f32 %v1167, %v1170
    %v1185 = vrot.slane %v1184, 4
    %v1186 = vadd.f32 %v1184, %v1185
    %v1187 = vrot.slane %v1186, 2
    %v1188 = vadd.f32 %v1186, %v1187
    %v1189 = vrot.slane %v1188, 1
    %v1190 = vadd.f32 %v1188, %v1189
    %v1191 = vmul.f32 %v1183, %v297
    %v1192 = vmul.f32 %v1190, %v297
    %v1193 = vmul.f32 %v1159, %v1159
    %v1194 = vmul.f32 %v1162, %v1162
    %v1195 = vmul.f32 %v1167, %v1167
    %v1196 = vmul.f32 %v1170, %v1170
    %v1197 = vadd.f32 %v1193, %v1194
    %v1198 = vrot.slane %v1197, 4
    %v1199 = vadd.f32 %v1197, %v1198
    %v1200 = vrot.slane %v1199, 2
    %v1201 = vadd.f32 %v1199, %v1200
    %v1202 = vrot.slane %v1201, 1
    %v1203 = vadd.f32 %v1201, %v1202
    %v1204 = vadd.f32 %v1195, %v1196
    %v1205 = vrot.slane %v1204, 4
    %v1206 = vadd.f32 %v1204, %v1205
    %v1207 = vrot.slane %v1206, 2
    %v1208 = vadd.f32 %v1206, %v1207
    %v1209 = vrot.slane %v1208, 1
    %v1210 = vadd.f32 %v1208, %v1209
    %v1211 = vmul.f32 %v1203, %v297
    %v1212 = vmul.f32 %v1210, %v297
    %v1213 = vmul.f32 %v1191, %v1191
    %v1214 = vmul.f32 %v1192, %v1192
    %v1215 = vsub.f32 %v1211, %v1213
    %v1216 = vsub.f32 %v1212, %v1214
    %v1217 = vmax.f32 %v1215, 0.0
    %v1218 = vmax.f32 %v1216, 0.0
    %v1219 = vadd.f32 %v1217, 1e-05
    %v1220 = vadd.f32 %v1218, 1e-05
    %v1221 = vrsqrt.pop %v1219
    %v1222 = vrsqrt.pop %v1220
    %v1223 = vmul.f32 %v1221, %v1221
    %v1224 = vmul.f32 %v1222, %v1222
    %v1225 = vmul.f32 %v1217, %v1223
    %v1226 = vmul.f32 %v1218, %v1224
    %v1227 = vadd.f32 %v1225, %v1226
    %v1228 = vmul.f32 %v1227, %v335
    %v1229 = vadd.f32 %v1228, 1e-05
    %v1230 = vrsqrt.pop %v1229
    %v1231 = vmul.f32 %v1221, %v1230
    %v1232 = vmul.f32 %v1222, %v1230
    %v1233 = vmul.f32 %v1231, %v1174
    %v1234 = vmul.f32 %v1232, %v1174
    %v1235 = vmul.f32 %v1191, %v1233
    %v1236 = vmul.f32 %v1192, %v1234
    %v1237 = vsub.f32 %v1176, %v1235
    %v1238 = vsub.f32 %v1176, %v1236
    %v1239 = vlaneseq
    %v1240 = vshrl.u32 %v1239, 7
    %v1241 = vsub.s32 0, %v1240
    %v1242 = vrot.slane %v1233, %v1241
    %v1243 = vlaneseq
    %v1244 = vshrl.u32 %v1243, 7
    %v1245 = vsub.s32 0, %v1244
    %v1246 = vrot.slane %v1234, %v1245
    %v1247 = vmul.f32 %v1159, %v1242
    %v1248 = vmul.f32 %v1162, %v1242
    %v1249 = vmul.f32 %v1167, %v1246
    %v1250 = vmul.f32 %v1170, %v1246
    %v1253 = vlaneseq
    %v1254 = vshrl.u32 %v1253, 7
    %v1255 = vsub.s32 0, %v1254
    %v1256 = vrot.slane %v1237, %v1255
    %v1257 = vlaneseq
    %v1258 = vshrl.u32 %v1257, 7
    %v1259 = vsub.s32 0, %v1258
    %v1260 = vrot.slane %v1238, %v1259
    %v1263 = vadd.f32 %v1247, %v1256
    %v1264 = vadd.f32 %v1248, %v1256
    %v1265 = vadd.f32 %v1249, %v1260
    %v1266 = vadd.f32 %v1250, %v1260
    %v1267 = vmax.f32 %v1263, 0.0
    %v1268 = vmax.f32 %v1264, 0.0
    %v1269 = vmax.f32 %v1265, 0.0
    %v1270 = vmax.f32 %v1266, 0.0
    %s1271 = scalar_lea.vmem [#allocation4], 128
    %v1272 = vld [vmem:[%s1271] sm:$0xf]
    %v1273 = vld [vmem:[%s1271 + $0x4] sm:$0xf]
    %v1274 = vld [vmem:[%s1271 + $0x8] sm:$0xf]
    %v1275 = vld [vmem:[%s1271 + $0xc] sm:$0xf]
    %v1276 = vld [vmem:[%s1271 + $0x10] sm:$0xf]
    %v1277 = vld [vmem:[%s1271 + $0x14] sm:$0xf]
    %v1278 = vld [vmem:[%s1271 + $0x18] sm:$0xf]
    %v1279 = vld [vmem:[%s1271 + $0x1c] sm:$0xf]
    %v1280 = vld [vmem:[%s1271 + $0x20] sm:$0xf]
    %v1281 = vld [vmem:[%s1271 + $0x24] sm:$0xf]
    %v1282 = vld [vmem:[%s1271 + $0x28] sm:$0xf]
    %v1283 = vld [vmem:[%s1271 + $0x2c] sm:$0xf]
    %v1284 = vld [vmem:[%s1271 + $0x30] sm:$0xf]
    %v1285 = vld [vmem:[%s1271 + $0x34] sm:$0xf]
    %v1286 = vld [vmem:[%s1271 + $0x38] sm:$0xf]
    %v1287 = vld [vmem:[%s1271 + $0x3c] sm:$0xf]
    %s1288 = scalar_lea.vmem %s8, 2
    %v1289 = vld [vmem:[%s1288] sm:$0x1]
    %v1290 = vpack.c.bf16 %v1268, %v1267
    %v1291 = vpack.c.bf16 %v1270, %v1269
    %v1293 = vlaneseq
    %v1294 = vshrl.u32 %v1293, 7
    %v1295 = vsub.s32 0, %v1294
    %v1296 = vrot.slane %v1289, %v1295
    %v1314 = vunpack.c.l.b16 %v1272
    %v1315 = vunpack.c.l.b16 %v1273
    %v1316 = vunpack.c.l.b16 %v1274
    %v1317 = vunpack.c.l.b16 %v1275
    %v1318 = vunpack.c.l.b16 %v1276
    %v1319 = vunpack.c.l.b16 %v1277
    %v1320 = vunpack.c.l.b16 %v1278
    %v1321 = vunpack.c.l.b16 %v1279
    %v1322 = vunpack.c.l.b16 %v1280
    %v1323 = vunpack.c.l.b16 %v1281
    %v1324 = vunpack.c.l.b16 %v1282
    %v1325 = vunpack.c.l.b16 %v1283
    %v1326 = vunpack.c.l.b16 %v1284
    %v1327 = vunpack.c.l.b16 %v1285
    %v1328 = vunpack.c.l.b16 %v1286
    %v1329 = vunpack.c.l.b16 %v1287
    %v1330 = vpack.c.b16 %v1315, %v1314
    %v1331 = vpack.c.b16 %v1317, %v1316
    %v1332 = vpack.c.b16 %v1319, %v1318
    %v1333 = vpack.c.b16 %v1321, %v1320
    %v1334 = vpack.c.b16 %v1323, %v1322
    %v1335 = vpack.c.b16 %v1325, %v1324
    %v1336 = vpack.c.b16 %v1327, %v1326
    %v1337 = vpack.c.b16 %v1329, %v1328
    %1346 = vmatprep.subr.bf16.mxu0 0
    %1347 = vmatpush1.bf16.msra.mxu0 %v1330
    %1348 = vmatprep.subr.bf16.mxu0 0
    %1349 = vmatpush1.bf16.msra.mxu0 %v1331
    %1350 = vmatprep.subr.bf16.mxu0 0
    %1351 = vmatpush1.bf16.msra.mxu0 %v1332
    %1352 = vmatprep.subr.bf16.mxu0 0
    %1353 = vmatpush1.bf16.msra.mxu0 %v1333
    %1354 = vmatprep.subr.bf16.mxu0 0
    %1355 = vmatpush1.bf16.msra.mxu0 %v1334
    %1356 = vmatprep.subr.bf16.mxu0 0
    %1357 = vmatpush1.bf16.msra.mxu0 %v1335
    %1358 = vmatprep.subr.bf16.mxu0 0
    %1359 = vmatpush1.bf16.msra.mxu0 %v1336
    %1360 = vmatprep.subr.bf16.mxu0 0
    %1361 = vmatpush1.bf16.msra.mxu0 %v1337
    %1362 = vmatprep.subr.bf16.mxu0 0
    %1363 = vmatpush1.bf16.msra.mxu0 0
    %1364 = vmatprep.subr.bf16.mxu0 0
    %1365 = vmatpush1.bf16.msra.mxu0 0
    %1366 = vmatprep.subr.bf16.mxu0 0
    %1367 = vmatpush1.bf16.msra.mxu0 0
    %1368 = vmatprep.subr.bf16.mxu0 0
    %1369 = vmatpush1.bf16.msra.mxu0 0
    %1370 = vmatprep.subr.bf16.mxu0 0
    %1371 = vmatpush1.bf16.msra.mxu0 0
    %1372 = vmatprep.subr.bf16.mxu0 0
    %1373 = vmatpush1.bf16.msra.mxu0 0
    %1374 = vmatprep.subr.bf16.mxu0 0
    %1375 = vmatpush1.bf16.msra.mxu0 0
    %1376 = vmatprep.subr.bf16.mxu0 0
    %1377 = vmatpush1.bf16.msra.mxu0 0
    %1378 = vmatprep.mubr.bf16.mxu0 0
    %1379 = vmatmul.mubr.bf16.gmra.mrb[0].mxu0 %v1290
    %v1380 = vpop.f32.mrb[0].mxu0
    %v1381 = vadd.f32 %v1296, %v1380
    %v1382 = vpop.f32.mrb[0].mxu0
    %v1383 = vpop.f32.mrb[0].mxu0
    %v1384 = vadd.f32 %v1296, %v1383
    %v1385 = vpop.f32.mrb[0].mxu0
    %1386 = vmatprep.mubr.bf16.mxu0 0
    %1387 = vmatmul.mubr.bf16.gmra.mrb[0].mxu0 %v1291
    %v1388 = vpop.f32.mrb[0].mxu0
    %v1389 = vadd.f32 %v1296, %v1388
    %v1390 = vpop.f32.mrb[0].mxu0
    %v1391 = vpop.f32.mrb[0].mxu0
    %v1392 = vadd.f32 %v1296, %v1391
    %v1393 = vpop.f32.mrb[0].mxu0
    %1394 = vdwg.mxu0
    %s1395 = scalar_lea.vmem %s9, 2
    %v1396 = vld [vmem:[%s1395] sm:$0x1]
    %s1397 = scalar_lea.vmem %s10, 2
    %v1398 = vld [vmem:[%s1397] sm:$0x1]
    %v1399 = vadd.f32 %v1381, %v1384
    %v1400 = vrot.slane %v1399, 4
    %v1401 = vadd.f32 %v1399, %v1400
    %v1402 = vrot.slane %v1401, 2
    %v1403 = vadd.f32 %v1401, %v1402
    %v1404 = vrot.slane %v1403, 1
    %v1405 = vadd.f32 %v1403, %v1404
    %v1406 = vadd.f32 %v1389, %v1392
    %v1407 = vrot.slane %v1406, 4
    %v1408 = vadd.f32 %v1406, %v1407
    %v1409 = vrot.slane %v1408, 2
    %v1410 = vadd.f32 %v1408, %v1409
    %v1411 = vrot.slane %v1410, 1
    %v1412 = vadd.f32 %v1410, %v1411
    %v1413 = vmul.f32 %v1405, %v297
    %v1414 = vmul.f32 %v1412, %v297
    %v1415 = vmul.f32 %v1381, %v1381
    %v1416 = vmul.f32 %v1384, %v1384
    %v1417 = vmul.f32 %v1389, %v1389
    %v1418 = vmul.f32 %v1392, %v1392
    %v1419 = vadd.f32 %v1415, %v1416
    %v1420 = vrot.slane %v1419, 4
    %v1421 = vadd.f32 %v1419, %v1420
    %v1422 = vrot.slane %v1421, 2
    %v1423 = vadd.f32 %v1421, %v1422
    %v1424 = vrot.slane %v1423, 1
    %v1425 = vadd.f32 %v1423, %v1424
    %v1426 = vadd.f32 %v1417, %v1418
    %v1427 = vrot.slane %v1426, 4
    %v1428 = vadd.f32 %v1426, %v1427
    %v1429 = vrot.slane %v1428, 2
    %v1430 = vadd.f32 %v1428, %v1429
    %v1431 = vrot.slane %v1430, 1
    %v1432 = vadd.f32 %v1430, %v1431
    %v1433 = vmul.f32 %v1425, %v297
    %v1434 = vmul.f32 %v1432, %v297
    %v1435 = vmul.f32 %v1413, %v1413
    %v1436 = vmul.f32 %v1414, %v1414
    %v1437 = vsub.f32 %v1433, %v1435
    %v1438 = vsub.f32 %v1434, %v1436
    %v1439 = vmax.f32 %v1437, 0.0
    %v1440 = vmax.f32 %v1438, 0.0
    %v1441 = vadd.f32 %v1439, 1e-05
    %v1442 = vadd.f32 %v1440, 1e-05
    %v1443 = vrsqrt.pop %v1441
    %v1444 = vrsqrt.pop %v1442
    %v1445 = vmul.f32 %v1443, %v1443
    %v1446 = vmul.f32 %v1444, %v1444
    %v1447 = vmul.f32 %v1439, %v1445
    %v1448 = vmul.f32 %v1440, %v1446
    %v1449 = vadd.f32 %v1447, %v1448
    %v1450 = vmul.f32 %v1449, %v335
    %v1451 = vadd.f32 %v1450, 1e-05
    %v1452 = vrsqrt.pop %v1451
    %v1453 = vmul.f32 %v1443, %v1452
    %v1454 = vmul.f32 %v1444, %v1452
    %v1455 = vmul.f32 %v1453, %v1396
    %v1456 = vmul.f32 %v1454, %v1396
    %v1457 = vmul.f32 %v1413, %v1455
    %v1458 = vmul.f32 %v1414, %v1456
    %v1459 = vsub.f32 %v1398, %v1457
    %v1460 = vsub.f32 %v1398, %v1458
    %v1461 = vlaneseq
    %v1462 = vshrl.u32 %v1461, 7
    %v1463 = vsub.s32 0, %v1462
    %v1464 = vrot.slane %v1455, %v1463
    %v1465 = vlaneseq
    %v1466 = vshrl.u32 %v1465, 7
    %v1467 = vsub.s32 0, %v1466
    %v1468 = vrot.slane %v1456, %v1467
    %v1469 = vmul.f32 %v1381, %v1464
    %v1470 = vmul.f32 %v1384, %v1464
    %v1471 = vmul.f32 %v1389, %v1468
    %v1472 = vmul.f32 %v1392, %v1468
    %v1475 = vlaneseq
    %v1476 = vshrl.u32 %v1475, 7
    %v1477 = vsub.s32 0, %v1476
    %v1478 = vrot.slane %v1459, %v1477
    %v1479 = vlaneseq
    %v1480 = vshrl.u32 %v1479, 7
    %v1481 = vsub.s32 0, %v1480
    %v1482 = vrot.slane %v1460, %v1481
    %v1485 = vadd.f32 %v1469, %v1478
    %v1486 = vadd.f32 %v1470, %v1478
    %v1487 = vadd.f32 %v1471, %v1482
    %v1488 = vadd.f32 %v1472, %v1482
    %v1489 = vmax.f32 %v1485, 0.0
    %v1490 = vmax.f32 %v1486, 0.0
    %v1491 = vmax.f32 %v1487, 0.0
    %v1492 = vmax.f32 %v1488, 0.0
    %v1493 = vadd.f32 %v1489, %v1045
    %v1494 = vadd.f32 %v1490, %v1046
    %v1495 = vadd.f32 %v1491, %v1047
    %v1496 = vadd.f32 %v1492, %v1048
    %s1497 = scalar_lea.vmem [#allocation2], 192
    %v1498 = vld [vmem:[%s1497] sm:$0xf]
    %v1499 = vld [vmem:[%s1497 + $0x4] sm:$0xf]
    %v1500 = vld [vmem:[%s1497 + $0x8] sm:$0xf]
    %v1501 = vld [vmem:[%s1497 + $0xc] sm:$0xf]
    %v1502 = vld [vmem:[%s1497 + $0x10] sm:$0xf]
    %v1503 = vld [vmem:[%s1497 + $0x14] sm:$0xf]
    %v1504 = vld [vmem:[%s1497 + $0x18] sm:$0xf]
    %v1505 = vld [vmem:[%s1497 + $0x1c] sm:$0xf]
    %v1506 = vld [vmem:[%s1497 + $0x20] sm:$0xf]
    %v1507 = vld [vmem:[%s1497 + $0x24] sm:$0xf]
    %v1508 = vld [vmem:[%s1497 + $0x28] sm:$0xf]
    %v1509 = vld [vmem:[%s1497 + $0x2c] sm:$0xf]
    %v1510 = vld [vmem:[%s1497 + $0x30] sm:$0xf]
    %v1511 = vld [vmem:[%s1497 + $0x34] sm:$0xf]
    %v1512 = vld [vmem:[%s1497 + $0x38] sm:$0xf]
    %v1513 = vld [vmem:[%s1497 + $0x3c] sm:$0xf]
    %s1514 = scalar_lea.vmem %s4, 3
    %v1515 = vld [vmem:[%s1514] sm:$0x1]
    %v1516 = vpack.c.bf16 %v1494, %v1493
    %v1517 = vpack.c.bf16 %v1496, %v1495
    %v1519 = vlaneseq
    %v1520 = vshrl.u32 %v1519, 7
    %v1521 = vsub.s32 0, %v1520
    %v1522 = vrot.slane %v1515, %v1521
    %v1540 = vunpack.c.l.b16 %v1498
    %v1541 = vunpack.c.l.b16 %v1499
    %v1542 = vunpack.c.l.b16 %v1500
    %v1543 = vunpack.c.l.b16 %v1501
    %v1544 = vunpack.c.l.b16 %v1502
    %v1545 = vunpack.c.l.b16 %v1503
    %v1546 = vunpack.c.l.b16 %v1504
    %v1547 = vunpack.c.l.b16 %v1505
    %v1548 = vunpack.c.l.b16 %v1506
    %v1549 = vunpack.c.l.b16 %v1507
    %v1550 = vunpack.c.l.b16 %v1508
    %v1551 = vunpack.c.l.b16 %v1509
    %v1552 = vunpack.c.l.b16 %v1510
    %v1553 = vunpack.c.l.b16 %v1511
    %v1554 = vunpack.c.l.b16 %v1512
    %v1555 = vunpack.c.l.b16 %v1513
    %v1556 = vpack.c.b16 %v1541, %v1540
    %v1557 = vpack.c.b16 %v1543, %v1542
    %v1558 = vpack.c.b16 %v1545, %v1544
    %v1559 = vpack.c.b16 %v1547, %v1546
    %v1560 = vpack.c.b16 %v1549, %v1548
    %v1561 = vpack.c.b16 %v1551, %v1550
    %v1562 = vpack.c.b16 %v1553, %v1552
    %v1563 = vpack.c.b16 %v1555, %v1554
    %1572 = vmatprep.subr.bf16.mxu0 0
    %1573 = vmatpush1.bf16.msra.mxu0 %v1556
    %1574 = vmatprep.subr.bf16.mxu0 0
    %1575 = vmatpush1.bf16.msra.mxu0 %v1557
    %1576 = vmatprep.subr.bf16.mxu0 0
    %1577 = vmatpush1.bf16.msra.mxu0 %v1558
    %1578 = vmatprep.subr.bf16.mxu0 0
    %1579 = vmatpush1.bf16.msra.mxu0 %v1559
    %1580 = vmatprep.subr.bf16.mxu0 0
    %1581 = vmatpush1.bf16.msra.mxu0 %v1560
    %1582 = vmatprep.subr.bf16.mxu0 0
    %1583 = vmatpush1.bf16.msra.mxu0 %v1561
    %1584 = vmatprep.subr.bf16.mxu0 0
    %1585 = vmatpush1.bf16.msra.mxu0 %v1562
    %1586 = vmatprep.subr.bf16.mxu0 0
    %1587 = vmatpush1.bf16.msra.mxu0 %v1563
    %1588 = vmatprep.subr.bf16.mxu0 0
    %1589 = vmatpush1.bf16.msra.mxu0 0
    %1590 = vmatprep.subr.bf16.mxu0 0
    %1591 = vmatpush1.bf16.msra.mxu0 0
    %1592 = vmatprep.subr.bf16.mxu0 0
    %1593 = vmatpush1.bf16.msra.mxu0 0
    %1594 = vmatprep.subr.bf16.mxu0 0
    %1595 = vmatpush1.bf16.msra.mxu0 0
    %1596 = vmatprep.subr.bf16.mxu0 0
    %1597 = vmatpush1.bf16.msra.mxu0 0
    %1598 = vmatprep.subr.bf16.mxu0 0
    %1599 = vmatpush1.bf16.msra.mxu0 0
    %1600 = vmatprep.subr.bf16.mxu0 0
    %1601 = vmatpush1.bf16.msra.mxu0 0
    %1602 = vmatprep.subr.bf16.mxu0 0
    %1603 = vmatpush1.bf16.msra.mxu0 0
    %1604 = vmatprep.mubr.bf16.mxu0 0
    %1605 = vmatmul.mubr.bf16.gmra.mrb[0].mxu0 %v1516
    %v1606 = vpop.f32.mrb[0].mxu0
    %v1607 = vadd.f32 %v1522, %v1606
    %v1608 = vpop.f32.mrb[0].mxu0
    %v1609 = vpop.f32.mrb[0].mxu0
    %v1610 = vadd.f32 %v1522, %v1609
    %v1611 = vpop.f32.mrb[0].mxu0
    %1612 = vmatprep.mubr.bf16.mxu0 0
    %1613 = vmatmul.mubr.bf16.gmra.mrb[0].mxu0 %v1517
    %v1614 = vpop.f32.mrb[0].mxu0
    %v1615 = vadd.f32 %v1522, %v1614
    %v1616 = vpop.f32.mrb[0].mxu0
    %v1617 = vpop.f32.mrb[0].mxu0
    %v1618 = vadd.f32 %v1522, %v1617
    %v1619 = vpop.f32.mrb[0].mxu0
    %1620 = vdwg.mxu0
    %s1621 = scalar_lea.vmem %s5, 3
    %v1622 = vld [vmem:[%s1621] sm:$0x1]
    %s1623 = scalar_lea.vmem %s6, 3
    %v1624 = vld [vmem:[%s1623] sm:$0x1]
    %v1625 = vadd.f32 %v1607, %v1610
    %v1626 = vrot.slane %v1625, 4
    %v1627 = vadd.f32 %v1625, %v1626
    %v1628 = vrot.slane %v1627, 2
    %v1629 = vadd.f32 %v1627, %v1628
    %v1630 = vrot.slane %v1629, 1
    %v1631 = vadd.f32 %v1629, %v1630
    %v1632 = vadd.f32 %v1615, %v1618
    %v1633 = vrot.slane %v1632, 4
    %v1634 = vadd.f32 %v1632, %v1633
    %v1635 = vrot.slane %v1634, 2
    %v1636 = vadd.f32 %v1634, %v1635
    %v1637 = vrot.slane %v1636, 1
    %v1638 = vadd.f32 %v1636, %v1637
    %v1639 = vmul.f32 %v1631, %v297
    %v1640 = vmul.f32 %v1638, %v297
    %v1641 = vmul.f32 %v1607, %v1607
    %v1642 = vmul.f32 %v1610, %v1610
    %v1643 = vmul.f32 %v1615, %v1615
    %v1644 = vmul.f32 %v1618, %v1618
    %v1645 = vadd.f32 %v1641, %v1642
    %v1646 = vrot.slane %v1645, 4
    %v1647 = vadd.f32 %v1645, %v1646
    %v1648 = vrot.slane %v1647, 2
    %v1649 = vadd.f32 %v1647, %v1648
    %v1650 = vrot.slane %v1649, 1
    %v1651 = vadd.f32 %v1649, %v1650
    %v1652 = vadd.f32 %v1643, %v1644
    %v1653 = vrot.slane %v1652, 4
    %v1654 = vadd.f32 %v1652, %v1653
    %v1655 = vrot.slane %v1654, 2
    %v1656 = vadd.f32 %v1654, %v1655
    %v1657 = vrot.slane %v1656, 1
    %v1658 = vadd.f32 %v1656, %v1657
    %v1659 = vmul.f32 %v1651, %v297
    %v1660 = vmul.f32 %v1658, %v297
    %v1661 = vmul.f32 %v1639, %v1639
    %v1662 = vmul.f32 %v1640, %v1640
    %v1663 = vsub.f32 %v1659, %v1661
    %v1664 = vsub.f32 %v1660, %v1662
    %v1665 = vmax.f32 %v1663, 0.0
    %v1666 = vmax.f32 %v1664, 0.0
    %v1667 = vadd.f32 %v1665, 1e-05
    %v1668 = vadd.f32 %v1666, 1e-05
    %v1669 = vrsqrt.pop %v1667
    %v1670 = vrsqrt.pop %v1668
    %v1671 = vmul.f32 %v1669, %v1669
    %v1672 = vmul.f32 %v1670, %v1670
    %v1673 = vmul.f32 %v1665, %v1671
    %v1674 = vmul.f32 %v1666, %v1672
    %v1675 = vadd.f32 %v1673, %v1674
    %v1676 = vmul.f32 %v1675, %v335
    %v1677 = vadd.f32 %v1676, 1e-05
    %v1678 = vrsqrt.pop %v1677
    %v1679 = vmul.f32 %v1669, %v1678
    %v1680 = vmul.f32 %v1670, %v1678
    %v1681 = vmul.f32 %v1679, %v1622
    %v1682 = vmul.f32 %v1680, %v1622
    %v1683 = vmul.f32 %v1639, %v1681
    %v1684 = vmul.f32 %v1640, %v1682
    %v1685 = vsub.f32 %v1624, %v1683
    %v1686 = vsub.f32 %v1624, %v1684
    %v1687 = vlaneseq
    %v1688 = vshrl.u32 %v1687, 7
    %v1689 = vsub.s32 0, %v1688
    %v1690 = vrot.slane %v1681, %v1689
    %v1691 = vlaneseq
    %v1692 = vshrl.u32 %v1691, 7
    %v1693 = vsub.s32 0, %v1692
    %v1694 = vrot.slane %v1682, %v1693
    %v1695 = vmul.f32 %v1607, %v1690
    %v1696 = vmul.f32 %v1610, %v1690
    %v1697 = vmul.f32 %v1615, %v1694
    %v1698 = vmul.f32 %v1618, %v1694
    %v1701 = vlaneseq
    %v1702 = vshrl.u32 %v1701, 7
    %v1703 = vsub.s32 0, %v1702
    %v1704 = vrot.slane %v1685, %v1703
    %v1705 = vlaneseq
    %v1706 = vshrl.u32 %v1705, 7
    %v1707 = vsub.s32 0, %v1706
    %v1708 = vrot.slane %v1686, %v1707
    %v1711 = vadd.f32 %v1695, %v1704
    %v1712 = vadd.f32 %v1696, %v1704
    %v1713 = vadd.f32 %v1697, %v1708
    %v1714 = vadd.f32 %v1698, %v1708
    %v1715 = vmax.f32 %v1711, 0.0
    %v1716 = vmax.f32 %v1712, 0.0
    %v1717 = vmax.f32 %v1713, 0.0
    %v1718 = vmax.f32 %v1714, 0.0
    %s1719 = scalar_lea.vmem [#allocation4], 192
    %v1720 = vld [vmem:[%s1719] sm:$0xf]
    %v1721 = vld [vmem:[%s1719 + $0x4] sm:$0xf]
    %v1722 = vld [vmem:[%s1719 + $0x8] sm:$0xf]
    %v1723 = vld [vmem:[%s1719 + $0xc] sm:$0xf]
    %v1724 = vld [vmem:[%s1719 + $0x10] sm:$0xf]
    %v1725 = vld [vmem:[%s1719 + $0x14] sm:$0xf]
    %v1726 = vld [vmem:[%s1719 + $0x18] sm:$0xf]
    %v1727 = vld [vmem:[%s1719 + $0x1c] sm:$0xf]
    %v1728 = vld [vmem:[%s1719 + $0x20] sm:$0xf]
    %v1729 = vld [vmem:[%s1719 + $0x24] sm:$0xf]
    %v1730 = vld [vmem:[%s1719 + $0x28] sm:$0xf]
    %v1731 = vld [vmem:[%s1719 + $0x2c] sm:$0xf]
    %v1732 = vld [vmem:[%s1719 + $0x30] sm:$0xf]
    %v1733 = vld [vmem:[%s1719 + $0x34] sm:$0xf]
    %v1734 = vld [vmem:[%s1719 + $0x38] sm:$0xf]
    %v1735 = vld [vmem:[%s1719 + $0x3c] sm:$0xf]
    %s1736 = scalar_lea.vmem %s8, 3
    %v1737 = vld [vmem:[%s1736] sm:$0x1]
    %v1738 = vpack.c.bf16 %v1716, %v1715
    %v1739 = vpack.c.bf16 %v1718, %v1717
    %v1741 = vlaneseq
    %v1742 = vshrl.u32 %v1741, 7
    %v1743 = vsub.s32 0, %v1742
    %v1744 = vrot.slane %v1737, %v1743
    %v1762 = vunpack.c.l.b16 %v1720
    %v1763 = vunpack.c.l.b16 %v1721
    %v1764 = vunpack.c.l.b16 %v1722
    %v1765 = vunpack.c.l.b16 %v1723
    %v1766 = vunpack.c.l.b16 %v1724
    %v1767 = vunpack.c.l.b16 %v1725
    %v1768 = vunpack.c.l.b16 %v1726
    %v1769 = vunpack.c.l.b16 %v1727
    %v1770 = vunpack.c.l.b16 %v1728
    %v1771 = vunpack.c.l.b16 %v1729
    %v1772 = vunpack.c.l.b16 %v1730
    %v1773 = vunpack.c.l.b16 %v1731
    %v1774 = vunpack.c.l.b16 %v1732
    %v1775 = vunpack.c.l.b16 %v1733
    %v1776 = vunpack.c.l.b16 %v1734
    %v1777 = vunpack.c.l.b16 %v1735
    %v1778 = vpack.c.b16 %v1763, %v1762
    %v1779 = vpack.c.b16 %v1765, %v1764
    %v1780 = vpack.c.b16 %v1767, %v1766
    %v1781 = vpack.c.b16 %v1769, %v1768
    %v1782 = vpack.c.b16 %v1771, %v1770
    %v1783 = vpack.c.b16 %v1773, %v1772
    %v1784 = vpack.c.b16 %v1775, %v1774
    %v1785 = vpack.c.b16 %v1777, %v1776
    %1794 = vmatprep.subr.bf16.mxu0 0
    %1795 = vmatpush1.bf16.msra.mxu0 %v1778
    %1796 = vmatprep.subr.bf16.mxu0 0
    %1797 = vmatpush1.bf16.msra.mxu0 %v1779
    %1798 = vmatprep.subr.bf16.mxu0 0
    %1799 = vmatpush1.bf16.msra.mxu0 %v1780
    %1800 = vmatprep.subr.bf16.mxu0 0
    %1801 = vmatpush1.bf16.msra.mxu0 %v1781
    %1802 = vmatprep.subr.bf16.mxu0 0
    %1803 = vmatpush1.bf16.msra.mxu0 %v1782
    %1804 = vmatprep.subr.bf16.mxu0 0
    %1805 = vmatpush1.bf16.msra.mxu0 %v1783
    %1806 = vmatprep.subr.bf16.mxu0 0
    %1807 = vmatpush1.bf16.msra.mxu0 %v1784
    %1808 = vmatprep.subr.bf16.mxu0 0
    %1809 = vmatpush1.bf16.msra.mxu0 %v1785
    %1810 = vmatprep.subr.bf16.mxu0 0
    %1811 = vmatpush1.bf16.msra.mxu0 0
    %1812 = vmatprep.subr.bf16.mxu0 0
    %1813 = vmatpush1.bf16.msra.mxu0 0
    %1814 = vmatprep.subr.bf16.mxu0 0
    %1815 = vmatpush1.bf16.msra.mxu0 0
    %1816 = vmatprep.subr.bf16.mxu0 0
    %1817 = vmatpush1.bf16.msra.mxu0 0
    %1818 = vmatprep.subr.bf16.mxu0 0
    %1819 = vmatpush1.bf16.msra.mxu0 0
    %1820 = vmatprep.subr.bf16.mxu0 0
    %1821 = vmatpush1.bf16.msra.mxu0 0
    %1822 = vmatprep.subr.bf16.mxu0 0
    %1823 = vmatpush1.bf16.msra.mxu0 0
    %1824 = vmatprep.subr.bf16.mxu0 0
    %1825 = vmatpush1.bf16.msra.mxu0 0
    %1826 = vmatprep.mubr.bf16.mxu0 0
    %1827 = vmatmul.mubr.bf16.gmra.mrb[0].mxu0 %v1738
    %v1828 = vpop.f32.mrb[0].mxu0
    %v1829 = vadd.f32 %v1744, %v1828
    %v1830 = vpop.f32.mrb[0].mxu0
    %v1831 = vpop.f32.mrb[0].mxu0
    %v1832 = vadd.f32 %v1744, %v1831
    %v1833 = vpop.f32.mrb[0].mxu0
    %1834 = vmatprep.mubr.bf16.mxu0 0
    %1835 = vmatmul.mubr.bf16.gmra.mrb[0].mxu0 %v1739
    %v1836 = vpop.f32.mrb[0].mxu0
    %v1837 = vadd.f32 %v1744, %v1836
    %v1838 = vpop.f32.mrb[0].mxu0
    %v1839 = vpop.f32.mrb[0].mxu0
    %v1840 = vadd.f32 %v1744, %v1839
    %v1841 = vpop.f32.mrb[0].mxu0
    %1842 = vdwg.mxu0
    %s1843 = scalar_lea.vmem %s9, 3
    %v1844 = vld [vmem:[%s1843] sm:$0x1]
    %s1845 = scalar_lea.vmem %s10, 3
    %v1846 = vld [vmem:[%s1845] sm:$0x1]
    %v1847 = vadd.f32 %v1829, %v1832
    %v1848 = vrot.slane %v1847, 4
    %v1849 = vadd.f32 %v1847, %v1848
    %v1850 = vrot.slane %v1849, 2
    %v1851 = vadd.f32 %v1849, %v1850
    %v1852 = vrot.slane %v1851, 1
    %v1853 = vadd.f32 %v1851, %v1852
    %v1854 = vadd.f32 %v1837, %v1840
    %v1855 = vrot.slane %v1854, 4
    %v1856 = vadd.f32 %v1854, %v1855
    %v1857 = vrot.slane %v1856, 2
    %v1858 = vadd.f32 %v1856, %v1857
    %v1859 = vrot.slane %v1858, 1
    %v1860 = vadd.f32 %v1858, %v1859
    %v1861 = vmul.f32 %v1853, %v297
    %v1862 = vmul.f32 %v1860, %v297
    %v1863 = vmul.f32 %v1829, %v1829
    %v1864 = vmul.f32 %v1832, %v1832
    %v1865 = vmul.f32 %v1837, %v1837
    %v1866 = vmul.f32 %v1840, %v1840
    %v1867 = vadd.f32 %v1863, %v1864
    %v1868 = vrot.slane %v1867, 4
    %v1869 = vadd.f32 %v1867, %v1868
    %v1870 = vrot.slane %v1869, 2
    %v1871 = vadd.f32 %v1869, %v1870
    %v1872 = vrot.slane %v1871, 1
    %v1873 = vadd.f32 %v1871, %v1872
    %v1874 = vadd.f32 %v1865, %v1866
    %v1875 = vrot.slane %v1874, 4
    %v1876 = vadd.f32 %v1874, %v1875
    %v1877 = vrot.slane %v1876, 2
    %v1878 = vadd.f32 %v1876, %v1877
    %v1879 = vrot.slane %v1878, 1
    %v1880 = vadd.f32 %v1878, %v1879
    %v1881 = vmul.f32 %v1873, %v297
    %v1882 = vmul.f32 %v1880, %v297
    %v1883 = vmul.f32 %v1861, %v1861
    %v1884 = vmul.f32 %v1862, %v1862
    %v1885 = vsub.f32 %v1881, %v1883
    %v1886 = vsub.f32 %v1882, %v1884
    %v1887 = vmax.f32 %v1885, 0.0
    %v1888 = vmax.f32 %v1886, 0.0
    %v1889 = vadd.f32 %v1887, 1e-05
    %v1890 = vadd.f32 %v1888, 1e-05
    %v1891 = vrsqrt.pop %v1889
    %v1892 = vrsqrt.pop %v1890
    %v1893 = vmul.f32 %v1891, %v1891
    %v1894 = vmul.f32 %v1892, %v1892
    %v1895 = vmul.f32 %v1887, %v1893
    %v1896 = vmul.f32 %v1888, %v1894
    %v1897 = vadd.f32 %v1895, %v1896
    %v1898 = vmul.f32 %v1897, %v335
    %v1899 = vadd.f32 %v1898, 1e-05
    %v1900 = vrsqrt.pop %v1899
    %v1901 = vmul.f32 %v1891, %v1900
    %v1902 = vmul.f32 %v1892, %v1900
    %v1903 = vmul.f32 %v1901, %v1844
    %v1904 = vmul.f32 %v1902, %v1844
    %v1905 = vmul.f32 %v1861, %v1903
    %v1906 = vmul.f32 %v1862, %v1904
    %v1907 = vsub.f32 %v1846, %v1905
    %v1908 = vsub.f32 %v1846, %v1906
    %v1909 = vlaneseq
    %v1910 = vshrl.u32 %v1909, 7
    %v1911 = vsub.s32 0, %v1910
    %v1912 = vrot.slane %v1903, %v1911
    %v1913 = vlaneseq
    %v1914 = vshrl.u32 %v1913, 7
    %v1915 = vsub.s32 0, %v1914
    %v1916 = vrot.slane %v1904, %v1915
    %v1917 = vmul.f32 %v1829, %v1912
    %v1918 = vmul.f32 %v1832, %v1912
    %v1919 = vmul.f32 %v1837, %v1916
    %v1920 = vmul.f32 %v1840, %v1916
    %v1923 = vlaneseq
    %v1924 = vshrl.u32 %v1923, 7
    %v1925 = vsub.s32 0, %v1924
    %v1926 = vrot.slane %v1907, %v1925
    %v1927 = vlaneseq
    %v1928 = vshrl.u32 %v1927, 7
    %v1929 = vsub.s32 0, %v1928
    %v1930 = vrot.slane %v1908, %v1929
    %v1933 = vadd.f32 %v1917, %v1926
    %v1934 = vadd.f32 %v1918, %v1926
    %v1935 = vadd.f32 %v1919, %v1930
    %v1936 = vadd.f32 %v1920, %v1930
    %v1937 = vmax.f32 %v1933, 0.0
    %v1938 = vmax.f32 %v1934, 0.0
    %v1939 = vmax.f32 %v1935, 0.0
    %v1940 = vmax.f32 %v1936, 0.0
    %v1941 = vadd.f32 %v1937, %v1493
    %v1942 = vadd.f32 %v1938, %v1494
    %v1943 = vadd.f32 %v1939, %v1495
    %v1944 = vadd.f32 %v1940, %v1496
    %s1945 = scalar_lea.vmem [#allocation2], 256
    %v1946 = vld [vmem:[%s1945] sm:$0xf]
    %v1947 = vld [vmem:[%s1945 + $0x4] sm:$0xf]
    %v1948 = vld [vmem:[%s1945 + $0x8] sm:$0xf]
    %v1949 = vld [vmem:[%s1945 + $0xc] sm:$0xf]
    %v1950 = vld [vmem:[%s1945 + $0x10] sm:$0xf]
    %v1951 = vld [vmem:[%s1945 + $0x14] sm:$0xf]
    %v1952 = vld [vmem:[%s1945 + $0x18] sm:$0xf]
    %v1953 = vld [vmem:[%s1945 + $0x1c] sm:$0xf]
    %v1954 = vld [vmem:[%s1945 + $0x20] sm:$0xf]
    %v1955 = vld [vmem:[%s1945 + $0x24] sm:$0xf]
    %v1956 = vld [vmem:[%s1945 + $0x28] sm:$0xf]
    %v1957 = vld [vmem:[%s1945 + $0x2c] sm:$0xf]
    %v1958 = vld [vmem:[%s1945 + $0x30] sm:$0xf]
    %v1959 = vld [vmem:[%s1945 + $0x34] sm:$0xf]
    %v1960 = vld [vmem:[%s1945 + $0x38] sm:$0xf]
    %v1961 = vld [vmem:[%s1945 + $0x3c] sm:$0xf]
    %s1962 = scalar_lea.vmem %s4, 4
    %v1963 = vld [vmem:[%s1962] sm:$0x1]
    %v1964 = vpack.c.bf16 %v1942, %v1941
    %v1965 = vpack.c.bf16 %v1944, %v1943
    %v1967 = vlaneseq
    %v1968 = vshrl.u32 %v1967, 7
    %v1969 = vsub.s32 0, %v1968
    %v1970 = vrot.slane %v1963, %v1969
    %v1988 = vunpack.c.l.b16 %v1946
    %v1989 = vunpack.c.l.b16 %v1947
    %v1990 = vunpack.c.l.b16 %v1948
    %v1991 = vunpack.c.l.b16 %v1949
    %v1992 = vunpack.c.l.b16 %v1950
    %v1993 = vunpack.c.l.b16 %v1951
    %v1994 = vunpack.c.l.b16 %v1952
    %v1995 = vunpack.c.l.b16 %v1953
    %v1996 = vunpack.c.l.b16 %v1954
    %v1997 = vunpack.c.l.b16 %v1955
    %v1998 = vunpack.c.l.b16 %v1956
    %v1999 = vunpack.c.l.b16 %v1957
    %v2000 = vunpack.c.l.b16 %v1958
    %v2001 = vunpack.c.l.b16 %v1959
    %v2002 = vunpack.c.l.b16 %v1960
    %v2003 = vunpack.c.l.b16 %v1961
    %v2004 = vpack.c.b16 %v1989, %v1988
    %v2005 = vpack.c.b16 %v1991, %v1990
    %v2006 = vpack.c.b16 %v1993, %v1992
    %v2007 = vpack.c.b16 %v1995, %v1994
    %v2008 = vpack.c.b16 %v1997, %v1996
    %v2009 = vpack.c.b16 %v1999, %v1998
    %v2010 = vpack.c.b16 %v2001, %v2000
    %v2011 = vpack.c.b16 %v2003, %v2002
    %2020 = vmatprep.subr.bf16.mxu0 0
    %2021 = vmatpush1.bf16.msra.mxu0 %v2004
    %2022 = vmatprep.subr.bf16.mxu0 0
    %2023 = vmatpush1.bf16.msra.mxu0 %v2005
    %2024 = vmatprep.subr.bf16.mxu0 0
    %2025 = vmatpush1.bf16.msra.mxu0 %v2006
    %2026 = vmatprep.subr.bf16.mxu0 0
    %2027 = vmatpush1.bf16.msra.mxu0 %v2007
    %2028 = vmatprep.subr.bf16.mxu0 0
    %2029 = vmatpush1.bf16.msra.mxu0 %v2008
    %2030 = vmatprep.subr.bf16.mxu0 0
    %2031 = vmatpush1.bf16.msra.mxu0 %v2009
    %2032 = vmatprep.subr.bf16.mxu0 0
    %2033 = vmatpush1.bf16.msra.mxu0 %v2010
    %2034 = vmatprep.subr.bf16.mxu0 0
    %2035 = vmatpush1.bf16.msra.mxu0 %v2011
    %2036 = vmatprep.subr.bf16.mxu0 0
    %2037 = vmatpush1.bf16.msra.mxu0 0
    %2038 = vmatprep.subr.bf16.mxu0 0
    %2039 = vmatpush1.bf16.msra.mxu0 0
    %2040 = vmatprep.subr.bf16.mxu0 0
    %2041 = vmatpush1.bf16.msra.mxu0 0
    %2042 = vmatprep.subr.bf16.mxu0 0
    %2043 = vmatpush1.bf16.msra.mxu0 0
    %2044 = vmatprep.subr.bf16.mxu0 0
    %2045 = vmatpush1.bf16.msra.mxu0 0
    %2046 = vmatprep.subr.bf16.mxu0 0
    %2047 = vmatpush1.bf16.msra.mxu0 0
    %2048 = vmatprep.subr.bf16.mxu0 0
    %2049 = vmatpush1.bf16.msra.mxu0 0
    %2050 = vmatprep.subr.bf16.mxu0 0
    %2051 = vmatpush1.bf16.msra.mxu0 0
    %2052 = vmatprep.mubr.bf16.mxu0 0
    %2053 = vmatmul.mubr.bf16.gmra.mrb[0].mxu0 %v1964
    %v2054 = vpop.f32.mrb[0].mxu0
    %v2055 = vadd.f32 %v1970, %v2054
    %v2056 = vpop.f32.mrb[0].mxu0
    %v2057 = vpop.f32.mrb[0].mxu0
    %v2058 = vadd.f32 %v1970, %v2057
    %v2059 = vpop.f32.mrb[0].mxu0
    %2060 = vmatprep.mubr.bf16.mxu0 0
    %2061 = vmatmul.mubr.bf16.gmra.mrb[0].mxu0 %v1965
    %v2062 = vpop.f32.mrb[0].mxu0
    %v2063 = vadd.f32 %v1970, %v2062
    %v2064 = vpop.f32.mrb[0].mxu0
    %v2065 = vpop.f32.mrb[0].mxu0
    %v2066 = vadd.f32 %v1970, %v2065
    %v2067 = vpop.f32.mrb[0].mxu0
    %2068 = vdwg.mxu0
    %s2069 = scalar_lea.vmem %s5, 4
    %v2070 = vld [vmem:[%s2069] sm:$0x1]
    %s2071 = scalar_lea.vmem %s6, 4
    %v2072 = vld [vmem:[%s2071] sm:$0x1]
    %v2073 = vadd.f32 %v2055, %v2058
    %v2074 = vrot.slane %v2073, 4
    %v2075 = vadd.f32 %v2073, %v2074
    %v2076 = vrot.slane %v2075, 2
    %v2077 = vadd.f32 %v2075, %v2076
    %v2078 = vrot.slane %v2077, 1
    %v2079 = vadd.f32 %v2077, %v2078
    %v2080 = vadd.f32 %v2063, %v2066
    %v2081 = vrot.slane %v2080, 4
    %v2082 = vadd.f32 %v2080, %v2081
    %v2083 = vrot.slane %v2082, 2
    %v2084 = vadd.f32 %v2082, %v2083
    %v2085 = vrot.slane %v2084, 1
    %v2086 = vadd.f32 %v2084, %v2085
    %v2087 = vmul.f32 %v2079, %v297
    %v2088 = vmul.f32 %v2086, %v297
    %v2089 = vmul.f32 %v2055, %v2055
    %v2090 = vmul.f32 %v2058, %v2058
    %v2091 = vmul.f32 %v2063, %v2063
    %v2092 = vmul.f32 %v2066, %v2066
    %v2093 = vadd.f32 %v2089, %v2090
    %v2094 = vrot.slane %v2093, 4
    %v2095 = vadd.f32 %v2093, %v2094
    %v2096 = vrot.slane %v2095, 2
    %v2097 = vadd.f32 %v2095, %v2096
    %v2098 = vrot.slane %v2097, 1
    %v2099 = vadd.f32 %v2097, %v2098
    %v2100 = vadd.f32 %v2091, %v2092
    %v2101 = vrot.slane %v2100, 4
    %v2102 = vadd.f32 %v2100, %v2101
    %v2103 = vrot.slane %v2102, 2
    %v2104 = vadd.f32 %v2102, %v2103
    %v2105 = vrot.slane %v2104, 1
    %v2106 = vadd.f32 %v2104, %v2105
    %v2107 = vmul.f32 %v2099, %v297
    %v2108 = vmul.f32 %v2106, %v297
    %v2109 = vmul.f32 %v2087, %v2087
    %v2110 = vmul.f32 %v2088, %v2088
    %v2111 = vsub.f32 %v2107, %v2109
    %v2112 = vsub.f32 %v2108, %v2110
    %v2113 = vmax.f32 %v2111, 0.0
    %v2114 = vmax.f32 %v2112, 0.0
    %v2115 = vadd.f32 %v2113, 1e-05
    %v2116 = vadd.f32 %v2114, 1e-05
    %v2117 = vrsqrt.pop %v2115
    %v2118 = vrsqrt.pop %v2116
    %v2119 = vmul.f32 %v2117, %v2117
    %v2120 = vmul.f32 %v2118, %v2118
    %v2121 = vmul.f32 %v2113, %v2119
    %v2122 = vmul.f32 %v2114, %v2120
    %v2123 = vadd.f32 %v2121, %v2122
    %v2124 = vmul.f32 %v2123, %v335
    %v2125 = vadd.f32 %v2124, 1e-05
    %v2126 = vrsqrt.pop %v2125
    %v2127 = vmul.f32 %v2117, %v2126
    %v2128 = vmul.f32 %v2118, %v2126
    %v2129 = vmul.f32 %v2127, %v2070
    %v2130 = vmul.f32 %v2128, %v2070
    %v2131 = vmul.f32 %v2087, %v2129
    %v2132 = vmul.f32 %v2088, %v2130
    %v2133 = vsub.f32 %v2072, %v2131
    %v2134 = vsub.f32 %v2072, %v2132
    %v2135 = vlaneseq
    %v2136 = vshrl.u32 %v2135, 7
    %v2137 = vsub.s32 0, %v2136
    %v2138 = vrot.slane %v2129, %v2137
    %v2139 = vlaneseq
    %v2140 = vshrl.u32 %v2139, 7
    %v2141 = vsub.s32 0, %v2140
    %v2142 = vrot.slane %v2130, %v2141
    %v2143 = vmul.f32 %v2055, %v2138
    %v2144 = vmul.f32 %v2058, %v2138
    %v2145 = vmul.f32 %v2063, %v2142
    %v2146 = vmul.f32 %v2066, %v2142
    %v2149 = vlaneseq
    %v2150 = vshrl.u32 %v2149, 7
    %v2151 = vsub.s32 0, %v2150
    %v2152 = vrot.slane %v2133, %v2151
    %v2153 = vlaneseq
    %v2154 = vshrl.u32 %v2153, 7
    %v2155 = vsub.s32 0, %v2154
    %v2156 = vrot.slane %v2134, %v2155
    %v2159 = vadd.f32 %v2143, %v2152
    %v2160 = vadd.f32 %v2144, %v2152
    %v2161 = vadd.f32 %v2145, %v2156
    %v2162 = vadd.f32 %v2146, %v2156
    %v2163 = vmax.f32 %v2159, 0.0
    %v2164 = vmax.f32 %v2160, 0.0
    %v2165 = vmax.f32 %v2161, 0.0
    %v2166 = vmax.f32 %v2162, 0.0
    %s2167 = scalar_lea.vmem [#allocation4], 256
    %v2168 = vld [vmem:[%s2167] sm:$0xf]
    %v2169 = vld [vmem:[%s2167 + $0x4] sm:$0xf]
    %v2170 = vld [vmem:[%s2167 + $0x8] sm:$0xf]
    %v2171 = vld [vmem:[%s2167 + $0xc] sm:$0xf]
    %v2172 = vld [vmem:[%s2167 + $0x10] sm:$0xf]
    %v2173 = vld [vmem:[%s2167 + $0x14] sm:$0xf]
    %v2174 = vld [vmem:[%s2167 + $0x18] sm:$0xf]
    %v2175 = vld [vmem:[%s2167 + $0x1c] sm:$0xf]
    %v2176 = vld [vmem:[%s2167 + $0x20] sm:$0xf]
    %v2177 = vld [vmem:[%s2167 + $0x24] sm:$0xf]
    %v2178 = vld [vmem:[%s2167 + $0x28] sm:$0xf]
    %v2179 = vld [vmem:[%s2167 + $0x2c] sm:$0xf]
    %v2180 = vld [vmem:[%s2167 + $0x30] sm:$0xf]
    %v2181 = vld [vmem:[%s2167 + $0x34] sm:$0xf]
    %v2182 = vld [vmem:[%s2167 + $0x38] sm:$0xf]
    %v2183 = vld [vmem:[%s2167 + $0x3c] sm:$0xf]
    %s2184 = scalar_lea.vmem %s8, 4
    %v2185 = vld [vmem:[%s2184] sm:$0x1]
    %v2186 = vpack.c.bf16 %v2164, %v2163
    %v2187 = vpack.c.bf16 %v2166, %v2165
    %v2189 = vlaneseq
    %v2190 = vshrl.u32 %v2189, 7
    %v2191 = vsub.s32 0, %v2190
    %v2192 = vrot.slane %v2185, %v2191
    %v2210 = vunpack.c.l.b16 %v2168
    %v2211 = vunpack.c.l.b16 %v2169
    %v2212 = vunpack.c.l.b16 %v2170
    %v2213 = vunpack.c.l.b16 %v2171
    %v2214 = vunpack.c.l.b16 %v2172
    %v2215 = vunpack.c.l.b16 %v2173
    %v2216 = vunpack.c.l.b16 %v2174
    %v2217 = vunpack.c.l.b16 %v2175
    %v2218 = vunpack.c.l.b16 %v2176
    %v2219 = vunpack.c.l.b16 %v2177
    %v2220 = vunpack.c.l.b16 %v2178
    %v2221 = vunpack.c.l.b16 %v2179
    %v2222 = vunpack.c.l.b16 %v2180
    %v2223 = vunpack.c.l.b16 %v2181
    %v2224 = vunpack.c.l.b16 %v2182
    %v2225 = vunpack.c.l.b16 %v2183
    %v2226 = vpack.c.b16 %v2211, %v2210
    %v2227 = vpack.c.b16 %v2213, %v2212
    %v2228 = vpack.c.b16 %v2215, %v2214
    %v2229 = vpack.c.b16 %v2217, %v2216
    %v2230 = vpack.c.b16 %v2219, %v2218
    %v2231 = vpack.c.b16 %v2221, %v2220
    %v2232 = vpack.c.b16 %v2223, %v2222
    %v2233 = vpack.c.b16 %v2225, %v2224
    %2242 = vmatprep.subr.bf16.mxu0 0
    %2243 = vmatpush1.bf16.msra.mxu0 %v2226
    %2244 = vmatprep.subr.bf16.mxu0 0
    %2245 = vmatpush1.bf16.msra.mxu0 %v2227
    %2246 = vmatprep.subr.bf16.mxu0 0
    %2247 = vmatpush1.bf16.msra.mxu0 %v2228
    %2248 = vmatprep.subr.bf16.mxu0 0
    %2249 = vmatpush1.bf16.msra.mxu0 %v2229
    %2250 = vmatprep.subr.bf16.mxu0 0
    %2251 = vmatpush1.bf16.msra.mxu0 %v2230
    %2252 = vmatprep.subr.bf16.mxu0 0
    %2253 = vmatpush1.bf16.msra.mxu0 %v2231
    %2254 = vmatprep.subr.bf16.mxu0 0
    %2255 = vmatpush1.bf16.msra.mxu0 %v2232
    %2256 = vmatprep.subr.bf16.mxu0 0
    %2257 = vmatpush1.bf16.msra.mxu0 %v2233
    %2258 = vmatprep.subr.bf16.mxu0 0
    %2259 = vmatpush1.bf16.msra.mxu0 0
    %2260 = vmatprep.subr.bf16.mxu0 0
    %2261 = vmatpush1.bf16.msra.mxu0 0
    %2262 = vmatprep.subr.bf16.mxu0 0
    %2263 = vmatpush1.bf16.msra.mxu0 0
    %2264 = vmatprep.subr.bf16.mxu0 0
    %2265 = vmatpush1.bf16.msra.mxu0 0
    %2266 = vmatprep.subr.bf16.mxu0 0
    %2267 = vmatpush1.bf16.msra.mxu0 0
    %2268 = vmatprep.subr.bf16.mxu0 0
    %2269 = vmatpush1.bf16.msra.mxu0 0
    %2270 = vmatprep.subr.bf16.mxu0 0
    %2271 = vmatpush1.bf16.msra.mxu0 0
    %2272 = vmatprep.subr.bf16.mxu0 0
    %2273 = vmatpush1.bf16.msra.mxu0 0
    %2274 = vmatprep.mubr.bf16.mxu0 0
    %2275 = vmatmul.mubr.bf16.gmra.mrb[0].mxu0 %v2186
    %v2276 = vpop.f32.mrb[0].mxu0
    %v2277 = vadd.f32 %v2192, %v2276
    %v2278 = vpop.f32.mrb[0].mxu0
    %v2279 = vpop.f32.mrb[0].mxu0
    %v2280 = vadd.f32 %v2192, %v2279
    %v2281 = vpop.f32.mrb[0].mxu0
    %2282 = vmatprep.mubr.bf16.mxu0 0
    %2283 = vmatmul.mubr.bf16.gmra.mrb[0].mxu0 %v2187
    %v2284 = vpop.f32.mrb[0].mxu0
    %v2285 = vadd.f32 %v2192, %v2284
    %v2286 = vpop.f32.mrb[0].mxu0
    %v2287 = vpop.f32.mrb[0].mxu0
    %v2288 = vadd.f32 %v2192, %v2287
    %v2289 = vpop.f32.mrb[0].mxu0
    %2290 = vdwg.mxu0
    %s2291 = scalar_lea.vmem %s9, 4
    %v2292 = vld [vmem:[%s2291] sm:$0x1]
    %s2293 = scalar_lea.vmem %s10, 4
    %v2294 = vld [vmem:[%s2293] sm:$0x1]
    %v2295 = vadd.f32 %v2277, %v2280
    %v2296 = vrot.slane %v2295, 4
    %v2297 = vadd.f32 %v2295, %v2296
    %v2298 = vrot.slane %v2297, 2
    %v2299 = vadd.f32 %v2297, %v2298
    %v2300 = vrot.slane %v2299, 1
    %v2301 = vadd.f32 %v2299, %v2300
    %v2302 = vadd.f32 %v2285, %v2288
    %v2303 = vrot.slane %v2302, 4
    %v2304 = vadd.f32 %v2302, %v2303
    %v2305 = vrot.slane %v2304, 2
    %v2306 = vadd.f32 %v2304, %v2305
    %v2307 = vrot.slane %v2306, 1
    %v2308 = vadd.f32 %v2306, %v2307
    %v2309 = vmul.f32 %v2301, %v297
    %v2310 = vmul.f32 %v2308, %v297
    %v2311 = vmul.f32 %v2277, %v2277
    %v2312 = vmul.f32 %v2280, %v2280
    %v2313 = vmul.f32 %v2285, %v2285
    %v2314 = vmul.f32 %v2288, %v2288
    %v2315 = vadd.f32 %v2311, %v2312
    %v2316 = vrot.slane %v2315, 4
    %v2317 = vadd.f32 %v2315, %v2316
    %v2318 = vrot.slane %v2317, 2
    %v2319 = vadd.f32 %v2317, %v2318
    %v2320 = vrot.slane %v2319, 1
    %v2321 = vadd.f32 %v2319, %v2320
    %v2322 = vadd.f32 %v2313, %v2314
    %v2323 = vrot.slane %v2322, 4
    %v2324 = vadd.f32 %v2322, %v2323
    %v2325 = vrot.slane %v2324, 2
    %v2326 = vadd.f32 %v2324, %v2325
    %v2327 = vrot.slane %v2326, 1
    %v2328 = vadd.f32 %v2326, %v2327
    %v2329 = vmul.f32 %v2321, %v297
    %v2330 = vmul.f32 %v2328, %v297
    %v2331 = vmul.f32 %v2309, %v2309
    %v2332 = vmul.f32 %v2310, %v2310
    %v2333 = vsub.f32 %v2329, %v2331
    %v2334 = vsub.f32 %v2330, %v2332
    %v2335 = vmax.f32 %v2333, 0.0
    %v2336 = vmax.f32 %v2334, 0.0
    %v2337 = vadd.f32 %v2335, 1e-05
    %v2338 = vadd.f32 %v2336, 1e-05
    %v2339 = vrsqrt.pop %v2337
    %v2340 = vrsqrt.pop %v2338
    %v2341 = vmul.f32 %v2339, %v2339
    %v2342 = vmul.f32 %v2340, %v2340
    %v2343 = vmul.f32 %v2335, %v2341
    %v2344 = vmul.f32 %v2336, %v2342
    %v2345 = vadd.f32 %v2343, %v2344
    %v2346 = vmul.f32 %v2345, %v335
    %v2347 = vadd.f32 %v2346, 1e-05
    %v2348 = vrsqrt.pop %v2347
    %v2349 = vmul.f32 %v2339, %v2348
    %v2350 = vmul.f32 %v2340, %v2348
    %v2351 = vmul.f32 %v2349, %v2292
    %v2352 = vmul.f32 %v2350, %v2292
    %v2353 = vmul.f32 %v2309, %v2351
    %v2354 = vmul.f32 %v2310, %v2352
    %v2355 = vsub.f32 %v2294, %v2353
    %v2356 = vsub.f32 %v2294, %v2354
    %v2357 = vlaneseq
    %v2358 = vshrl.u32 %v2357, 7
    %v2359 = vsub.s32 0, %v2358
    %v2360 = vrot.slane %v2351, %v2359
    %v2361 = vlaneseq
    %v2362 = vshrl.u32 %v2361, 7
    %v2363 = vsub.s32 0, %v2362
    %v2364 = vrot.slane %v2352, %v2363
    %v2365 = vmul.f32 %v2277, %v2360
    %v2366 = vmul.f32 %v2280, %v2360
    %v2367 = vmul.f32 %v2285, %v2364
    %v2368 = vmul.f32 %v2288, %v2364
    %v2371 = vlaneseq
    %v2372 = vshrl.u32 %v2371, 7
    %v2373 = vsub.s32 0, %v2372
    %v2374 = vrot.slane %v2355, %v2373
    %v2375 = vlaneseq
    %v2376 = vshrl.u32 %v2375, 7
    %v2377 = vsub.s32 0, %v2376
    %v2378 = vrot.slane %v2356, %v2377
    %v2381 = vadd.f32 %v2365, %v2374
    %v2382 = vadd.f32 %v2366, %v2374
    %v2383 = vadd.f32 %v2367, %v2378
    %v2384 = vadd.f32 %v2368, %v2378
    %v2385 = vmax.f32 %v2381, 0.0
    %v2386 = vmax.f32 %v2382, 0.0
    %v2387 = vmax.f32 %v2383, 0.0
    %v2388 = vmax.f32 %v2384, 0.0
    %v2389 = vadd.f32 %v2385, %v1941
    %v2390 = vadd.f32 %v2386, %v1942
    %v2391 = vadd.f32 %v2387, %v1943
    %v2392 = vadd.f32 %v2388, %v1944
    %v2393 = vld [vmem:[%s11] sm:$0xf]
    %v2394 = vld [vmem:[%s11 + $0x4] sm:$0xf]
    %v2395 = vld [vmem:[%s11 + $0x8] sm:$0xf]
    %v2396 = vld [vmem:[%s11 + $0xc] sm:$0xf]
    %v2397 = vld [vmem:[%s11 + $0x10] sm:$0xf]
    %v2398 = vld [vmem:[%s11 + $0x14] sm:$0xf]
    %v2399 = vld [vmem:[%s11 + $0x18] sm:$0xf]
    %v2400 = vld [vmem:[%s11 + $0x1c] sm:$0xf]
    %v2401 = vld [vmem:[%s11 + $0x20] sm:$0xf]
    %v2402 = vld [vmem:[%s11 + $0x24] sm:$0xf]
    %v2403 = vld [vmem:[%s11 + $0x28] sm:$0xf]
    %v2404 = vld [vmem:[%s11 + $0x2c] sm:$0xf]
    %v2405 = vld [vmem:[%s11 + $0x30] sm:$0xf]
    %v2406 = vld [vmem:[%s11 + $0x34] sm:$0xf]
    %v2407 = vld [vmem:[%s11 + $0x38] sm:$0xf]
    %v2408 = vld [vmem:[%s11 + $0x3c] sm:$0xf]
    %v2409 = vld [vmem:[%s12] sm:$0x1]
    %v2410 = vpack.c.bf16 %v2390, %v2389
    %v2411 = vpack.c.bf16 %v2392, %v2391
    %v2413 = vlaneseq
    %v2414 = vshrl.u32 %v2413, 7
    %v2415 = vsub.s32 0, %v2414
    %v2416 = vrot.slane %v2409, %v2415
    %v2434 = vunpack.c.l.b16 %v2393
    %v2435 = vunpack.c.l.b16 %v2394
    %v2436 = vunpack.c.l.b16 %v2395
    %v2437 = vunpack.c.l.b16 %v2396
    %v2438 = vunpack.c.l.b16 %v2397
    %v2439 = vunpack.c.l.b16 %v2398
    %v2440 = vunpack.c.l.b16 %v2399
    %v2441 = vunpack.c.l.b16 %v2400
    %v2442 = vunpack.c.l.b16 %v2401
    %v2443 = vunpack.c.l.b16 %v2402
    %v2444 = vunpack.c.l.b16 %v2403
    %v2445 = vunpack.c.l.b16 %v2404
    %v2446 = vunpack.c.l.b16 %v2405
    %v2447 = vunpack.c.l.b16 %v2406
    %v2448 = vunpack.c.l.b16 %v2407
    %v2449 = vunpack.c.l.b16 %v2408
    %v2450 = vpack.c.b16 %v2435, %v2434
    %v2451 = vpack.c.b16 %v2437, %v2436
    %v2452 = vpack.c.b16 %v2439, %v2438
    %v2453 = vpack.c.b16 %v2441, %v2440
    %v2454 = vpack.c.b16 %v2443, %v2442
    %v2455 = vpack.c.b16 %v2445, %v2444
    %v2456 = vpack.c.b16 %v2447, %v2446
    %v2457 = vpack.c.b16 %v2449, %v2448
    %2466 = vmatprep.subr.bf16.mxu0 0
    %2467 = vmatpush1.bf16.msra.mxu0 %v2450
    %2468 = vmatprep.subr.bf16.mxu0 0
    %2469 = vmatpush1.bf16.msra.mxu0 %v2451
    %2470 = vmatprep.subr.bf16.mxu0 0
    %2471 = vmatpush1.bf16.msra.mxu0 %v2452
    %2472 = vmatprep.subr.bf16.mxu0 0
    %2473 = vmatpush1.bf16.msra.mxu0 %v2453
    %2474 = vmatprep.subr.bf16.mxu0 0
    %2475 = vmatpush1.bf16.msra.mxu0 %v2454
    %2476 = vmatprep.subr.bf16.mxu0 0
    %2477 = vmatpush1.bf16.msra.mxu0 %v2455
    %2478 = vmatprep.subr.bf16.mxu0 0
    %2479 = vmatpush1.bf16.msra.mxu0 %v2456
    %2480 = vmatprep.subr.bf16.mxu0 0
    %2481 = vmatpush1.bf16.msra.mxu0 %v2457
    %2482 = vmatprep.subr.bf16.mxu0 0
    %2483 = vmatpush1.bf16.msra.mxu0 0
    %2484 = vmatprep.subr.bf16.mxu0 0
    %2485 = vmatpush1.bf16.msra.mxu0 0
    %2486 = vmatprep.subr.bf16.mxu0 0
    %2487 = vmatpush1.bf16.msra.mxu0 0
    %2488 = vmatprep.subr.bf16.mxu0 0
    %2489 = vmatpush1.bf16.msra.mxu0 0
    %2490 = vmatprep.subr.bf16.mxu0 0
    %2491 = vmatpush1.bf16.msra.mxu0 0
    %2492 = vmatprep.subr.bf16.mxu0 0
    %2493 = vmatpush1.bf16.msra.mxu0 0
    %2494 = vmatprep.subr.bf16.mxu0 0
    %2495 = vmatpush1.bf16.msra.mxu0 0
    %2496 = vmatprep.subr.bf16.mxu0 0
    %2497 = vmatpush1.bf16.msra.mxu0 0
    %2498 = vmatprep.mubr.bf16.mxu0 0
    %2499 = vmatmul.mubr.bf16.gmra.mrb[0].mxu0 %v2410
    %v2500 = vpop.f32.mrb[0].mxu0
    %v2501 = vadd.f32 %v2416, %v2500
    %v2502 = vpop.f32.mrb[0].mxu0
    %v2503 = vpop.f32.mrb[0].mxu0
    %v2504 = vadd.f32 %v2416, %v2503
    %v2505 = vpop.f32.mrb[0].mxu0
    %2506 = vmatprep.mubr.bf16.mxu0 0
    %2507 = vmatmul.mubr.bf16.gmra.mrb[0].mxu0 %v2411
    %v2508 = vpop.f32.mrb[0].mxu0
    %v2509 = vadd.f32 %v2416, %v2508
    %v2510 = vpop.f32.mrb[0].mxu0
    %v2511 = vpop.f32.mrb[0].mxu0
    %v2512 = vadd.f32 %v2416, %v2511
    %v2513 = vpop.f32.mrb[0].mxu0
    %2514 = vdwg.mxu0
    %v2515 = vmin.f32 %v2501, 0.0
    %v2516 = vmin.f32 %v2504, 0.0
    %v2517 = vmin.f32 %v2509, 0.0
    %v2518 = vmin.f32 %v2512, 0.0
    %v2519 = vand.u32 2147483647, %v2501
    %v2520 = vand.u32 2147483647, %v2504
    %v2521 = vand.u32 2147483647, %v2509
    %v2522 = vand.u32 2147483647, %v2512
    %v2523 = vsub.f32 0.0, %v2519
    %v2524 = vsub.f32 0.0, %v2520
    %v2525 = vsub.f32 0.0, %v2521
    %v2526 = vsub.f32 0.0, %v2522
    %v2527 = vmul.f32 %v2523, 1.442695
    %v2528 = vpow.pop %v2527
    %v2529 = vmul.f32 %v2524, 1.442695
    %v2530 = vpow.pop %v2529
    %v2531 = vmul.f32 %v2525, 1.442695
    %v2532 = vpow.pop %v2531
    %v2533 = vmul.f32 %v2526, 1.442695
    %v2534 = vpow.pop %v2533
    %v2535 = vadd.f32 %v2528, 1.0
    %v2536 = vlog2.pop %v2535
    %v2537 = vmul.f32 %v2536, 0.6931472
    %v2538 = vmul.f32 -0.5, %v2528
    %v2539 = vadd.f32 %v2538, 1.0
    %v2540 = vmul.f32 %v2539, %v2528
    %v2541 = vand.u32 2147483647, %v2528
    %vm2542 = vcmp.lt.f32.partialorder %v2541, 0.0004427343
    %v2543 = vsel %vm2542, %v2540, %v2537
    %v2544 = vadd.f32 %v2530, 1.0
    %v2545 = vlog2.pop %v2544
    %v2546 = vmul.f32 %v2545, 0.6931472
    %v2547 = vmul.f32 -0.5, %v2530
    %v2548 = vadd.f32 %v2547, 1.0
    %v2549 = vmul.f32 %v2548, %v2530
    %v2550 = vand.u32 2147483647, %v2530
    %vm2551 = vcmp.lt.f32.partialorder %v2550, 0.0004427343
    %v2552 = vsel %vm2551, %v2549, %v2546
    %v2553 = vadd.f32 %v2532, 1.0
    %v2554 = vlog2.pop %v2553
    %v2555 = vmul.f32 %v2554, 0.6931472
    %v2556 = vmul.f32 -0.5, %v2532
    %v2557 = vadd.f32 %v2556, 1.0
    %v2558 = vmul.f32 %v2557, %v2532
    %v2559 = vand.u32 2147483647, %v2532
    %vm2560 = vcmp.lt.f32.partialorder %v2559, 0.0004427343
    %v2561 = vsel %vm2560, %v2558, %v2555
    %v2562 = vadd.f32 %v2534, 1.0
    %v2563 = vlog2.pop %v2562
    %v2564 = vmul.f32 %v2563, 0.6931472
    %v2565 = vmul.f32 -0.5, %v2534
    %v2566 = vadd.f32 %v2565, 1.0
    %v2567 = vmul.f32 %v2566, %v2534
    %v2568 = vand.u32 2147483647, %v2534
    %vm2569 = vcmp.lt.f32.partialorder %v2568, 0.0004427343
    %v2570 = vsel %vm2569, %v2567, %v2564
    %v2571 = vsub.f32 %v2515, %v2543
    %v2572 = vsub.f32 %v2516, %v2552
    %v2573 = vsub.f32 %v2517, %v2561
    %v2574 = vsub.f32 %v2518, %v2570
    %vm2575 = vcmask 64512
    %v2576 = vsel %vm2575, %v2571, -inf
    %2577 = vmax.xlane.f32.xlu0 %v2576
    %v2578 = vpop.xlane.xlu0 %2577
    %v2579 = vsel %vm2575, %v2572, -inf
    %2580 = vmax.xlane.f32.xlu0 %v2579
    %v2581 = vpop.xlane.xlu0 %2580
    %v2582 = vsel %vm2575, %v2573, -inf
    %2583 = vmax.xlane.f32.xlu0 %v2582
    %v2584 = vpop.xlane.xlu0 %2583
    %v2585 = vsel %vm2575, %v2574, -inf
    %2586 = vmax.xlane.f32.xlu0 %v2585
    %v2587 = vpop.xlane.xlu0 %2586
    %v2588 = vsub.f32 %v2571, %v2578
    %v2589 = vsub.f32 %v2572, %v2581
    %v2590 = vsub.f32 %v2573, %v2584
    %v2591 = vsub.f32 %v2574, %v2587
    %v2592 = vmul.f32 %v2588, 1.442695
    %v2593 = vpow.pop %v2592
    %v2594 = vmul.f32 %v2589, 1.442695
    %v2595 = vpow.pop %v2594
    %v2596 = vmul.f32 %v2590, 1.442695
    %v2597 = vpow.pop %v2596
    %v2598 = vmul.f32 %v2591, 1.442695
    %v2599 = vpow.pop %v2598
    %v2600 = vsel %vm2575, %v2593, 0.0
    %2601 = vadd.xlane.f32.xlu0 %v2600
    %v2602 = vpop.xlane.xlu0 %2601
    %v2603 = vsel %vm2575, %v2595, 0.0
    %2604 = vadd.xlane.f32.xlu0 %v2603
    %v2605 = vpop.xlane.xlu0 %2604
    %v2606 = vsel %vm2575, %v2597, 0.0
    %2607 = vadd.xlane.f32.xlu0 %v2606
    %v2608 = vpop.xlane.xlu0 %2607
    %v2609 = vsel %vm2575, %v2599, 0.0
    %2610 = vadd.xlane.f32.xlu0 %v2609
    %v2611 = vpop.xlane.xlu0 %2610
    %v2612 = vlog2.pop %v2602
    %v2613 = vmul.f32 %v2612, 0.6931472
    %v2614 = vlog2.pop %v2605
    %v2615 = vmul.f32 %v2614, 0.6931472
    %v2616 = vlog2.pop %v2608
    %v2617 = vmul.f32 %v2616, 0.6931472
    %v2618 = vlog2.pop %v2611
    %v2619 = vmul.f32 %v2618, 0.6931472
    %v2620 = vadd.f32 %v2578, %v2613
    %v2621 = vadd.f32 %v2581, %v2615
    %v2622 = vadd.f32 %v2584, %v2617
    %v2623 = vadd.f32 %v2587, %v2619
    %v2624 = vsub.f32 %v2571, %v2620
    %v2625 = vsub.f32 %v2572, %v2621
    %v2626 = vsub.f32 %v2573, %v2622
    %v2627 = vsub.f32 %v2574, %v2623
    %2628 = vst.msk [vmem:[%s15] sm:$0xff] %vm2575, %v2624
    %2629 = vst.msk [vmem:[%s15 + $0x8] sm:$0xff] %vm2575, %v2625
    %2630 = vst.msk [vmem:[%s15 + $0x10] sm:$0xff] %vm2575, %v2626
    %2631 = vst.msk [vmem:[%s15 + $0x18] sm:$0xff] %vm2575, %v2627
    %v2632 = vld [vmem:[%s13] sm:$0xf]
    %v2633 = vld [vmem:[%s13 + $0x4] sm:$0xf]
    %v2634 = vld [vmem:[%s13 + $0x8] sm:$0xf]
    %v2635 = vld [vmem:[%s13 + $0xc] sm:$0xf]
    %v2636 = vld [vmem:[%s13 + $0x10] sm:$0xf]
    %v2637 = vld [vmem:[%s13 + $0x14] sm:$0xf]
    %v2638 = vld [vmem:[%s13 + $0x18] sm:$0xf]
    %v2639 = vld [vmem:[%s13 + $0x1c] sm:$0xf]
    %v2640 = vld [vmem:[%s13 + $0x20] sm:$0xf]
    %v2641 = vld [vmem:[%s13 + $0x24] sm:$0xf]
    %v2642 = vld [vmem:[%s13 + $0x28] sm:$0xf]
    %v2643 = vld [vmem:[%s13 + $0x2c] sm:$0xf]
    %v2644 = vld [vmem:[%s13 + $0x30] sm:$0xf]
    %v2645 = vld [vmem:[%s13 + $0x34] sm:$0xf]
    %v2646 = vld [vmem:[%s13 + $0x38] sm:$0xf]
    %v2647 = vld [vmem:[%s13 + $0x3c] sm:$0xf]
    %v2648 = vld [vmem:[%s14] sm:$0x1]
    %v2650 = vlaneseq
    %v2651 = vshrl.u32 %v2650, 7
    %v2652 = vsub.s32 0, %v2651
    %v2653 = vrot.slane %v2648, %v2652
    %v2671 = vunpack.c.l.b16 %v2632
    %v2672 = vunpack.c.l.b16 %v2633
    %v2673 = vunpack.c.l.b16 %v2634
    %v2674 = vunpack.c.l.b16 %v2635
    %v2675 = vunpack.c.l.b16 %v2636
    %v2676 = vunpack.c.l.b16 %v2637
    %v2677 = vunpack.c.l.b16 %v2638
    %v2678 = vunpack.c.l.b16 %v2639
    %v2679 = vunpack.c.l.b16 %v2640
    %v2680 = vunpack.c.l.b16 %v2641
    %v2681 = vunpack.c.l.b16 %v2642
    %v2682 = vunpack.c.l.b16 %v2643
    %v2683 = vunpack.c.l.b16 %v2644
    %v2684 = vunpack.c.l.b16 %v2645
    %v2685 = vunpack.c.l.b16 %v2646
    %v2686 = vunpack.c.l.b16 %v2647
    %v2687 = vpack.c.b16 %v2672, %v2671
    %v2688 = vpack.c.b16 %v2674, %v2673
    %v2689 = vpack.c.b16 %v2676, %v2675
    %v2690 = vpack.c.b16 %v2678, %v2677
    %v2691 = vpack.c.b16 %v2680, %v2679
    %v2692 = vpack.c.b16 %v2682, %v2681
    %v2693 = vpack.c.b16 %v2684, %v2683
    %v2694 = vpack.c.b16 %v2686, %v2685
    %2703 = vmatprep.subr.bf16.mxu0 0
    %2704 = vmatpush1.bf16.msra.mxu0 %v2687
    %2705 = vmatprep.subr.bf16.mxu0 0
    %2706 = vmatpush1.bf16.msra.mxu0 %v2688
    %2707 = vmatprep.subr.bf16.mxu0 0
    %2708 = vmatpush1.bf16.msra.mxu0 %v2689
    %2709 = vmatprep.subr.bf16.mxu0 0
    %2710 = vmatpush1.bf16.msra.mxu0 %v2690
    %2711 = vmatprep.subr.bf16.mxu0 0
    %2712 = vmatpush1.bf16.msra.mxu0 %v2691
    %2713 = vmatprep.subr.bf16.mxu0 0
    %2714 = vmatpush1.bf16.msra.mxu0 %v2692
    %2715 = vmatprep.subr.bf16.mxu0 0
    %2716 = vmatpush1.bf16.msra.mxu0 %v2693
    %2717 = vmatprep.subr.bf16.mxu0 0
    %2718 = vmatpush1.bf16.msra.mxu0 %v2694
    %2719 = vmatprep.subr.bf16.mxu0 0
    %2720 = vmatpush1.bf16.msra.mxu0 0
    %2721 = vmatprep.subr.bf16.mxu0 0
    %2722 = vmatpush1.bf16.msra.mxu0 0
    %2723 = vmatprep.subr.bf16.mxu0 0
    %2724 = vmatpush1.bf16.msra.mxu0 0
    %2725 = vmatprep.subr.bf16.mxu0 0
    %2726 = vmatpush1.bf16.msra.mxu0 0
    %2727 = vmatprep.subr.bf16.mxu0 0
    %2728 = vmatpush1.bf16.msra.mxu0 0
    %2729 = vmatprep.subr.bf16.mxu0 0
    %2730 = vmatpush1.bf16.msra.mxu0 0
    %2731 = vmatprep.subr.bf16.mxu0 0
    %2732 = vmatpush1.bf16.msra.mxu0 0
    %2733 = vmatprep.subr.bf16.mxu0 0
    %2734 = vmatpush1.bf16.msra.mxu0 0
    %2735 = vmatprep.mubr.bf16.mxu0 0
    %2736 = vmatmul.mubr.bf16.gmra.mrb[0].mxu0 %v2410
    %v2737 = vpop.f32.mrb[0].mxu0
    %v2738 = vadd.f32 %v2653, %v2737
    %v2739 = vpop.f32.mrb[0].mxu0
    %v2740 = vpop.f32.mrb[0].mxu0
    %v2741 = vadd.f32 %v2653, %v2740
    %v2742 = vpop.f32.mrb[0].mxu0
    %2743 = vmatprep.mubr.bf16.mxu0 0
    %2744 = vmatmul.mubr.bf16.gmra.mrb[0].mxu0 %v2411
    %v2745 = vpop.f32.mrb[0].mxu0
    %v2746 = vadd.f32 %v2653, %v2745
    %v2747 = vpop.f32.mrb[0].mxu0
    %v2748 = vpop.f32.mrb[0].mxu0
    %v2749 = vadd.f32 %v2653, %v2748
    %v2750 = vpop.f32.mrb[0].mxu0
    %2751 = vdwg.mxu0
    %v2752 = vmin.f32 %v2738, 0.0
    %v2753 = vmin.f32 %v2741, 0.0
    %v2754 = vmin.f32 %v2746, 0.0
    %v2755 = vmin.f32 %v2749, 0.0
    %v2756 = vand.u32 2147483647, %v2738
    %v2757 = vand.u32 2147483647, %v2741
    %v2758 = vand.u32 2147483647, %v2746
    %v2759 = vand.u32 2147483647, %v2749
    %v2760 = vsub.f32 0.0, %v2756
    %v2761 = vsub.f32 0.0, %v2757
    %v2762 = vsub.f32 0.0, %v2758
    %v2763 = vsub.f32 0.0, %v2759
    %v2764 = vmul.f32 %v2760, 1.442695
    %v2765 = vpow.pop %v2764
    %v2766 = vmul.f32 %v2761, 1.442695
    %v2767 = vpow.pop %v2766
    %v2768 = vmul.f32 %v2762, 1.442695
    %v2769 = vpow.pop %v2768
    %v2770 = vmul.f32 %v2763, 1.442695
    %v2771 = vpow.pop %v2770
    %v2772 = vadd.f32 %v2765, 1.0
    %v2773 = vlog2.pop %v2772
    %v2774 = vmul.f32 %v2773, 0.6931472
    %v2775 = vmul.f32 -0.5, %v2765
    %v2776 = vadd.f32 %v2775, 1.0
    %v2777 = vmul.f32 %v2776, %v2765
    %v2778 = vand.u32 2147483647, %v2765
    %vm2779 = vcmp.lt.f32.partialorder %v2778, 0.0004427343
    %v2780 = vsel %vm2779, %v2777, %v2774
    %v2781 = vadd.f32 %v2767, 1.0
    %v2782 = vlog2.pop %v2781
    %v2783 = vmul.f32 %v2782, 0.6931472
    %v2784 = vmul.f32 -0.5, %v2767
    %v2785 = vadd.f32 %v2784, 1.0
    %v2786 = vmul.f32 %v2785, %v2767
    %v2787 = vand.u32 2147483647, %v2767
    %vm2788 = vcmp.lt.f32.partialorder %v2787, 0.0004427343
    %v2789 = vsel %vm2788, %v2786, %v2783
    %v2790 = vadd.f32 %v2769, 1.0
    %v2791 = vlog2.pop %v2790
    %v2792 = vmul.f32 %v2791, 0.6931472
    %v2793 = vmul.f32 -0.5, %v2769
    %v2794 = vadd.f32 %v2793, 1.0
    %v2795 = vmul.f32 %v2794, %v2769
    %v2796 = vand.u32 2147483647, %v2769
    %vm2797 = vcmp.lt.f32.partialorder %v2796, 0.0004427343
    %v2798 = vsel %vm2797, %v2795, %v2792
    %v2799 = vadd.f32 %v2771, 1.0
    %v2800 = vlog2.pop %v2799
    %v2801 = vmul.f32 %v2800, 0.6931472
    %v2802 = vmul.f32 -0.5, %v2771
    %v2803 = vadd.f32 %v2802, 1.0
    %v2804 = vmul.f32 %v2803, %v2771
    %v2805 = vand.u32 2147483647, %v2771
    %vm2806 = vcmp.lt.f32.partialorder %v2805, 0.0004427343
    %v2807 = vsel %vm2806, %v2804, %v2801
    %v2808 = vsub.f32 %v2752, %v2780
    %v2809 = vsub.f32 %v2753, %v2789
    %v2810 = vsub.f32 %v2754, %v2798
    %v2811 = vsub.f32 %v2755, %v2807
    %v2812 = vsel %vm2575, %v2808, -inf
    %v2813 = vsel %vm2575, %v2809, -inf
    %v2814 = vmax.f32 %v2812, %v2813
    %v2815 = vrot.slane %v2814, 4
    %v2816 = vmax.f32 %v2814, %v2815
    %v2817 = vrot.slane %v2816, 2
    %v2818 = vmax.f32 %v2816, %v2817
    %v2819 = vrot.slane %v2818, 1
    %v2820 = vmax.f32 %v2818, %v2819
    %v2821 = vsel %vm2575, %v2810, -inf
    %v2822 = vsel %vm2575, %v2811, -inf
    %v2823 = vmax.f32 %v2821, %v2822
    %v2824 = vrot.slane %v2823, 4
    %v2825 = vmax.f32 %v2823, %v2824
    %v2826 = vrot.slane %v2825, 2
    %v2827 = vmax.f32 %v2825, %v2826
    %v2828 = vrot.slane %v2827, 1
    %v2829 = vmax.f32 %v2827, %v2828
    %v2830 = vsub.f32 %v2808, %v2820
    %v2831 = vsub.f32 %v2809, %v2820
    %v2832 = vsub.f32 %v2810, %v2829
    %v2833 = vsub.f32 %v2811, %v2829
    %v2834 = vmul.f32 %v2830, 1.442695
    %v2835 = vpow.pop %v2834
    %v2836 = vmul.f32 %v2831, 1.442695
    %v2837 = vpow.pop %v2836
    %v2838 = vmul.f32 %v2832, 1.442695
    %v2839 = vpow.pop %v2838
    %v2840 = vmul.f32 %v2833, 1.442695
    %v2841 = vpow.pop %v2840
    %v2842 = vsel %vm2575, %v2835, 0.0
    %v2843 = vsel %vm2575, %v2837, 0.0
    %v2844 = vadd.f32 %v2842, %v2843
    %v2845 = vrot.slane %v2844, 4
    %v2846 = vadd.f32 %v2844, %v2845
    %v2847 = vrot.slane %v2846, 2
    %v2848 = vadd.f32 %v2846, %v2847
    %v2849 = vrot.slane %v2848, 1
    %v2850 = vadd.f32 %v2848, %v2849
    %v2851 = vsel %vm2575, %v2839, 0.0
    %v2852 = vsel %vm2575, %v2841, 0.0
    %v2853 = vadd.f32 %v2851, %v2852
    %v2854 = vrot.slane %v2853, 4
    %v2855 = vadd.f32 %v2853, %v2854
    %v2856 = vrot.slane %v2855, 2
    %v2857 = vadd.f32 %v2855, %v2856
    %v2858 = vrot.slane %v2857, 1
    %v2859 = vadd.f32 %v2857, %v2858
    %v2860 = vlog2.pop %v2850
    %v2861 = vmul.f32 %v2860, 0.6931472
    %v2862 = vlog2.pop %v2859
    %v2863 = vmul.f32 %v2862, 0.6931472
    %v2864 = vadd.f32 %v2820, %v2861
    %v2865 = vadd.f32 %v2829, %v2863
    %v2866 = vsub.f32 %v2808, %v2864
    %v2867 = vsub.f32 %v2809, %v2864
    %v2868 = vsub.f32 %v2810, %v2865
    %v2869 = vsub.f32 %v2811, %v2865
    %2870 = vst.msk [vmem:[%s16] sm:$0xff] %vm2575, %v2866
    %2871 = vst.msk [vmem:[%s16 + $0x8] sm:$0xff] %vm2575, %v2867
    %2872 = vst.msk [vmem:[%s16 + $0x10] sm:$0xff] %vm2575, %v2868
    %2873 = vst.msk [vmem:[%s16 + $0x18] sm:$0xff] %vm2575, %v2869
    // Predicated region
    $region70: #{tpu_custom_call.1} parent=1 // pred_check
      _
    $region71: #{tpu_custom_call.1} parent=1 // pred_check_branch
      %2875 = sbr.rel (0) target = $region73
    $region72: #{tpu_custom_call.1} parent=1 // pred_region
      _
    $region73: #{tpu_custom_call.1} parent=1 // pred_fallthru
      _
    // Predicated region
    $region74: #{tpu_custom_call.1} parent=1 // pred_check
      _
    $region75: #{tpu_custom_call.1} parent=1 // pred_check_branch
      %2877 = sbr.rel (0) target = $region77
    $region76: #{tpu_custom_call.1} parent=1 // pred_region
      _
    $region77: #{tpu_custom_call.1} parent=1 // pred_fallthru
      _
    // Predicated region
    $region78: #{tpu_custom_call.1} parent=1 // pred_check
      _
    $region79: #{tpu_custom_call.1} parent=1 // pred_check_branch
      %2879 = sbr.rel (0) target = $region81
    $region80: #{tpu_custom_call.1} parent=1 // pred_region
      _
    $region81: #{tpu_custom_call.1} parent=1 // pred_fallthru
      _
    // Predicated region
    $region82: #{tpu_custom_call.1} parent=1 // pred_check
      _
    $region83: #{tpu_custom_call.1} parent=1 // pred_check_branch
      %2881 = sbr.rel (0) target = $region85
    $region84: #{tpu_custom_call.1} parent=1 // pred_region
      _
    $region85: #{tpu_custom_call.1} parent=1 // pred_fallthru
      _
    %2882 = vsyncpa [#allocation3], 1
    %2883 = vsyncpa [#allocation5], 1

</llo_original>
